<compile_context>
chip_gen: v7x
topology: tpu7x:2x2x1
jax: 0.10.0
libtpu: 0.0.40
codegen_flags: <defaults>
</compile_context>

<pallas_src>
import functools

import numpy as np
import jax
import jax.numpy as jnp
from jax.experimental import pallas as pl
from jax.experimental.pallas import tpu as pltpu


def _eucdcl_kernel(z_ref, out_ref, trans_ref, *, temperature: float):
    """Per-batch-tile EucDCL forward.

    z_ref    : (T, D, tB) VMEM, input dtype, batch on lanes.
    out_ref  : (1, tB)    VMEM f32, per-sample loss (lane-dense, unmasked store).
    trans_ref: (T-1, tB)  VMEM f32 scratch, off-diagonal row sums for rows 1..T-1.
    """
    T, D, tB = z_ref.shape
    K = T - 1
    neg_inv_temp = jnp.float32(-1.0 / temperature)  # fold 1/temp into a multiply
    eps = jnp.float32(1e-8)
    d_chunk = 8  # 8-sublane slabs along the feature axis bound the live vreg set

    def pair_sim(i, j):
        # exp(-||z[i] - z[j]||_2 / temp) for the whole batch tile -> (1, tB) f32.
        d2 = jnp.zeros((1, tB), jnp.float32)
        for d0 in range(0, D, d_chunk):
            dc = min(d_chunk, D - d0)
            zi = z_ref[i, d0:d0 + dc, :].astype(jnp.float32)
            zj = z_ref[j, d0:d0 + dc, :].astype(jnp.float32)
            diff = zi - zj
            d2 = d2 + jnp.sum(diff * diff, axis=0, keepdims=True)
        return jnp.exp(jnp.sqrt(d2) * neg_inv_temp)

    # Scratch persists across grid steps -> re-zero for every batch tile.
    trans_ref[...] = jnp.zeros_like(trans_ref)

    # Pairs (0, j): give pos[j] = sim(0, j) and contribute to trans[j].
    sum_log_pos = jnp.zeros((1, tB), jnp.float32)
    for j in range(1, T):
        s = pair_sim(0, j)
        trans_ref[j - 1:j, :] = trans_ref[j - 1:j, :] + s
        sum_log_pos = sum_log_pos + jnp.log(s + eps)

    # Unique pairs (i, j), 1 <= i < j <= T-1: sim contributes to trans[i] and trans[j].
    for i in range(1, T - 1):
        acc_i = jnp.zeros((1, tB), jnp.float32)   # row-i contribution held in registers
        for j in range(i + 1, T):
            s = pair_sim(i, j)
            acc_i = acc_i + s
            trans_ref[j - 1:j, :] = trans_ref[j - 1:j, :] + s
        trans_ref[i - 1:i, :] = trans_ref[i - 1:i, :] + acc_i

    # trans[i] = sum_{j != i} (sim[i,j] + 1e-8); the diagonal was never summed, so
    # there is no 1.0-cancellation even when every off-diag sim is ~1e-7.
    trans = trans_ref[...] + jnp.float32(K) * eps                     # (T-1, tB)
    sum_log_trans = jnp.sum(jnp.log(trans), axis=0, keepdims=True)    # (1, tB)

    scale = jnp.float32(1.0 / np.abs(K * np.log(1.0 / K)))
    out_ref[...] = ((sum_log_trans - sum_log_pos) * scale).astype(out_ref.dtype)


def eucdcl_loss(z: jax.Array, temperature: float = 1.0, block_b: int = 1024) -> jax.Array:
    """Pallas TPU implementation of EucDCL.forward(z, eval=False). Returns (B,) loss."""
    B, T, D = z.shape
    if T < 2:
        raise ValueError("EucDCL requires num_trans >= 2")

    # Put the batch dimension on lanes: (B, T, D) -> (T, D, B). Layout plumbing only.
    # TODO(synk): if this loss is hot at large B, have the producer emit z already in
    # (T, D, B) layout to avoid the extra HBM transpose pass before the kernel.
    zt = jnp.transpose(z, (1, 2, 0))

    lane = 128
    block_b = max(lane, (int(block_b) // lane) * lane)   # tile must be a multiple of 128
    b_lanes = pl.cdiv(B, lane) * lane                    # minimal lane-aligned batch
    if b_lanes >= 2 * lane:
        # Keep >=2 grid tiles so the "parallel" batch axis can shard across both
        # TensorCores on v7x; single-TC chips (v5e/v6e) are unaffected.
        tb = min(block_b, pl.cdiv(b_lanes // lane, 2) * lane)
    else:
        tb = b_lanes
    b_pad = pl.cdiv(B, tb) * tb
    if b_pad != B:
        # Zero-padded lanes produce finite garbage (log(K) - log(1)) that is sliced off.
        zt = jnp.pad(zt, ((0, 0), (0, 0), (0, b_pad - B)))

    kernel = functools.partial(_eucdcl_kernel, temperature=float(temperature))
    out = pl.pallas_call(
        kernel,
        out_shape=jax.ShapeDtypeStruct((1, b_pad), jnp.float32),
        grid_spec=pltpu.PrefetchScalarGridSpec(
            num_scalar_prefetch=0,
            grid=(b_pad // tb,),
            in_specs=[pl.BlockSpec((T, D, tb), lambda b: (0, 0, b))],
            out_specs=pl.BlockSpec((1, tb), lambda b: (0, b)),
            scratch_shapes=[pltpu.VMEM((T - 1, tb), jnp.float32)],
        ),
        compiler_params=pltpu.CompilerParams(dimension_semantics=("parallel",)),
    )(zt)
    return out[0, :B]


def _eucdcl_reference(z: jax.Array, temperature: float = 1.0) -> jax.Array:
    """Plain-JAX reference mirroring the PyTorch code for validation."""
    z = z.astype(jnp.float32)
    B, T, D = z.shape
    diff = z[:, :, None, :] - z[:, None, :, :]
    dist = jnp.sqrt(jnp.sum(diff * diff, axis=-1))
    sim = jnp.exp(-dist / temperature)
    eye = jnp.eye(T, dtype=bool)[None]
    # masked_select(off-diagonal).view(B, T, T-1): per row, the j != i entries in order.
    sim_off = sim[jnp.broadcast_to(~eye, sim.shape)].reshape(B, T, T - 1) + 1e-8
    trans = sim_off[:, 1:].sum(-1)
    pos = sim_off[:, 1:, 0]
    K = T - 1
    scale = 1.0 / np.abs(K * np.log(1.0 / K))
    score = (-jnp.log(pos) + jnp.log(trans)) * scale
    return score.sum(1)


if __name__ == "__main__":
    key = jax.random.PRNGKey(0)

    # Small shape consistent with the module: (batch, num_trans, z_dim).
    B, T, D = 2, 8, 32
    z = jax.random.normal(key, (B, T, D), dtype=jnp.float32)
    loss = eucdcl_loss(z, temperature=1.0)
    jax.block_until_ready(loss)
    ref = _eucdcl_reference(z, temperature=1.0)
    np.testing.assert_allclose(np.asarray(loss), np.asarray(ref), rtol=1e-4, atol=1e-4)

    # Larger batch exercising padding + the 2-tile parallel batch grid, with a small
    # temperature so the off-diagonal sims are ~1e-7 (the old cancellation regime).
    B2 = 1000
    z2 = jax.random.normal(jax.random.PRNGKey(1), (B2, T, D), dtype=jnp.float32)
    loss2 = eucdcl_loss(z2, temperature=0.5)
    jax.block_until_ready(loss2)
    ref2 = _eucdcl_reference(z2, temperature=0.5)
    np.testing.assert_allclose(np.asarray(loss2), np.asarray(ref2), rtol=1e-4, atol=1e-4)

    print("KERNEL_OK")
</pallas_src>

<mosaic_0001>
module attributes {stable_mosaic.version = 11 : i64} {
  func.func @_eucdcl_kernel(%arg0: i32, %arg1: memref<8x32x128xf32, #tpu.memory_space<vmem>>, %arg2: memref<1x128xf32, #tpu.memory_space<vmem>>, %arg3: memref<7x128xf32, #tpu.memory_space<vmem>>) attributes {dimension_semantics = [#tpu.dimension_semantics<parallel>], iteration_bounds = array<i64: 1>, scalar_prefetch = 0 : i64, scratch_operands = 1 : i64, tpu.core_type = #tpu.core_type<tc>, window_params = [{transform_indices = @transform_0, window_bounds = array<i64: 8, 32, 128>}, {transform_indices = @transform_1, window_bounds = array<i64: 1, 128>}]} {
    %cst = arith.constant 0.000000e+00 : f32
    %0 = vector.broadcast %cst : f32 to vector<7x128xf32>
    %c0 = arith.constant 0 : index
    %c0_0 = arith.constant 0 : index
    %1 = vector.load %arg3[%c0, %c0_0] : memref<7x128xf32, #tpu.memory_space<vmem>>, vector<7x128xf32>
    tpu.vector_store %arg3[%c0, %c0_0], %0 {strides = array<i32>} : memref<7x128xf32, #tpu.memory_space<vmem>>, vector<7x128xf32>,
    %cst_1 = arith.constant 0.000000e+00 : f32
    %2 = vector.broadcast %cst_1 : f32 to vector<1x128xf32>
    %cst_2 = arith.constant 0.000000e+00 : f32
    %3 = vector.broadcast %cst_2 : f32 to vector<1x128xf32>
    %c0_3 = arith.constant 0 : index
    %c0_4 = arith.constant 0 : index
    %c0_5 = arith.constant 0 : index
    %4 = vector.load %arg1[%c0_3, %c0_4, %c0_5] : memref<8x32x128xf32, #tpu.memory_space<vmem>>, vector<1x8x128xf32>
    %5 = vector.shape_cast %4 : vector<1x8x128xf32> to vector<8x128xf32>
    %c1 = arith.constant 1 : index
    %c0_6 = arith.constant 0 : index
    %c0_7 = arith.constant 0 : index
    %6 = vector.load %arg1[%c1, %c0_6, %c0_7] : memref<8x32x128xf32, #tpu.memory_space<vmem>>, vector<1x8x128xf32>
    %7 = vector.shape_cast %6 : vector<1x8x128xf32> to vector<8x128xf32>
    %8 = arith.subf %5, %7 : vector<8x128xf32>
    %9 = arith.mulf %8, %8 : vector<8x128xf32>
    %cst_8 = arith.constant dense<0.000000e+00> : vector<128xf32>
    %10 = vector.multi_reduction <add>, %9, %cst_8 [0] : vector<8x128xf32> to vector<128xf32>
    %11 = vector.shape_cast %10 : vector<128xf32> to vector<1x128xf32>
    %12 = arith.addf %3, %11 : vector<1x128xf32>
    %c0_9 = arith.constant 0 : index
    %c8 = arith.constant 8 : index
    %c0_10 = arith.constant 0 : index
    %13 = vector.load %arg1[%c0_9, %c8, %c0_10] : memref<8x32x128xf32, #tpu.memory_space<vmem>>, vector<1x8x128xf32>
    %14 = vector.shape_cast %13 : vector<1x8x128xf32> to vector<8x128xf32>
    %c1_11 = arith.constant 1 : index
    %c8_12 = arith.constant 8 : index
    %c0_13 = arith.constant 0 : index
    %15 = vector.load %arg1[%c1_11, %c8_12, %c0_13] : memref<8x32x128xf32, #tpu.memory_space<vmem>>, vector<1x8x128xf32>
    %16 = vector.shape_cast %15 : vector<1x8x128xf32> to vector<8x128xf32>
    %17 = arith.subf %14, %16 : vector<8x128xf32>
    %18 = arith.mulf %17, %17 : vector<8x128xf32>
    %cst_14 = arith.constant dense<0.000000e+00> : vector<128xf32>
    %19 = vector.multi_reduction <add>, %18, %cst_14 [0] : vector<8x128xf32> to vector<128xf32>
    %20 = vector.shape_cast %19 : vector<128xf32> to vector<1x128xf32>
    %21 = arith.addf %12, %20 : vector<1x128xf32>
    %c0_15 = arith.constant 0 : index
    %c16 = arith.constant 16 : index
    %c0_16 = arith.constant 0 : index
    %22 = vector.load %arg1[%c0_15, %c16, %c0_16] : memref<8x32x128xf32, #tpu.memory_space<vmem>>, vector<1x8x128xf32>
    %23 = vector.shape_cast %22 : vector<1x8x128xf32> to vector<8x128xf32>
    %c1_17 = arith.constant 1 : index
    %c16_18 = arith.constant 16 : index
    %c0_19 = arith.constant 0 : index
    %24 = vector.load %arg1[%c1_17, %c16_18, %c0_19] : memref<8x32x128xf32, #tpu.memory_space<vmem>>, vector<1x8x128xf32>
    %25 = vector.shape_cast %24 : vector<1x8x128xf32> to vector<8x128xf32>
    %26 = arith.subf %23, %25 : vector<8x128xf32>
    %27 = arith.mulf %26, %26 : vector<8x128xf32>
    %cst_20 = arith.constant dense<0.000000e+00> : vector<128xf32>
    %28 = vector.multi_reduction <add>, %27, %cst_20 [0] : vector<8x128xf32> to vector<128xf32>
    %29 = vector.shape_cast %28 : vector<128xf32> to vector<1x128xf32>
    %30 = arith.addf %21, %29 : vector<1x128xf32>
    %c0_21 = arith.constant 0 : index
    %c24 = arith.constant 24 : index
    %c0_22 = arith.constant 0 : index
    %31 = vector.load %arg1[%c0_21, %c24, %c0_22] : memref<8x32x128xf32, #tpu.memory_space<vmem>>, vector<1x8x128xf32>
    %32 = vector.shape_cast %31 : vector<1x8x128xf32> to vector<8x128xf32>
    %c1_23 = arith.constant 1 : index
    %c24_24 = arith.constant 24 : index
    %c0_25 = arith.constant 0 : index
    %33 = vector.load %arg1[%c1_23, %c24_24, %c0_25] : memref<8x32x128xf32, #tpu.memory_space<vmem>>, vector<1x8x128xf32>
    %34 = vector.shape_cast %33 : vector<1x8x128xf32> to vector<8x128xf32>
    %35 = arith.subf %32, %34 : vector<8x128xf32>
    %36 = arith.mulf %35, %35 : vector<8x128xf32>
    %cst_26 = arith.constant dense<0.000000e+00> : vector<128xf32>
    %37 = vector.multi_reduction <add>, %36, %cst_26 [0] : vector<8x128xf32> to vector<128xf32>
    %38 = vector.shape_cast %37 : vector<128xf32> to vector<1x128xf32>
    %39 = arith.addf %30, %38 : vector<1x128xf32>
    %40 = math.sqrt %39 : vector<1x128xf32>
    %cst_27 = arith.constant -1.000000e+00 : f32
    %41 = vector.broadcast %cst_27 : f32 to vector<1x128xf32>
    %42 = arith.mulf %40, %41 : vector<1x128xf32>
    %43 = math.exp %42 : vector<1x128xf32>
    %c0_28 = arith.constant 0 : index
    %c0_29 = arith.constant 0 : index
    %44 = vector.load %arg3[%c0_28, %c0_29] : memref<7x128xf32, #tpu.memory_space<vmem>>, vector<1x128xf32>
    %45 = arith.addf %44, %43 : vector<1x128xf32>
    %c0_30 = arith.constant 0 : index
    %c0_31 = arith.constant 0 : index
    %46 = vector.load %arg3[%c0_30, %c0_31] : memref<7x128xf32, #tpu.memory_space<vmem>>, vector<1x128xf32>
    tpu.vector_store %arg3[%c0_30, %c0_31], %45 {strides = array<i32>} : memref<7x128xf32, #tpu.memory_space<vmem>>, vector<1x128xf32>,
    %cst_32 = arith.constant 9.99999993E-9 : f32
    %47 = vector.broadcast %cst_32 : f32 to vector<1x128xf32>
    %48 = arith.addf %43, %47 : vector<1x128xf32>
    %49 = math.log %48 : vector<1x128xf32>
    %50 = arith.addf %2, %49 : vector<1x128xf32>
    %cst_33 = arith.constant 0.000000e+00 : f32
    %51 = vector.broadcast %cst_33 : f32 to vector<1x128xf32>
    %c0_34 = arith.constant 0 : index
    %c0_35 = arith.constant 0 : index
    %c0_36 = arith.constant 0 : index
    %52 = vector.load %arg1[%c0_34, %c0_35, %c0_36] : memref<8x32x128xf32, #tpu.memory_space<vmem>>, vector<1x8x128xf32>
    %53 = vector.shape_cast %52 : vector<1x8x128xf32> to vector<8x128xf32>
    %c2 = arith.constant 2 : index
    %c0_37 = arith.constant 0 : index
    %c0_38 = arith.constant 0 : index
    %54 = vector.load %arg1[%c2, %c0_37, %c0_38] : memref<8x32x128xf32, #tpu.memory_space<vmem>>, vector<1x8x128xf32>
    %55 = vector.shape_cast %54 : vector<1x8x128xf32> to vector<8x128xf32>
    %56 = arith.subf %53, %55 : vector<8x128xf32>
    %57 = arith.mulf %56, %56 : vector<8x128xf32>
    %cst_39 = arith.constant dense<0.000000e+00> : vector<128xf32>
    %58 = vector.multi_reduction <add>, %57, %cst_39 [0] : vector<8x128xf32> to vector<128xf32>
    %59 = vector.shape_cast %58 : vector<128xf32> to vector<1x128xf32>
    %60 = arith.addf %51, %59 : vector<1x128xf32>
    %c0_40 = arith.constant 0 : index
    %c8_41 = arith.constant 8 : index
    %c0_42 = arith.constant 0 : index
    %61 = vector.load %arg1[%c0_40, %c8_41, %c0_42] : memref<8x32x128xf32, #tpu.memory_space<vmem>>, vector<1x8x128xf32>
    %62 = vector.shape_cast %61 : vector<1x8x128xf32> to vector<8x128xf32>
    %c2_43 = arith.constant 2 : index
    %c8_44 = arith.constant 8 : index
    %c0_45 = arith.constant 0 : index
    %63 = vector.load %arg1[%c2_43, %c8_44, %c0_45] : memref<8x32x128xf32, #tpu.memory_space<vmem>>, vector<1x8x128xf32>
    %64 = vector.shape_cast %63 : vector<1x8x128xf32> to vector<8x128xf32>
    %65 = arith.subf %62, %64 : vector<8x128xf32>
    %66 = arith.mulf %65, %65 : vector<8x128xf32>
    %cst_46 = arith.constant dense<0.000000e+00> : vector<128xf32>
    %67 = vector.multi_reduction <add>, %66, %cst_46 [0] : vector<8x128xf32> to vector<128xf32>
    %68 = vector.shape_cast %67 : vector<128xf32> to vector<1x128xf32>
    %69 = arith.addf %60, %68 : vector<1x128xf32>
    %c0_47 = arith.constant 0 : index
    %c16_48 = arith.constant 16 : index
    %c0_49 = arith.constant 0 : index
    %70 = vector.load %arg1[%c0_47, %c16_48, %c0_49] : memref<8x32x128xf32, #tpu.memory_space<vmem>>, vector<1x8x128xf32>
    %71 = vector.shape_cast %70 : vector<1x8x128xf32> to vector<8x128xf32>
    %c2_50 = arith.constant 2 : index
    %c16_51 = arith.constant 16 : index
    %c0_52 = arith.constant 0 : index
    %72 = vector.load %arg1[%c2_50, %c16_51, %c0_52] : memref<8x32x128xf32, #tpu.memory_space<vmem>>, vector<1x8x128xf32>
    %73 = vector.shape_cast %72 : vector<1x8x128xf32> to vector<8x128xf32>
    %74 = arith.subf %71, %73 : vector<8x128xf32>
    %75 = arith.mulf %74, %74 : vector<8x128xf32>
    %cst_53 = arith.constant dense<0.000000e+00> : vector<128xf32>
    %76 = vector.multi_reduction <add>, %75, %cst_53 [0] : vector<8x128xf32> to vector<128xf32>
    %77 = vector.shape_cast %76 : vector<128xf32> to vector<1x128xf32>
    %78 = arith.addf %69, %77 : vector<1x128xf32>
    %c0_54 = arith.constant 0 : index
    %c24_55 = arith.constant 24 : index
    %c0_56 = arith.constant 0 : index
    %79 = vector.load %arg1[%c0_54, %c24_55, %c0_56] : memref<8x32x128xf32, #tpu.memory_space<vmem>>, vector<1x8x128xf32>
    %80 = vector.shape_cast %79 : vector<1x8x128xf32> to vector<8x128xf32>
    %c2_57 = arith.constant 2 : index
    %c24_58 = arith.constant 24 : index
    %c0_59 = arith.constant 0 : index
    %81 = vector.load %arg1[%c2_57, %c24_58, %c0_59] : memref<8x32x128xf32, #tpu.memory_space<vmem>>, vector<1x8x128xf32>
    %82 = vector.shape_cast %81 : vector<1x8x128xf32> to vector<8x128xf32>
    %83 = arith.subf %80, %82 : vector<8x128xf32>
    %84 = arith.mulf %83, %83 : vector<8x128xf32>
    %cst_60 = arith.constant dense<0.000000e+00> : vector<128xf32>
    %85 = vector.multi_reduction <add>, %84, %cst_60 [0] : vector<8x128xf32> to vector<128xf32>
    %86 = vector.shape_cast %85 : vector<128xf32> to vector<1x128xf32>
    %87 = arith.addf %78, %86 : vector<1x128xf32>
    %88 = math.sqrt %87 : vector<1x128xf32>
    %cst_61 = arith.constant -1.000000e+00 : f32
    %89 = vector.broadcast %cst_61 : f32 to vector<1x128xf32>
    %90 = arith.mulf %88, %89 : vector<1x128xf32>
    %91 = math.exp %90 : vector<1x128xf32>
    %c1_62 = arith.constant 1 : index
    %c0_63 = arith.constant 0 : index
    %92 = vector.load %arg3[%c1_62, %c0_63] : memref<7x128xf32, #tpu.memory_space<vmem>>, vector<1x128xf32>
    %93 = arith.addf %92, %91 : vector<1x128xf32>
    %c1_64 = arith.constant 1 : index
    %c0_65 = arith.constant 0 : index
    %94 = vector.load %arg3[%c1_64, %c0_65] : memref<7x128xf32, #tpu.memory_space<vmem>>, vector<1x128xf32>
    tpu.vector_store %arg3[%c1_64, %c0_65], %93 {strides = array<i32>} : memref<7x128xf32, #tpu.memory_space<vmem>>, vector<1x128xf32>,
    %cst_66 = arith.constant 9.99999993E-9 : f32
    %95 = vector.broadcast %cst_66 : f32 to vector<1x128xf32>
    %96 = arith.addf %91, %95 : vector<1x128xf32>
    %97 = math.log %96 : vector<1x128xf32>
    %98 = arith.addf %50, %97 : vector<1x128xf32>
    %cst_67 = arith.constant 0.000000e+00 : f32
    %99 = vector.broadcast %cst_67 : f32 to vector<1x128xf32>
    %c0_68 = arith.constant 0 : index
    %c0_69 = arith.constant 0 : index
    %c0_70 = arith.constant 0 : index
    %100 = vector.load %arg1[%c0_68, %c0_69, %c0_70] : memref<8x32x128xf32, #tpu.memory_space<vmem>>, vector<1x8x128xf32>
    %101 = vector.shape_cast %100 : vector<1x8x128xf32> to vector<8x128xf32>
    %c3 = arith.constant 3 : index
    %c0_71 = arith.constant 0 : index
    %c0_72 = arith.constant 0 : index
    %102 = vector.load %arg1[%c3, %c0_71, %c0_72] : memref<8x32x128xf32, #tpu.memory_space<vmem>>, vector<1x8x128xf32>
    %103 = vector.shape_cast %102 : vector<1x8x128xf32> to vector<8x128xf32>
    %104 = arith.subf %101, %103 : vector<8x128xf32>
    %105 = arith.mulf %104, %104 : vector<8x128xf32>
    %cst_73 = arith.constant dense<0.000000e+00> : vector<128xf32>
    %106 = vector.multi_reduction <add>, %105, %cst_73 [0] : vector<8x128xf32> to vector<128xf32>
    %107 = vector.shape_cast %106 : vector<128xf32> to vector<1x128xf32>
    %108 = arith.addf %99, %107 : vector<1x128xf32>
    %c0_74 = arith.constant 0 : index
    %c8_75 = arith.constant 8 : index
    %c0_76 = arith.constant 0 : index
    %109 = vector.load %arg1[%c0_74, %c8_75, %c0_76] : memref<8x32x128xf32, #tpu.memory_space<vmem>>, vector<1x8x128xf32>
    %110 = vector.shape_cast %109 : vector<1x8x128xf32> to vector<8x128xf32>
    %c3_77 = arith.constant 3 : index
    %c8_78 = arith.constant 8 : index
    %c0_79 = arith.constant 0 : index
    %111 = vector.load %arg1[%c3_77, %c8_78, %c0_79] : memref<8x32x128xf32, #tpu.memory_space<vmem>>, vector<1x8x128xf32>
    %112 = vector.shape_cast %111 : vector<1x8x128xf32> to vector<8x128xf32>
    %113 = arith.subf %110, %112 : vector<8x128xf32>
    %114 = arith.mulf %113, %113 : vector<8x128xf32>
    %cst_80 = arith.constant dense<0.000000e+00> : vector<128xf32>
    %115 = vector.multi_reduction <add>, %114, %cst_80 [0] : vector<8x128xf32> to vector<128xf32>
    %116 = vector.shape_cast %115 : vector<128xf32> to vector<1x128xf32>
    %117 = arith.addf %108, %116 : vector<1x128xf32>
    %c0_81 = arith.constant 0 : index
    %c16_82 = arith.constant 16 : index
    %c0_83 = arith.constant 0 : index
    %118 = vector.load %arg1[%c0_81, %c16_82, %c0_83] : memref<8x32x128xf32, #tpu.memory_space<vmem>>, vector<1x8x128xf32>
    %119 = vector.shape_cast %118 : vector<1x8x128xf32> to vector<8x128xf32>
    %c3_84 = arith.constant 3 : index
    %c16_85 = arith.constant 16 : index
    %c0_86 = arith.constant 0 : index
    %120 = vector.load %arg1[%c3_84, %c16_85, %c0_86] : memref<8x32x128xf32, #tpu.memory_space<vmem>>, vector<1x8x128xf32>
    %121 = vector.shape_cast %120 : vector<1x8x128xf32> to vector<8x128xf32>
    %122 = arith.subf %119, %121 : vector<8x128xf32>
    %123 = arith.mulf %122, %122 : vector<8x128xf32>
    %cst_87 = arith.constant dense<0.000000e+00> : vector<128xf32>
    %124 = vector.multi_reduction <add>, %123, %cst_87 [0] : vector<8x128xf32> to vector<128xf32>
    %125 = vector.shape_cast %124 : vector<128xf32> to vector<1x128xf32>
    %126 = arith.addf %117, %125 : vector<1x128xf32>
    %c0_88 = arith.constant 0 : index
    %c24_89 = arith.constant 24 : index
    %c0_90 = arith.constant 0 : index
    %127 = vector.load %arg1[%c0_88, %c24_89, %c0_90] : memref<8x32x128xf32, #tpu.memory_space<vmem>>, vector<1x8x128xf32>
    %128 = vector.shape_cast %127 : vector<1x8x128xf32> to vector<8x128xf32>
    %c3_91 = arith.constant 3 : index
    %c24_92 = arith.constant 24 : index
    %c0_93 = arith.constant 0 : index
    %129 = vector.load %arg1[%c3_91, %c24_92, %c0_93] : memref<8x32x128xf32, #tpu.memory_space<vmem>>, vector<1x8x128xf32>
    %130 = vector.shape_cast %129 : vector<1x8x128xf32> to vector<8x128xf32>
    %131 = arith.subf %128, %130 : vector<8x128xf32>
    %132 = arith.mulf %131, %131 : vector<8x128xf32>
    %cst_94 = arith.constant dense<0.000000e+00> : vector<128xf32>
    %133 = vector.multi_reduction <add>, %132, %cst_94 [0] : vector<8x128xf32> to vector<128xf32>
    %134 = vector.shape_cast %133 : vector<128xf32> to vector<1x128xf32>
    %135 = arith.addf %126, %134 : vector<1x128xf32>
    %136 = math.sqrt %135 : vector<1x128xf32>
    %cst_95 = arith.constant -1.000000e+00 : f32
    %137 = vector.broadcast %cst_95 : f32 to vector<1x128xf32>
    %138 = arith.mulf %136, %137 : vector<1x128xf32>
    %139 = math.exp %138 : vector<1x128xf32>
    %c2_96 = arith.constant 2 : index
    %c0_97 = arith.constant 0 : index
    %140 = vector.load %arg3[%c2_96, %c0_97] : memref<7x128xf32, #tpu.memory_space<vmem>>, vector<1x128xf32>
    %141 = arith.addf %140, %139 : vector<1x128xf32>
    %c2_98 = arith.constant 2 : index
    %c0_99 = arith.constant 0 : index
    %142 = vector.load %arg3[%c2_98, %c0_99] : memref<7x128xf32, #tpu.memory_space<vmem>>, vector<1x128xf32>
    tpu.vector_store %arg3[%c2_98, %c0_99], %141 {strides = array<i32>} : memref<7x128xf32, #tpu.memory_space<vmem>>, vector<1x128xf32>,
    %cst_100 = arith.constant 9.99999993E-9 : f32
    %143 = vector.broadcast %cst_100 : f32 to vector<1x128xf32>
    %144 = arith.addf %139, %143 : vector<1x128xf32>
    %145 = math.log %144 : vector<1x128xf32>
    %146 = arith.addf %98, %145 : vector<1x128xf32>
    %cst_101 = arith.constant 0.000000e+00 : f32
    %147 = vector.broadcast %cst_101 : f32 to vector<1x128xf32>
    %c0_102 = arith.constant 0 : index
    %c0_103 = arith.constant 0 : index
    %c0_104 = arith.constant 0 : index
    %148 = vector.load %arg1[%c0_102, %c0_103, %c0_104] : memref<8x32x128xf32, #tpu.memory_space<vmem>>, vector<1x8x128xf32>
    %149 = vector.shape_cast %148 : vector<1x8x128xf32> to vector<8x128xf32>
    %c4 = arith.constant 4 : index
    %c0_105 = arith.constant 0 : index
    %c0_106 = arith.constant 0 : index
    %150 = vector.load %arg1[%c4, %c0_105, %c0_106] : memref<8x32x128xf32, #tpu.memory_space<vmem>>, vector<1x8x128xf32>
    %151 = vector.shape_cast %150 : vector<1x8x128xf32> to vector<8x128xf32>
    %152 = arith.subf %149, %151 : vector<8x128xf32>
    %153 = arith.mulf %152, %152 : vector<8x128xf32>
    %cst_107 = arith.constant dense<0.000000e+00> : vector<128xf32>
    %154 = vector.multi_reduction <add>, %153, %cst_107 [0] : vector<8x128xf32> to vector<128xf32>
    %155 = vector.shape_cast %154 : vector<128xf32> to vector<1x128xf32>
    %156 = arith.addf %147, %155 : vector<1x128xf32>
    %c0_108 = arith.constant 0 : index
    %c8_109 = arith.constant 8 : index
    %c0_110 = arith.constant 0 : index
    %157 = vector.load %arg1[%c0_108, %c8_109, %c0_110] : memref<8x32x128xf32, #tpu.memory_space<vmem>>, vector<1x8x128xf32>
    %158 = vector.shape_cast %157 : vector<1x8x128xf32> to vector<8x128xf32>
    %c4_111 = arith.constant 4 : index
    %c8_112 = arith.constant 8 : index
    %c0_113 = arith.constant 0 : index
    %159 = vector.load %arg1[%c4_111, %c8_112, %c0_113] : memref<8x32x128xf32, #tpu.memory_space<vmem>>, vector<1x8x128xf32>
    %160 = vector.shape_cast %159 : vector<1x8x128xf32> to vector<8x128xf32>
    %161 = arith.subf %158, %160 : vector<8x128xf32>
    %162 = arith.mulf %161, %161 : vector<8x128xf32>
    %cst_114 = arith.constant dense<0.000000e+00> : vector<128xf32>
    %163 = vector.multi_reduction <add>, %162, %cst_114 [0] : vector<8x128xf32> to vector<128xf32>
    %164 = vector.shape_cast %163 : vector<128xf32> to vector<1x128xf32>
    %165 = arith.addf %156, %164 : vector<1x128xf32>
    %c0_115 = arith.constant 0 : index
    %c16_116 = arith.constant 16 : index
    %c0_117 = arith.constant 0 : index
    %166 = vector.load %arg1[%c0_115, %c16_116, %c0_117] : memref<8x32x128xf32, #tpu.memory_space<vmem>>, vector<1x8x128xf32>
    %167 = vector.shape_cast %166 : vector<1x8x128xf32> to vector<8x128xf32>
    %c4_118 = arith.constant 4 : index
    %c16_119 = arith.constant 16 : index
    %c0_120 = arith.constant 0 : index
    %168 = vector.load %arg1[%c4_118, %c16_119, %c0_120] : memref<8x32x128xf32, #tpu.memory_space<vmem>>, vector<1x8x128xf32>
    %169 = vector.shape_cast %168 : vector<1x8x128xf32> to vector<8x128xf32>
    %170 = arith.subf %167, %169 : vector<8x128xf32>
    %171 = arith.mulf %170, %170 : vector<8x128xf32>
    %cst_121 = arith.constant dense<0.000000e+00> : vector<128xf32>
    %172 = vector.multi_reduction <add>, %171, %cst_121 [0] : vector<8x128xf32> to vector<128xf32>
    %173 = vector.shape_cast %172 : vector<128xf32> to vector<1x128xf32>
    %174 = arith.addf %165, %173 : vector<1x128xf32>
    %c0_122 = arith.constant 0 : index
    %c24_123 = arith.constant 24 : index
    %c0_124 = arith.constant 0 : index
    %175 = vector.load %arg1[%c0_122, %c24_123, %c0_124] : memref<8x32x128xf32, #tpu.memory_space<vmem>>, vector<1x8x128xf32>
    %176 = vector.shape_cast %175 : vector<1x8x128xf32> to vector<8x128xf32>
    %c4_125 = arith.constant 4 : index
    %c24_126 = arith.constant 24 : index
    %c0_127 = arith.constant 0 : index
    %177 = vector.load %arg1[%c4_125, %c24_126, %c0_127] : memref<8x32x128xf32, #tpu.memory_space<vmem>>, vector<1x8x128xf32>
    %178 = vector.shape_cast %177 : vector<1x8x128xf32> to vector<8x128xf32>
    %179 = arith.subf %176, %178 : vector<8x128xf32>
    %180 = arith.mulf %179, %179 : vector<8x128xf32>
    %cst_128 = arith.constant dense<0.000000e+00> : vector<128xf32>
    %181 = vector.multi_reduction <add>, %180, %cst_128 [0] : vector<8x128xf32> to vector<128xf32>
    %182 = vector.shape_cast %181 : vector<128xf32> to vector<1x128xf32>
    %183 = arith.addf %174, %182 : vector<1x128xf32>
    %184 = math.sqrt %183 : vector<1x128xf32>
    %cst_129 = arith.constant -1.000000e+00 : f32
    %185 = vector.broadcast %cst_129 : f32 to vector<1x128xf32>
    %186 = arith.mulf %184, %185 : vector<1x128xf32>
    %187 = math.exp %186 : vector<1x128xf32>
    %c3_130 = arith.constant 3 : index
    %c0_131 = arith.constant 0 : index
    %188 = vector.load %arg3[%c3_130, %c0_131] : memref<7x128xf32, #tpu.memory_space<vmem>>, vector<1x128xf32>
    %189 = arith.addf %188, %187 : vector<1x128xf32>
    %c3_132 = arith.constant 3 : index
    %c0_133 = arith.constant 0 : index
    %190 = vector.load %arg3[%c3_132, %c0_133] : memref<7x128xf32, #tpu.memory_space<vmem>>, vector<1x128xf32>
    tpu.vector_store %arg3[%c3_132, %c0_133], %189 {strides = array<i32>} : memref<7x128xf32, #tpu.memory_space<vmem>>, vector<1x128xf32>,
    %cst_134 = arith.constant 9.99999993E-9 : f32
    %191 = vector.broadcast %cst_134 : f32 to vector<1x128xf32>
    %192 = arith.addf %187, %191 : vector<1x128xf32>
    %193 = math.log %192 : vector<1x128xf32>
    %194 = arith.addf %146, %193 : vector<1x128xf32>
    %cst_135 = arith.constant 0.000000e+00 : f32
    %195 = vector.broadcast %cst_135 : f32 to vector<1x128xf32>
    %c0_136 = arith.constant 0 : index
    %c0_137 = arith.constant 0 : index
    %c0_138 = arith.constant 0 : index
    %196 = vector.load %arg1[%c0_136, %c0_137, %c0_138] : memref<8x32x128xf32, #tpu.memory_space<vmem>>, vector<1x8x128xf32>
    %197 = vector.shape_cast %196 : vector<1x8x128xf32> to vector<8x128xf32>
    %c5 = arith.constant 5 : index
    %c0_139 = arith.constant 0 : index
    %c0_140 = arith.constant 0 : index
    %198 = vector.load %arg1[%c5, %c0_139, %c0_140] : memref<8x32x128xf32, #tpu.memory_space<vmem>>, vector<1x8x128xf32>
    %199 = vector.shape_cast %198 : vector<1x8x128xf32> to vector<8x128xf32>
    %200 = arith.subf %197, %199 : vector<8x128xf32>
    %201 = arith.mulf %200, %200 : vector<8x128xf32>
    %cst_141 = arith.constant dense<0.000000e+00> : vector<128xf32>
    %202 = vector.multi_reduction <add>, %201, %cst_141 [0] : vector<8x128xf32> to vector<128xf32>
    %203 = vector.shape_cast %202 : vector<128xf32> to vector<1x128xf32>
    %204 = arith.addf %195, %203 : vector<1x128xf32>
    %c0_142 = arith.constant 0 : index
    %c8_143 = arith.constant 8 : index
    %c0_144 = arith.constant 0 : index
    %205 = vector.load %arg1[%c0_142, %c8_143, %c0_144] : memref<8x32x128xf32, #tpu.memory_space<vmem>>, vector<1x8x128xf32>
    %206 = vector.shape_cast %205 : vector<1x8x128xf32> to vector<8x128xf32>
    %c5_145 = arith.constant 5 : index
    %c8_146 = arith.constant 8 : index
    %c0_147 = arith.constant 0 : index
    %207 = vector.load %arg1[%c5_145, %c8_146, %c0_147] : memref<8x32x128xf32, #tpu.memory_space<vmem>>, vector<1x8x128xf32>
    %208 = vector.shape_cast %207 : vector<1x8x128xf32> to vector<8x128xf32>
    %209 = arith.subf %206, %208 : vector<8x128xf32>
    %210 = arith.mulf %209, %209 : vector<8x128xf32>
    %cst_148 = arith.constant dense<0.000000e+00> : vector<128xf32>
    %211 = vector.multi_reduction <add>, %210, %cst_148 [0] : vector<8x128xf32> to vector<128xf32>
    %212 = vector.shape_cast %211 : vector<128xf32> to vector<1x128xf32>
    %213 = arith.addf %204, %212 : vector<1x128xf32>
    %c0_149 = arith.constant 0 : index
    %c16_150 = arith.constant 16 : index
    %c0_151 = arith.constant 0 : index
    %214 = vector.load %arg1[%c0_149, %c16_150, %c0_151] : memref<8x32x128xf32, #tpu.memory_space<vmem>>, vector<1x8x128xf32>
    %215 = vector.shape_cast %214 : vector<1x8x128xf32> to vector<8x128xf32>
    %c5_152 = arith.constant 5 : index
    %c16_153 = arith.constant 16 : index
    %c0_154 = arith.constant 0 : index
    %216 = vector.load %arg1[%c5_152, %c16_153, %c0_154] : memref<8x32x128xf32, #tpu.memory_space<vmem>>, vector<1x8x128xf32>
    %217 = vector.shape_cast %216 : vector<1x8x128xf32> to vector<8x128xf32>
    %218 = arith.subf %215, %217 : vector<8x128xf32>
    %219 = arith.mulf %218, %218 : vector<8x128xf32>
    %cst_155 = arith.constant dense<0.000000e+00> : vector<128xf32>
    %220 = vector.multi_reduction <add>, %219, %cst_155 [0] : vector<8x128xf32> to vector<128xf32>
    %221 = vector.shape_cast %220 : vector<128xf32> to vector<1x128xf32>
    %222 = arith.addf %213, %221 : vector<1x128xf32>
    %c0_156 = arith.constant 0 : index
    %c24_157 = arith.constant 24 : index
    %c0_158 = arith.constant 0 : index
    %223 = vector.load %arg1[%c0_156, %c24_157, %c0_158] : memref<8x32x128xf32, #tpu.memory_space<vmem>>, vector<1x8x128xf32>
    %224 = vector.shape_cast %223 : vector<1x8x128xf32> to vector<8x128xf32>
    %c5_159 = arith.constant 5 : index
    %c24_160 = arith.constant 24 : index
    %c0_161 = arith.constant 0 : index
    %225 = vector.load %arg1[%c5_159, %c24_160, %c0_161] : memref<8x32x128xf32, #tpu.memory_space<vmem>>, vector<1x8x128xf32>
    %226 = vector.shape_cast %225 : vector<1x8x128xf32> to vector<8x128xf32>
    %227 = arith.subf %224, %226 : vector<8x128xf32>
    %228 = arith.mulf %227, %227 : vector<8x128xf32>
    %cst_162 = arith.constant dense<0.000000e+00> : vector<128xf32>
    %229 = vector.multi_reduction <add>, %228, %cst_162 [0] : vector<8x128xf32> to vector<128xf32>
    %230 = vector.shape_cast %229 : vector<128xf32> to vector<1x128xf32>
    %231 = arith.addf %222, %230 : vector<1x128xf32>
    %232 = math.sqrt %231 : vector<1x128xf32>
    %cst_163 = arith.constant -1.000000e+00 : f32
    %233 = vector.broadcast %cst_163 : f32 to vector<1x128xf32>
    %234 = arith.mulf %232, %233 : vector<1x128xf32>
    %235 = math.exp %234 : vector<1x128xf32>
    %c4_164 = arith.constant 4 : index
    %c0_165 = arith.constant 0 : index
    %236 = vector.load %arg3[%c4_164, %c0_165] : memref<7x128xf32, #tpu.memory_space<vmem>>, vector<1x128xf32>
    %237 = arith.addf %236, %235 : vector<1x128xf32>
    %c4_166 = arith.constant 4 : index
    %c0_167 = arith.constant 0 : index
    %238 = vector.load %arg3[%c4_166, %c0_167] : memref<7x128xf32, #tpu.memory_space<vmem>>, vector<1x128xf32>
    tpu.vector_store %arg3[%c4_166, %c0_167], %237 {strides = array<i32>} : memref<7x128xf32, #tpu.memory_space<vmem>>, vector<1x128xf32>,
    %cst_168 = arith.constant 9.99999993E-9 : f32
    %239 = vector.broadcast %cst_168 : f32 to vector<1x128xf32>
    %240 = arith.addf %235, %239 : vector<1x128xf32>
    %241 = math.log %240 : vector<1x128xf32>
    %242 = arith.addf %194, %241 : vector<1x128xf32>
    %cst_169 = arith.constant 0.000000e+00 : f32
    %243 = vector.broadcast %cst_169 : f32 to vector<1x128xf32>
    %c0_170 = arith.constant 0 : index
    %c0_171 = arith.constant 0 : index
    %c0_172 = arith.constant 0 : index
    %244 = vector.load %arg1[%c0_170, %c0_171, %c0_172] : memref<8x32x128xf32, #tpu.memory_space<vmem>>, vector<1x8x128xf32>
    %245 = vector.shape_cast %244 : vector<1x8x128xf32> to vector<8x128xf32>
    %c6 = arith.constant 6 : index
    %c0_173 = arith.constant 0 : index
    %c0_174 = arith.constant 0 : index
    %246 = vector.load %arg1[%c6, %c0_173, %c0_174] : memref<8x32x128xf32, #tpu.memory_space<vmem>>, vector<1x8x128xf32>
    %247 = vector.shape_cast %246 : vector<1x8x128xf32> to vector<8x128xf32>
    %248 = arith.subf %245, %247 : vector<8x128xf32>
    %249 = arith.mulf %248, %248 : vector<8x128xf32>
    %cst_175 = arith.constant dense<0.000000e+00> : vector<128xf32>
    %250 = vector.multi_reduction <add>, %249, %cst_175 [0] : vector<8x128xf32> to vector<128xf32>
    %251 = vector.shape_cast %250 : vector<128xf32> to vector<1x128xf32>
    %252 = arith.addf %243, %251 : vector<1x128xf32>
    %c0_176 = arith.constant 0 : index
    %c8_177 = arith.constant 8 : index
    %c0_178 = arith.constant 0 : index
    %253 = vector.load %arg1[%c0_176, %c8_177, %c0_178] : memref<8x32x128xf32, #tpu.memory_space<vmem>>, vector<1x8x128xf32>
    %254 = vector.shape_cast %253 : vector<1x8x128xf32> to vector<8x128xf32>
    %c6_179 = arith.constant 6 : index
    %c8_180 = arith.constant 8 : index
    %c0_181 = arith.constant 0 : index
    %255 = vector.load %arg1[%c6_179, %c8_180, %c0_181] : memref<8x32x128xf32, #tpu.memory_space<vmem>>, vector<1x8x128xf32>
    %256 = vector.shape_cast %255 : vector<1x8x128xf32> to vector<8x128xf32>
    %257 = arith.subf %254, %256 : vector<8x128xf32>
    %258 = arith.mulf %257, %257 : vector<8x128xf32>
    %cst_182 = arith.constant dense<0.000000e+00> : vector<128xf32>
    %259 = vector.multi_reduction <add>, %258, %cst_182 [0] : vector<8x128xf32> to vector<128xf32>
    %260 = vector.shape_cast %259 : vector<128xf32> to vector<1x128xf32>
    %261 = arith.addf %252, %260 : vector<1x128xf32>
    %c0_183 = arith.constant 0 : index
    %c16_184 = arith.constant 16 : index
    %c0_185 = arith.constant 0 : index
    %262 = vector.load %arg1[%c0_183, %c16_184, %c0_185] : memref<8x32x128xf32, #tpu.memory_space<vmem>>, vector<1x8x128xf32>
    %263 = vector.shape_cast %262 : vector<1x8x128xf32> to vector<8x128xf32>
    %c6_186 = arith.constant 6 : index
    %c16_187 = arith.constant 16 : index
    %c0_188 = arith.constant 0 : index
    %264 = vector.load %arg1[%c6_186, %c16_187, %c0_188] : memref<8x32x128xf32, #tpu.memory_space<vmem>>, vector<1x8x128xf32>
    %265 = vector.shape_cast %264 : vector<1x8x128xf32> to vector<8x128xf32>
    %266 = arith.subf %263, %265 : vector<8x128xf32>
    %267 = arith.mulf %266, %266 : vector<8x128xf32>
    %cst_189 = arith.constant dense<0.000000e+00> : vector<128xf32>
    %268 = vector.multi_reduction <add>, %267, %cst_189 [0] : vector<8x128xf32> to vector<128xf32>
    %269 = vector.shape_cast %268 : vector<128xf32> to vector<1x128xf32>
    %270 = arith.addf %261, %269 : vector<1x128xf32>
    %c0_190 = arith.constant 0 : index
    %c24_191 = arith.constant 24 : index
    %c0_192 = arith.constant 0 : index
    %271 = vector.load %arg1[%c0_190, %c24_191, %c0_192] : memref<8x32x128xf32, #tpu.memory_space<vmem>>, vector<1x8x128xf32>
    %272 = vector.shape_cast %271 : vector<1x8x128xf32> to vector<8x128xf32>
    %c6_193 = arith.constant 6 : index
    %c24_194 = arith.constant 24 : index
    %c0_195 = arith.constant 0 : index
    %273 = vector.load %arg1[%c6_193, %c24_194, %c0_195] : memref<8x32x128xf32, #tpu.memory_space<vmem>>, vector<1x8x128xf32>
    %274 = vector.shape_cast %273 : vector<1x8x128xf32> to vector<8x128xf32>
    %275 = arith.subf %272, %274 : vector<8x128xf32>
    %276 = arith.mulf %275, %275 : vector<8x128xf32>
    %cst_196 = arith.constant dense<0.000000e+00> : vector<128xf32>
    %277 = vector.multi_reduction <add>, %276, %cst_196 [0] : vector<8x128xf32> to vector<128xf32>
    %278 = vector.shape_cast %277 : vector<128xf32> to vector<1x128xf32>
    %279 = arith.addf %270, %278 : vector<1x128xf32>
    %280 = math.sqrt %279 : vector<1x128xf32>
    %cst_197 = arith.constant -1.000000e+00 : f32
    %281 = vector.broadcast %cst_197 : f32 to vector<1x128xf32>
    %282 = arith.mulf %280, %281 : vector<1x128xf32>
    %283 = math.exp %282 : vector<1x128xf32>
    %c5_198 = arith.constant 5 : index
    %c0_199 = arith.constant 0 : index
    %284 = vector.load %arg3[%c5_198, %c0_199] : memref<7x128xf32, #tpu.memory_space<vmem>>, vector<1x128xf32>
    %285 = arith.addf %284, %283 : vector<1x128xf32>
    %c5_200 = arith.constant 5 : index
    %c0_201 = arith.constant 0 : index
    %286 = vector.load %arg3[%c5_200, %c0_201] : memref<7x128xf32, #tpu.memory_space<vmem>>, vector<1x128xf32>
    tpu.vector_store %arg3[%c5_200, %c0_201], %285 {strides = array<i32>} : memref<7x128xf32, #tpu.memory_space<vmem>>, vector<1x128xf32>,
    %cst_202 = arith.constant 9.99999993E-9 : f32
    %287 = vector.broadcast %cst_202 : f32 to vector<1x128xf32>
    %288 = arith.addf %283, %287 : vector<1x128xf32>
    %289 = math.log %288 : vector<1x128xf32>
    %290 = arith.addf %242, %289 : vector<1x128xf32>
    %cst_203 = arith.constant 0.000000e+00 : f32
    %291 = vector.broadcast %cst_203 : f32 to vector<1x128xf32>
    %c0_204 = arith.constant 0 : index
    %c0_205 = arith.constant 0 : index
    %c0_206 = arith.constant 0 : index
    %292 = vector.load %arg1[%c0_204, %c0_205, %c0_206] : memref<8x32x128xf32, #tpu.memory_space<vmem>>, vector<1x8x128xf32>
    %293 = vector.shape_cast %292 : vector<1x8x128xf32> to vector<8x128xf32>
    %c7 = arith.constant 7 : index
    %c0_207 = arith.constant 0 : index
    %c0_208 = arith.constant 0 : index
    %294 = vector.load %arg1[%c7, %c0_207, %c0_208] : memref<8x32x128xf32, #tpu.memory_space<vmem>>, vector<1x8x128xf32>
    %295 = vector.shape_cast %294 : vector<1x8x128xf32> to vector<8x128xf32>
    %296 = arith.subf %293, %295 : vector<8x128xf32>
    %297 = arith.mulf %296, %296 : vector<8x128xf32>
    %cst_209 = arith.constant dense<0.000000e+00> : vector<128xf32>
    %298 = vector.multi_reduction <add>, %297, %cst_209 [0] : vector<8x128xf32> to vector<128xf32>
    %299 = vector.shape_cast %298 : vector<128xf32> to vector<1x128xf32>
    %300 = arith.addf %291, %299 : vector<1x128xf32>
    %c0_210 = arith.constant 0 : index
    %c8_211 = arith.constant 8 : index
    %c0_212 = arith.constant 0 : index
    %301 = vector.load %arg1[%c0_210, %c8_211, %c0_212] : memref<8x32x128xf32, #tpu.memory_space<vmem>>, vector<1x8x128xf32>
    %302 = vector.shape_cast %301 : vector<1x8x128xf32> to vector<8x128xf32>
    %c7_213 = arith.constant 7 : index
    %c8_214 = arith.constant 8 : index
    %c0_215 = arith.constant 0 : index
    %303 = vector.load %arg1[%c7_213, %c8_214, %c0_215] : memref<8x32x128xf32, #tpu.memory_space<vmem>>, vector<1x8x128xf32>
    %304 = vector.shape_cast %303 : vector<1x8x128xf32> to vector<8x128xf32>
    %305 = arith.subf %302, %304 : vector<8x128xf32>
    %306 = arith.mulf %305, %305 : vector<8x128xf32>
    %cst_216 = arith.constant dense<0.000000e+00> : vector<128xf32>
    %307 = vector.multi_reduction <add>, %306, %cst_216 [0] : vector<8x128xf32> to vector<128xf32>
    %308 = vector.shape_cast %307 : vector<128xf32> to vector<1x128xf32>
    %309 = arith.addf %300, %308 : vector<1x128xf32>
    %c0_217 = arith.constant 0 : index
    %c16_218 = arith.constant 16 : index
    %c0_219 = arith.constant 0 : index
    %310 = vector.load %arg1[%c0_217, %c16_218, %c0_219] : memref<8x32x128xf32, #tpu.memory_space<vmem>>, vector<1x8x128xf32>
    %311 = vector.shape_cast %310 : vector<1x8x128xf32> to vector<8x128xf32>
    %c7_220 = arith.constant 7 : index
    %c16_221 = arith.constant 16 : index
    %c0_222 = arith.constant 0 : index
    %312 = vector.load %arg1[%c7_220, %c16_221, %c0_222] : memref<8x32x128xf32, #tpu.memory_space<vmem>>, vector<1x8x128xf32>
    %313 = vector.shape_cast %312 : vector<1x8x128xf32> to vector<8x128xf32>
    %314 = arith.subf %311, %313 : vector<8x128xf32>
    %315 = arith.mulf %314, %314 : vector<8x128xf32>
    %cst_223 = arith.constant dense<0.000000e+00> : vector<128xf32>
    %316 = vector.multi_reduction <add>, %315, %cst_223 [0] : vector<8x128xf32> to vector<128xf32>
    %317 = vector.shape_cast %316 : vector<128xf32> to vector<1x128xf32>
    %318 = arith.addf %309, %317 : vector<1x128xf32>
    %c0_224 = arith.constant 0 : index
    %c24_225 = arith.constant 24 : index
    %c0_226 = arith.constant 0 : index
    %319 = vector.load %arg1[%c0_224, %c24_225, %c0_226] : memref<8x32x128xf32, #tpu.memory_space<vmem>>, vector<1x8x128xf32>
    %320 = vector.shape_cast %319 : vector<1x8x128xf32> to vector<8x128xf32>
    %c7_227 = arith.constant 7 : index
    %c24_228 = arith.constant 24 : index
    %c0_229 = arith.constant 0 : index
    %321 = vector.load %arg1[%c7_227, %c24_228, %c0_229] : memref<8x32x128xf32, #tpu.memory_space<vmem>>, vector<1x8x128xf32>
    %322 = vector.shape_cast %321 : vector<1x8x128xf32> to vector<8x128xf32>
    %323 = arith.subf %320, %322 : vector<8x128xf32>
    %324 = arith.mulf %323, %323 : vector<8x128xf32>
    %cst_230 = arith.constant dense<0.000000e+00> : vector<128xf32>
    %325 = vector.multi_reduction <add>, %324, %cst_230 [0] : vector<8x128xf32> to vector<128xf32>
    %326 = vector.shape_cast %325 : vector<128xf32> to vector<1x128xf32>
    %327 = arith.addf %318, %326 : vector<1x128xf32>
    %328 = math.sqrt %327 : vector<1x128xf32>
    %cst_231 = arith.constant -1.000000e+00 : f32
    %329 = vector.broadcast %cst_231 : f32 to vector<1x128xf32>
    %330 = arith.mulf %328, %329 : vector<1x128xf32>
    %331 = math.exp %330 : vector<1x128xf32>
    %c6_232 = arith.constant 6 : index
    %c0_233 = arith.constant 0 : index
    %332 = vector.load %arg3[%c6_232, %c0_233] : memref<7x128xf32, #tpu.memory_space<vmem>>, vector<1x128xf32>
    %333 = arith.addf %332, %331 : vector<1x128xf32>
    %c6_234 = arith.constant 6 : index
    %c0_235 = arith.constant 0 : index
    %334 = vector.load %arg3[%c6_234, %c0_235] : memref<7x128xf32, #tpu.memory_space<vmem>>, vector<1x128xf32>
    tpu.vector_store %arg3[%c6_234, %c0_235], %333 {strides = array<i32>} : memref<7x128xf32, #tpu.memory_space<vmem>>, vector<1x128xf32>,
    %cst_236 = arith.constant 9.99999993E-9 : f32
    %335 = vector.broadcast %cst_236 : f32 to vector<1x128xf32>
    %336 = arith.addf %331, %335 : vector<1x128xf32>
    %337 = math.log %336 : vector<1x128xf32>
    %338 = arith.addf %290, %337 : vector<1x128xf32>
    %cst_237 = arith.constant 0.000000e+00 : f32
    %339 = vector.broadcast %cst_237 : f32 to vector<1x128xf32>
    %cst_238 = arith.constant 0.000000e+00 : f32
    %340 = vector.broadcast %cst_238 : f32 to vector<1x128xf32>
    %c1_239 = arith.constant 1 : index
    %c0_240 = arith.constant 0 : index
    %c0_241 = arith.constant 0 : index
    %341 = vector.load %arg1[%c1_239, %c0_240, %c0_241] : memref<8x32x128xf32, #tpu.memory_space<vmem>>, vector<1x8x128xf32>
    %342 = vector.shape_cast %341 : vector<1x8x128xf32> to vector<8x128xf32>
    %c2_242 = arith.constant 2 : index
    %c0_243 = arith.constant 0 : index
    %c0_244 = arith.constant 0 : index
    %343 = vector.load %arg1[%c2_242, %c0_243, %c0_244] : memref<8x32x128xf32, #tpu.memory_space<vmem>>, vector<1x8x128xf32>
    %344 = vector.shape_cast %343 : vector<1x8x128xf32> to vector<8x128xf32>
    %345 = arith.subf %342, %344 : vector<8x128xf32>
    %346 = arith.mulf %345, %345 : vector<8x128xf32>
    %cst_245 = arith.constant dense<0.000000e+00> : vector<128xf32>
    %347 = vector.multi_reduction <add>, %346, %cst_245 [0] : vector<8x128xf32> to vector<128xf32>
    %348 = vector.shape_cast %347 : vector<128xf32> to vector<1x128xf32>
    %349 = arith.addf %340, %348 : vector<1x128xf32>
    %c1_246 = arith.constant 1 : index
    %c8_247 = arith.constant 8 : index
    %c0_248 = arith.constant 0 : index
    %350 = vector.load %arg1[%c1_246, %c8_247, %c0_248] : memref<8x32x128xf32, #tpu.memory_space<vmem>>, vector<1x8x128xf32>
    %351 = vector.shape_cast %350 : vector<1x8x128xf32> to vector<8x128xf32>
    %c2_249 = arith.constant 2 : index
    %c8_250 = arith.constant 8 : index
    %c0_251 = arith.constant 0 : index
    %352 = vector.load %arg1[%c2_249, %c8_250, %c0_251] : memref<8x32x128xf32, #tpu.memory_space<vmem>>, vector<1x8x128xf32>
    %353 = vector.shape_cast %352 : vector<1x8x128xf32> to vector<8x128xf32>
    %354 = arith.subf %351, %353 : vector<8x128xf32>
    %355 = arith.mulf %354, %354 : vector<8x128xf32>
    %cst_252 = arith.constant dense<0.000000e+00> : vector<128xf32>
    %356 = vector.multi_reduction <add>, %355, %cst_252 [0] : vector<8x128xf32> to vector<128xf32>
    %357 = vector.shape_cast %356 : vector<128xf32> to vector<1x128xf32>
    %358 = arith.addf %349, %357 : vector<1x128xf32>
    %c1_253 = arith.constant 1 : index
    %c16_254 = arith.constant 16 : index
    %c0_255 = arith.constant 0 : index
    %359 = vector.load %arg1[%c1_253, %c16_254, %c0_255] : memref<8x32x128xf32, #tpu.memory_space<vmem>>, vector<1x8x128xf32>
    %360 = vector.shape_cast %359 : vector<1x8x128xf32> to vector<8x128xf32>
    %c2_256 = arith.constant 2 : index
    %c16_257 = arith.constant 16 : index
    %c0_258 = arith.constant 0 : index
    %361 = vector.load %arg1[%c2_256, %c16_257, %c0_258] : memref<8x32x128xf32, #tpu.memory_space<vmem>>, vector<1x8x128xf32>
    %362 = vector.shape_cast %361 : vector<1x8x128xf32> to vector<8x128xf32>
    %363 = arith.subf %360, %362 : vector<8x128xf32>
    %364 = arith.mulf %363, %363 : vector<8x128xf32>
    %cst_259 = arith.constant dense<0.000000e+00> : vector<128xf32>
    %365 = vector.multi_reduction <add>, %364, %cst_259 [0] : vector<8x128xf32> to vector<128xf32>
    %366 = vector.shape_cast %365 : vector<128xf32> to vector<1x128xf32>
    %367 = arith.addf %358, %366 : vector<1x128xf32>
    %c1_260 = arith.constant 1 : index
    %c24_261 = arith.constant 24 : index
    %c0_262 = arith.constant 0 : index
    %368 = vector.load %arg1[%c1_260, %c24_261, %c0_262] : memref<8x32x128xf32, #tpu.memory_space<vmem>>, vector<1x8x128xf32>
    %369 = vector.shape_cast %368 : vector<1x8x128xf32> to vector<8x128xf32>
    %c2_263 = arith.constant 2 : index
    %c24_264 = arith.constant 24 : index
    %c0_265 = arith.constant 0 : index
    %370 = vector.load %arg1[%c2_263, %c24_264, %c0_265] : memref<8x32x128xf32, #tpu.memory_space<vmem>>, vector<1x8x128xf32>
    %371 = vector.shape_cast %370 : vector<1x8x128xf32> to vector<8x128xf32>
    %372 = arith.subf %369, %371 : vector<8x128xf32>
    %373 = arith.mulf %372, %372 : vector<8x128xf32>
    %cst_266 = arith.constant dense<0.000000e+00> : vector<128xf32>
    %374 = vector.multi_reduction <add>, %373, %cst_266 [0] : vector<8x128xf32> to vector<128xf32>
    %375 = vector.shape_cast %374 : vector<128xf32> to vector<1x128xf32>
    %376 = arith.addf %367, %375 : vector<1x128xf32>
    %377 = math.sqrt %376 : vector<1x128xf32>
    %cst_267 = arith.constant -1.000000e+00 : f32
    %378 = vector.broadcast %cst_267 : f32 to vector<1x128xf32>
    %379 = arith.mulf %377, %378 : vector<1x128xf32>
    %380 = math.exp %379 : vector<1x128xf32>
    %381 = arith.addf %339, %380 : vector<1x128xf32>
    %c1_268 = arith.constant 1 : index
    %c0_269 = arith.constant 0 : index
    %382 = vector.load %arg3[%c1_268, %c0_269] : memref<7x128xf32, #tpu.memory_space<vmem>>, vector<1x128xf32>
    %383 = arith.addf %382, %380 : vector<1x128xf32>
    %c1_270 = arith.constant 1 : index
    %c0_271 = arith.constant 0 : index
    %384 = vector.load %arg3[%c1_270, %c0_271] : memref<7x128xf32, #tpu.memory_space<vmem>>, vector<1x128xf32>
    tpu.vector_store %arg3[%c1_270, %c0_271], %383 {strides = array<i32>} : memref<7x128xf32, #tpu.memory_space<vmem>>, vector<1x128xf32>,
    %cst_272 = arith.constant 0.000000e+00 : f32
    %385 = vector.broadcast %cst_272 : f32 to vector<1x128xf32>
    %c1_273 = arith.constant 1 : index
    %c0_274 = arith.constant 0 : index
    %c0_275 = arith.constant 0 : index
    %386 = vector.load %arg1[%c1_273, %c0_274, %c0_275] : memref<8x32x128xf32, #tpu.memory_space<vmem>>, vector<1x8x128xf32>
    %387 = vector.shape_cast %386 : vector<1x8x128xf32> to vector<8x128xf32>
    %c3_276 = arith.constant 3 : index
    %c0_277 = arith.constant 0 : index
    %c0_278 = arith.constant 0 : index
    %388 = vector.load %arg1[%c3_276, %c0_277, %c0_278] : memref<8x32x128xf32, #tpu.memory_space<vmem>>, vector<1x8x128xf32>
    %389 = vector.shape_cast %388 : vector<1x8x128xf32> to vector<8x128xf32>
    %390 = arith.subf %387, %389 : vector<8x128xf32>
    %391 = arith.mulf %390, %390 : vector<8x128xf32>
    %cst_279 = arith.constant dense<0.000000e+00> : vector<128xf32>
    %392 = vector.multi_reduction <add>, %391, %cst_279 [0] : vector<8x128xf32> to vector<128xf32>
    %393 = vector.shape_cast %392 : vector<128xf32> to vector<1x128xf32>
    %394 = arith.addf %385, %393 : vector<1x128xf32>
    %c1_280 = arith.constant 1 : index
    %c8_281 = arith.constant 8 : index
    %c0_282 = arith.constant 0 : index
    %395 = vector.load %arg1[%c1_280, %c8_281, %c0_282] : memref<8x32x128xf32, #tpu.memory_space<vmem>>, vector<1x8x128xf32>
    %396 = vector.shape_cast %395 : vector<1x8x128xf32> to vector<8x128xf32>
    %c3_283 = arith.constant 3 : index
    %c8_284 = arith.constant 8 : index
    %c0_285 = arith.constant 0 : index
    %397 = vector.load %arg1[%c3_283, %c8_284, %c0_285] : memref<8x32x128xf32, #tpu.memory_space<vmem>>, vector<1x8x128xf32>
    %398 = vector.shape_cast %397 : vector<1x8x128xf32> to vector<8x128xf32>
    %399 = arith.subf %396, %398 : vector<8x128xf32>
    %400 = arith.mulf %399, %399 : vector<8x128xf32>
    %cst_286 = arith.constant dense<0.000000e+00> : vector<128xf32>
    %401 = vector.multi_reduction <add>, %400, %cst_286 [0] : vector<8x128xf32> to vector<128xf32>
    %402 = vector.shape_cast %401 : vector<128xf32> to vector<1x128xf32>
    %403 = arith.addf %394, %402 : vector<1x128xf32>
    %c1_287 = arith.constant 1 : index
    %c16_288 = arith.constant 16 : index
    %c0_289 = arith.constant 0 : index
    %404 = vector.load %arg1[%c1_287, %c16_288, %c0_289] : memref<8x32x128xf32, #tpu.memory_space<vmem>>, vector<1x8x128xf32>
    %405 = vector.shape_cast %404 : vector<1x8x128xf32> to vector<8x128xf32>
    %c3_290 = arith.constant 3 : index
    %c16_291 = arith.constant 16 : index
    %c0_292 = arith.constant 0 : index
    %406 = vector.load %arg1[%c3_290, %c16_291, %c0_292] : memref<8x32x128xf32, #tpu.memory_space<vmem>>, vector<1x8x128xf32>
    %407 = vector.shape_cast %406 : vector<1x8x128xf32> to vector<8x128xf32>
    %408 = arith.subf %405, %407 : vector<8x128xf32>
    %409 = arith.mulf %408, %408 : vector<8x128xf32>
    %cst_293 = arith.constant dense<0.000000e+00> : vector<128xf32>
    %410 = vector.multi_reduction <add>, %409, %cst_293 [0] : vector<8x128xf32> to vector<128xf32>
    %411 = vector.shape_cast %410 : vector<128xf32> to vector<1x128xf32>
    %412 = arith.addf %403, %411 : vector<1x128xf32>
    %c1_294 = arith.constant 1 : index
    %c24_295 = arith.constant 24 : index
    %c0_296 = arith.constant 0 : index
    %413 = vector.load %arg1[%c1_294, %c24_295, %c0_296] : memref<8x32x128xf32, #tpu.memory_space<vmem>>, vector<1x8x128xf32>
    %414 = vector.shape_cast %413 : vector<1x8x128xf32> to vector<8x128xf32>
    %c3_297 = arith.constant 3 : index
    %c24_298 = arith.constant 24 : index
    %c0_299 = arith.constant 0 : index
    %415 = vector.load %arg1[%c3_297, %c24_298, %c0_299] : memref<8x32x128xf32, #tpu.memory_space<vmem>>, vector<1x8x128xf32>
    %416 = vector.shape_cast %415 : vector<1x8x128xf32> to vector<8x128xf32>
    %417 = arith.subf %414, %416 : vector<8x128xf32>
    %418 = arith.mulf %417, %417 : vector<8x128xf32>
    %cst_300 = arith.constant dense<0.000000e+00> : vector<128xf32>
    %419 = vector.multi_reduction <add>, %418, %cst_300 [0] : vector<8x128xf32> to vector<128xf32>
    %420 = vector.shape_cast %419 : vector<128xf32> to vector<1x128xf32>
    %421 = arith.addf %412, %420 : vector<1x128xf32>
    %422 = math.sqrt %421 : vector<1x128xf32>
    %cst_301 = arith.constant -1.000000e+00 : f32
    %423 = vector.broadcast %cst_301 : f32 to vector<1x128xf32>
    %424 = arith.mulf %422, %423 : vector<1x128xf32>
    %425 = math.exp %424 : vector<1x128xf32>
    %426 = arith.addf %381, %425 : vector<1x128xf32>
    %c2_302 = arith.constant 2 : index
    %c0_303 = arith.constant 0 : index
    %427 = vector.load %arg3[%c2_302, %c0_303] : memref<7x128xf32, #tpu.memory_space<vmem>>, vector<1x128xf32>
    %428 = arith.addf %427, %425 : vector<1x128xf32>
    %c2_304 = arith.constant 2 : index
    %c0_305 = arith.constant 0 : index
    %429 = vector.load %arg3[%c2_304, %c0_305] : memref<7x128xf32, #tpu.memory_space<vmem>>, vector<1x128xf32>
    tpu.vector_store %arg3[%c2_304, %c0_305], %428 {strides = array<i32>} : memref<7x128xf32, #tpu.memory_space<vmem>>, vector<1x128xf32>,
    %cst_306 = arith.constant 0.000000e+00 : f32
    %430 = vector.broadcast %cst_306 : f32 to vector<1x128xf32>
    %c1_307 = arith.constant 1 : index
    %c0_308 = arith.constant 0 : index
    %c0_309 = arith.constant 0 : index
    %431 = vector.load %arg1[%c1_307, %c0_308, %c0_309] : memref<8x32x128xf32, #tpu.memory_space<vmem>>, vector<1x8x128xf32>
    %432 = vector.shape_cast %431 : vector<1x8x128xf32> to vector<8x128xf32>
    %c4_310 = arith.constant 4 : index
    %c0_311 = arith.constant 0 : index
    %c0_312 = arith.constant 0 : index
    %433 = vector.load %arg1[%c4_310, %c0_311, %c0_312] : memref<8x32x128xf32, #tpu.memory_space<vmem>>, vector<1x8x128xf32>
    %434 = vector.shape_cast %433 : vector<1x8x128xf32> to vector<8x128xf32>
    %435 = arith.subf %432, %434 : vector<8x128xf32>
    %436 = arith.mulf %435, %435 : vector<8x128xf32>
    %cst_313 = arith.constant dense<0.000000e+00> : vector<128xf32>
    %437 = vector.multi_reduction <add>, %436, %cst_313 [0] : vector<8x128xf32> to vector<128xf32>
    %438 = vector.shape_cast %437 : vector<128xf32> to vector<1x128xf32>
    %439 = arith.addf %430, %438 : vector<1x128xf32>
    %c1_314 = arith.constant 1 : index
    %c8_315 = arith.constant 8 : index
    %c0_316 = arith.constant 0 : index
    %440 = vector.load %arg1[%c1_314, %c8_315, %c0_316] : memref<8x32x128xf32, #tpu.memory_space<vmem>>, vector<1x8x128xf32>
    %441 = vector.shape_cast %440 : vector<1x8x128xf32> to vector<8x128xf32>
    %c4_317 = arith.constant 4 : index
    %c8_318 = arith.constant 8 : index
    %c0_319 = arith.constant 0 : index
    %442 = vector.load %arg1[%c4_317, %c8_318, %c0_319] : memref<8x32x128xf32, #tpu.memory_space<vmem>>, vector<1x8x128xf32>
    %443 = vector.shape_cast %442 : vector<1x8x128xf32> to vector<8x128xf32>
    %444 = arith.subf %441, %443 : vector<8x128xf32>
    %445 = arith.mulf %444, %444 : vector<8x128xf32>
    %cst_320 = arith.constant dense<0.000000e+00> : vector<128xf32>
    %446 = vector.multi_reduction <add>, %445, %cst_320 [0] : vector<8x128xf32> to vector<128xf32>
    %447 = vector.shape_cast %446 : vector<128xf32> to vector<1x128xf32>
    %448 = arith.addf %439, %447 : vector<1x128xf32>
    %c1_321 = arith.constant 1 : index
    %c16_322 = arith.constant 16 : index
    %c0_323 = arith.constant 0 : index
    %449 = vector.load %arg1[%c1_321, %c16_322, %c0_323] : memref<8x32x128xf32, #tpu.memory_space<vmem>>, vector<1x8x128xf32>
    %450 = vector.shape_cast %449 : vector<1x8x128xf32> to vector<8x128xf32>
    %c4_324 = arith.constant 4 : index
    %c16_325 = arith.constant 16 : index
    %c0_326 = arith.constant 0 : index
    %451 = vector.load %arg1[%c4_324, %c16_325, %c0_326] : memref<8x32x128xf32, #tpu.memory_space<vmem>>, vector<1x8x128xf32>
    %452 = vector.shape_cast %451 : vector<1x8x128xf32> to vector<8x128xf32>
    %453 = arith.subf %450, %452 : vector<8x128xf32>
    %454 = arith.mulf %453, %453 : vector<8x128xf32>
    %cst_327 = arith.constant dense<0.000000e+00> : vector<128xf32>
    %455 = vector.multi_reduction <add>, %454, %cst_327 [0] : vector<8x128xf32> to vector<128xf32>
    %456 = vector.shape_cast %455 : vector<128xf32> to vector<1x128xf32>
    %457 = arith.addf %448, %456 : vector<1x128xf32>
    %c1_328 = arith.constant 1 : index
    %c24_329 = arith.constant 24 : index
    %c0_330 = arith.constant 0 : index
    %458 = vector.load %arg1[%c1_328, %c24_329, %c0_330] : memref<8x32x128xf32, #tpu.memory_space<vmem>>, vector<1x8x128xf32>
    %459 = vector.shape_cast %458 : vector<1x8x128xf32> to vector<8x128xf32>
    %c4_331 = arith.constant 4 : index
    %c24_332 = arith.constant 24 : index
    %c0_333 = arith.constant 0 : index
    %460 = vector.load %arg1[%c4_331, %c24_332, %c0_333] : memref<8x32x128xf32, #tpu.memory_space<vmem>>, vector<1x8x128xf32>
    %461 = vector.shape_cast %460 : vector<1x8x128xf32> to vector<8x128xf32>
    %462 = arith.subf %459, %461 : vector<8x128xf32>
    %463 = arith.mulf %462, %462 : vector<8x128xf32>
    %cst_334 = arith.constant dense<0.000000e+00> : vector<128xf32>
    %464 = vector.multi_reduction <add>, %463, %cst_334 [0] : vector<8x128xf32> to vector<128xf32>
    %465 = vector.shape_cast %464 : vector<128xf32> to vector<1x128xf32>
    %466 = arith.addf %457, %465 : vector<1x128xf32>
    %467 = math.sqrt %466 : vector<1x128xf32>
    %cst_335 = arith.constant -1.000000e+00 : f32
    %468 = vector.broadcast %cst_335 : f32 to vector<1x128xf32>
    %469 = arith.mulf %467, %468 : vector<1x128xf32>
    %470 = math.exp %469 : vector<1x128xf32>
    %471 = arith.addf %426, %470 : vector<1x128xf32>
    %c3_336 = arith.constant 3 : index
    %c0_337 = arith.constant 0 : index
    %472 = vector.load %arg3[%c3_336, %c0_337] : memref<7x128xf32, #tpu.memory_space<vmem>>, vector<1x128xf32>
    %473 = arith.addf %472, %470 : vector<1x128xf32>
    %c3_338 = arith.constant 3 : index
    %c0_339 = arith.constant 0 : index
    %474 = vector.load %arg3[%c3_338, %c0_339] : memref<7x128xf32, #tpu.memory_space<vmem>>, vector<1x128xf32>
    tpu.vector_store %arg3[%c3_338, %c0_339], %473 {strides = array<i32>} : memref<7x128xf32, #tpu.memory_space<vmem>>, vector<1x128xf32>,
    %cst_340 = arith.constant 0.000000e+00 : f32
    %475 = vector.broadcast %cst_340 : f32 to vector<1x128xf32>
    %c1_341 = arith.constant 1 : index
    %c0_342 = arith.constant 0 : index
    %c0_343 = arith.constant 0 : index
    %476 = vector.load %arg1[%c1_341, %c0_342, %c0_343] : memref<8x32x128xf32, #tpu.memory_space<vmem>>, vector<1x8x128xf32>
    %477 = vector.shape_cast %476 : vector<1x8x128xf32> to vector<8x128xf32>
    %c5_344 = arith.constant 5 : index
    %c0_345 = arith.constant 0 : index
    %c0_346 = arith.constant 0 : index
    %478 = vector.load %arg1[%c5_344, %c0_345, %c0_346] : memref<8x32x128xf32, #tpu.memory_space<vmem>>, vector<1x8x128xf32>
    %479 = vector.shape_cast %478 : vector<1x8x128xf32> to vector<8x128xf32>
    %480 = arith.subf %477, %479 : vector<8x128xf32>
    %481 = arith.mulf %480, %480 : vector<8x128xf32>
    %cst_347 = arith.constant dense<0.000000e+00> : vector<128xf32>
    %482 = vector.multi_reduction <add>, %481, %cst_347 [0] : vector<8x128xf32> to vector<128xf32>
    %483 = vector.shape_cast %482 : vector<128xf32> to vector<1x128xf32>
    %484 = arith.addf %475, %483 : vector<1x128xf32>
    %c1_348 = arith.constant 1 : index
    %c8_349 = arith.constant 8 : index
    %c0_350 = arith.constant 0 : index
    %485 = vector.load %arg1[%c1_348, %c8_349, %c0_350] : memref<8x32x128xf32, #tpu.memory_space<vmem>>, vector<1x8x128xf32>
    %486 = vector.shape_cast %485 : vector<1x8x128xf32> to vector<8x128xf32>
    %c5_351 = arith.constant 5 : index
    %c8_352 = arith.constant 8 : index
    %c0_353 = arith.constant 0 : index
    %487 = vector.load %arg1[%c5_351, %c8_352, %c0_353] : memref<8x32x128xf32, #tpu.memory_space<vmem>>, vector<1x8x128xf32>
    %488 = vector.shape_cast %487 : vector<1x8x128xf32> to vector<8x128xf32>
    %489 = arith.subf %486, %488 : vector<8x128xf32>
    %490 = arith.mulf %489, %489 : vector<8x128xf32>
    %cst_354 = arith.constant dense<0.000000e+00> : vector<128xf32>
    %491 = vector.multi_reduction <add>, %490, %cst_354 [0] : vector<8x128xf32> to vector<128xf32>
    %492 = vector.shape_cast %491 : vector<128xf32> to vector<1x128xf32>
    %493 = arith.addf %484, %492 : vector<1x128xf32>
    %c1_355 = arith.constant 1 : index
    %c16_356 = arith.constant 16 : index
    %c0_357 = arith.constant 0 : index
    %494 = vector.load %arg1[%c1_355, %c16_356, %c0_357] : memref<8x32x128xf32, #tpu.memory_space<vmem>>, vector<1x8x128xf32>
    %495 = vector.shape_cast %494 : vector<1x8x128xf32> to vector<8x128xf32>
    %c5_358 = arith.constant 5 : index
    %c16_359 = arith.constant 16 : index
    %c0_360 = arith.constant 0 : index
    %496 = vector.load %arg1[%c5_358, %c16_359, %c0_360] : memref<8x32x128xf32, #tpu.memory_space<vmem>>, vector<1x8x128xf32>
    %497 = vector.shape_cast %496 : vector<1x8x128xf32> to vector<8x128xf32>
    %498 = arith.subf %495, %497 : vector<8x128xf32>
    %499 = arith.mulf %498, %498 : vector<8x128xf32>
    %cst_361 = arith.constant dense<0.000000e+00> : vector<128xf32>
    %500 = vector.multi_reduction <add>, %499, %cst_361 [0] : vector<8x128xf32> to vector<128xf32>
    %501 = vector.shape_cast %500 : vector<128xf32> to vector<1x128xf32>
    %502 = arith.addf %493, %501 : vector<1x128xf32>
    %c1_362 = arith.constant 1 : index
    %c24_363 = arith.constant 24 : index
    %c0_364 = arith.constant 0 : index
    %503 = vector.load %arg1[%c1_362, %c24_363, %c0_364] : memref<8x32x128xf32, #tpu.memory_space<vmem>>, vector<1x8x128xf32>
    %504 = vector.shape_cast %503 : vector<1x8x128xf32> to vector<8x128xf32>
    %c5_365 = arith.constant 5 : index
    %c24_366 = arith.constant 24 : index
    %c0_367 = arith.constant 0 : index
    %505 = vector.load %arg1[%c5_365, %c24_366, %c0_367] : memref<8x32x128xf32, #tpu.memory_space<vmem>>, vector<1x8x128xf32>
    %506 = vector.shape_cast %505 : vector<1x8x128xf32> to vector<8x128xf32>
    %507 = arith.subf %504, %506 : vector<8x128xf32>
    %508 = arith.mulf %507, %507 : vector<8x128xf32>
    %cst_368 = arith.constant dense<0.000000e+00> : vector<128xf32>
    %509 = vector.multi_reduction <add>, %508, %cst_368 [0] : vector<8x128xf32> to vector<128xf32>
    %510 = vector.shape_cast %509 : vector<128xf32> to vector<1x128xf32>
    %511 = arith.addf %502, %510 : vector<1x128xf32>
    %512 = math.sqrt %511 : vector<1x128xf32>
    %cst_369 = arith.constant -1.000000e+00 : f32
    %513 = vector.broadcast %cst_369 : f32 to vector<1x128xf32>
    %514 = arith.mulf %512, %513 : vector<1x128xf32>
    %515 = math.exp %514 : vector<1x128xf32>
    %516 = arith.addf %471, %515 : vector<1x128xf32>
    %c4_370 = arith.constant 4 : index
    %c0_371 = arith.constant 0 : index
    %517 = vector.load %arg3[%c4_370, %c0_371] : memref<7x128xf32, #tpu.memory_space<vmem>>, vector<1x128xf32>
    %518 = arith.addf %517, %515 : vector<1x128xf32>
    %c4_372 = arith.constant 4 : index
    %c0_373 = arith.constant 0 : index
    %519 = vector.load %arg3[%c4_372, %c0_373] : memref<7x128xf32, #tpu.memory_space<vmem>>, vector<1x128xf32>
    tpu.vector_store %arg3[%c4_372, %c0_373], %518 {strides = array<i32>} : memref<7x128xf32, #tpu.memory_space<vmem>>, vector<1x128xf32>,
    %cst_374 = arith.constant 0.000000e+00 : f32
    %520 = vector.broadcast %cst_374 : f32 to vector<1x128xf32>
    %c1_375 = arith.constant 1 : index
    %c0_376 = arith.constant 0 : index
    %c0_377 = arith.constant 0 : index
    %521 = vector.load %arg1[%c1_375, %c0_376, %c0_377] : memref<8x32x128xf32, #tpu.memory_space<vmem>>, vector<1x8x128xf32>
    %522 = vector.shape_cast %521 : vector<1x8x128xf32> to vector<8x128xf32>
    %c6_378 = arith.constant 6 : index
    %c0_379 = arith.constant 0 : index
    %c0_380 = arith.constant 0 : index
    %523 = vector.load %arg1[%c6_378, %c0_379, %c0_380] : memref<8x32x128xf32, #tpu.memory_space<vmem>>, vector<1x8x128xf32>
    %524 = vector.shape_cast %523 : vector<1x8x128xf32> to vector<8x128xf32>
    %525 = arith.subf %522, %524 : vector<8x128xf32>
    %526 = arith.mulf %525, %525 : vector<8x128xf32>
    %cst_381 = arith.constant dense<0.000000e+00> : vector<128xf32>
    %527 = vector.multi_reduction <add>, %526, %cst_381 [0] : vector<8x128xf32> to vector<128xf32>
    %528 = vector.shape_cast %527 : vector<128xf32> to vector<1x128xf32>
    %529 = arith.addf %520, %528 : vector<1x128xf32>
    %c1_382 = arith.constant 1 : index
    %c8_383 = arith.constant 8 : index
    %c0_384 = arith.constant 0 : index
    %530 = vector.load %arg1[%c1_382, %c8_383, %c0_384] : memref<8x32x128xf32, #tpu.memory_space<vmem>>, vector<1x8x128xf32>
    %531 = vector.shape_cast %530 : vector<1x8x128xf32> to vector<8x128xf32>
    %c6_385 = arith.constant 6 : index
    %c8_386 = arith.constant 8 : index
    %c0_387 = arith.constant 0 : index
    %532 = vector.load %arg1[%c6_385, %c8_386, %c0_387] : memref<8x32x128xf32, #tpu.memory_space<vmem>>, vector<1x8x128xf32>
    %533 = vector.shape_cast %532 : vector<1x8x128xf32> to vector<8x128xf32>
    %534 = arith.subf %531, %533 : vector<8x128xf32>
    %535 = arith.mulf %534, %534 : vector<8x128xf32>
    %cst_388 = arith.constant dense<0.000000e+00> : vector<128xf32>
    %536 = vector.multi_reduction <add>, %535, %cst_388 [0] : vector<8x128xf32> to vector<128xf32>
    %537 = vector.shape_cast %536 : vector<128xf32> to vector<1x128xf32>
    %538 = arith.addf %529, %537 : vector<1x128xf32>
    %c1_389 = arith.constant 1 : index
    %c16_390 = arith.constant 16 : index
    %c0_391 = arith.constant 0 : index
    %539 = vector.load %arg1[%c1_389, %c16_390, %c0_391] : memref<8x32x128xf32, #tpu.memory_space<vmem>>, vector<1x8x128xf32>
    %540 = vector.shape_cast %539 : vector<1x8x128xf32> to vector<8x128xf32>
    %c6_392 = arith.constant 6 : index
    %c16_393 = arith.constant 16 : index
    %c0_394 = arith.constant 0 : index
    %541 = vector.load %arg1[%c6_392, %c16_393, %c0_394] : memref<8x32x128xf32, #tpu.memory_space<vmem>>, vector<1x8x128xf32>
    %542 = vector.shape_cast %541 : vector<1x8x128xf32> to vector<8x128xf32>
    %543 = arith.subf %540, %542 : vector<8x128xf32>
    %544 = arith.mulf %543, %543 : vector<8x128xf32>
    %cst_395 = arith.constant dense<0.000000e+00> : vector<128xf32>
    %545 = vector.multi_reduction <add>, %544, %cst_395 [0] : vector<8x128xf32> to vector<128xf32>
    %546 = vector.shape_cast %545 : vector<128xf32> to vector<1x128xf32>
    %547 = arith.addf %538, %546 : vector<1x128xf32>
    %c1_396 = arith.constant 1 : index
    %c24_397 = arith.constant 24 : index
    %c0_398 = arith.constant 0 : index
    %548 = vector.load %arg1[%c1_396, %c24_397, %c0_398] : memref<8x32x128xf32, #tpu.memory_space<vmem>>, vector<1x8x128xf32>
    %549 = vector.shape_cast %548 : vector<1x8x128xf32> to vector<8x128xf32>
    %c6_399 = arith.constant 6 : index
    %c24_400 = arith.constant 24 : index
    %c0_401 = arith.constant 0 : index
    %550 = vector.load %arg1[%c6_399, %c24_400, %c0_401] : memref<8x32x128xf32, #tpu.memory_space<vmem>>, vector<1x8x128xf32>
    %551 = vector.shape_cast %550 : vector<1x8x128xf32> to vector<8x128xf32>
    %552 = arith.subf %549, %551 : vector<8x128xf32>
    %553 = arith.mulf %552, %552 : vector<8x128xf32>
    %cst_402 = arith.constant dense<0.000000e+00> : vector<128xf32>
    %554 = vector.multi_reduction <add>, %553, %cst_402 [0] : vector<8x128xf32> to vector<128xf32>
    %555 = vector.shape_cast %554 : vector<128xf32> to vector<1x128xf32>
    %556 = arith.addf %547, %555 : vector<1x128xf32>
    %557 = math.sqrt %556 : vector<1x128xf32>
    %cst_403 = arith.constant -1.000000e+00 : f32
    %558 = vector.broadcast %cst_403 : f32 to vector<1x128xf32>
    %559 = arith.mulf %557, %558 : vector<1x128xf32>
    %560 = math.exp %559 : vector<1x128xf32>
    %561 = arith.addf %516, %560 : vector<1x128xf32>
    %c5_404 = arith.constant 5 : index
    %c0_405 = arith.constant 0 : index
    %562 = vector.load %arg3[%c5_404, %c0_405] : memref<7x128xf32, #tpu.memory_space<vmem>>, vector<1x128xf32>
    %563 = arith.addf %562, %560 : vector<1x128xf32>
    %c5_406 = arith.constant 5 : index
    %c0_407 = arith.constant 0 : index
    %564 = vector.load %arg3[%c5_406, %c0_407] : memref<7x128xf32, #tpu.memory_space<vmem>>, vector<1x128xf32>
    tpu.vector_store %arg3[%c5_406, %c0_407], %563 {strides = array<i32>} : memref<7x128xf32, #tpu.memory_space<vmem>>, vector<1x128xf32>,
    %cst_408 = arith.constant 0.000000e+00 : f32
    %565 = vector.broadcast %cst_408 : f32 to vector<1x128xf32>
    %c1_409 = arith.constant 1 : index
    %c0_410 = arith.constant 0 : index
    %c0_411 = arith.constant 0 : index
    %566 = vector.load %arg1[%c1_409, %c0_410, %c0_411] : memref<8x32x128xf32, #tpu.memory_space<vmem>>, vector<1x8x128xf32>
    %567 = vector.shape_cast %566 : vector<1x8x128xf32> to vector<8x128xf32>
    %c7_412 = arith.constant 7 : index
    %c0_413 = arith.constant 0 : index
    %c0_414 = arith.constant 0 : index
    %568 = vector.load %arg1[%c7_412, %c0_413, %c0_414] : memref<8x32x128xf32, #tpu.memory_space<vmem>>, vector<1x8x128xf32>
    %569 = vector.shape_cast %568 : vector<1x8x128xf32> to vector<8x128xf32>
    %570 = arith.subf %567, %569 : vector<8x128xf32>
    %571 = arith.mulf %570, %570 : vector<8x128xf32>
    %cst_415 = arith.constant dense<0.000000e+00> : vector<128xf32>
    %572 = vector.multi_reduction <add>, %571, %cst_415 [0] : vector<8x128xf32> to vector<128xf32>
    %573 = vector.shape_cast %572 : vector<128xf32> to vector<1x128xf32>
    %574 = arith.addf %565, %573 : vector<1x128xf32>
    %c1_416 = arith.constant 1 : index
    %c8_417 = arith.constant 8 : index
    %c0_418 = arith.constant 0 : index
    %575 = vector.load %arg1[%c1_416, %c8_417, %c0_418] : memref<8x32x128xf32, #tpu.memory_space<vmem>>, vector<1x8x128xf32>
    %576 = vector.shape_cast %575 : vector<1x8x128xf32> to vector<8x128xf32>
    %c7_419 = arith.constant 7 : index
    %c8_420 = arith.constant 8 : index
    %c0_421 = arith.constant 0 : index
    %577 = vector.load %arg1[%c7_419, %c8_420, %c0_421] : memref<8x32x128xf32, #tpu.memory_space<vmem>>, vector<1x8x128xf32>
    %578 = vector.shape_cast %577 : vector<1x8x128xf32> to vector<8x128xf32>
    %579 = arith.subf %576, %578 : vector<8x128xf32>
    %580 = arith.mulf %579, %579 : vector<8x128xf32>
    %cst_422 = arith.constant dense<0.000000e+00> : vector<128xf32>
    %581 = vector.multi_reduction <add>, %580, %cst_422 [0] : vector<8x128xf32> to vector<128xf32>
    %582 = vector.shape_cast %581 : vector<128xf32> to vector<1x128xf32>
    %583 = arith.addf %574, %582 : vector<1x128xf32>
    %c1_423 = arith.constant 1 : index
    %c16_424 = arith.constant 16 : index
    %c0_425 = arith.constant 0 : index
    %584 = vector.load %arg1[%c1_423, %c16_424, %c0_425] : memref<8x32x128xf32, #tpu.memory_space<vmem>>, vector<1x8x128xf32>
    %585 = vector.shape_cast %584 : vector<1x8x128xf32> to vector<8x128xf32>
    %c7_426 = arith.constant 7 : index
    %c16_427 = arith.constant 16 : index
    %c0_428 = arith.constant 0 : index
    %586 = vector.load %arg1[%c7_426, %c16_427, %c0_428] : memref<8x32x128xf32, #tpu.memory_space<vmem>>, vector<1x8x128xf32>
    %587 = vector.shape_cast %586 : vector<1x8x128xf32> to vector<8x128xf32>
    %588 = arith.subf %585, %587 : vector<8x128xf32>
    %589 = arith.mulf %588, %588 : vector<8x128xf32>
    %cst_429 = arith.constant dense<0.000000e+00> : vector<128xf32>
    %590 = vector.multi_reduction <add>, %589, %cst_429 [0] : vector<8x128xf32> to vector<128xf32>
    %591 = vector.shape_cast %590 : vector<128xf32> to vector<1x128xf32>
    %592 = arith.addf %583, %591 : vector<1x128xf32>
    %c1_430 = arith.constant 1 : index
    %c24_431 = arith.constant 24 : index
    %c0_432 = arith.constant 0 : index
    %593 = vector.load %arg1[%c1_430, %c24_431, %c0_432] : memref<8x32x128xf32, #tpu.memory_space<vmem>>, vector<1x8x128xf32>
    %594 = vector.shape_cast %593 : vector<1x8x128xf32> to vector<8x128xf32>
    %c7_433 = arith.constant 7 : index
    %c24_434 = arith.constant 24 : index
    %c0_435 = arith.constant 0 : index
    %595 = vector.load %arg1[%c7_433, %c24_434, %c0_435] : memref<8x32x128xf32, #tpu.memory_space<vmem>>, vector<1x8x128xf32>
    %596 = vector.shape_cast %595 : vector<1x8x128xf32> to vector<8x128xf32>
    %597 = arith.subf %594, %596 : vector<8x128xf32>
    %598 = arith.mulf %597, %597 : vector<8x128xf32>
    %cst_436 = arith.constant dense<0.000000e+00> : vector<128xf32>
    %599 = vector.multi_reduction <add>, %598, %cst_436 [0] : vector<8x128xf32> to vector<128xf32>
    %600 = vector.shape_cast %599 : vector<128xf32> to vector<1x128xf32>
    %601 = arith.addf %592, %600 : vector<1x128xf32>
    %602 = math.sqrt %601 : vector<1x128xf32>
    %cst_437 = arith.constant -1.000000e+00 : f32
    %603 = vector.broadcast %cst_437 : f32 to vector<1x128xf32>
    %604 = arith.mulf %602, %603 : vector<1x128xf32>
    %605 = math.exp %604 : vector<1x128xf32>
    %606 = arith.addf %561, %605 : vector<1x128xf32>
    %c6_438 = arith.constant 6 : index
    %c0_439 = arith.constant 0 : index
    %607 = vector.load %arg3[%c6_438, %c0_439] : memref<7x128xf32, #tpu.memory_space<vmem>>, vector<1x128xf32>
    %608 = arith.addf %607, %605 : vector<1x128xf32>
    %c6_440 = arith.constant 6 : index
    %c0_441 = arith.constant 0 : index
    %609 = vector.load %arg3[%c6_440, %c0_441] : memref<7x128xf32, #tpu.memory_space<vmem>>, vector<1x128xf32>
    tpu.vector_store %arg3[%c6_440, %c0_441], %608 {strides = array<i32>} : memref<7x128xf32, #tpu.memory_space<vmem>>, vector<1x128xf32>,
    %c0_442 = arith.constant 0 : index
    %c0_443 = arith.constant 0 : index
    %610 = vector.load %arg3[%c0_442, %c0_443] : memref<7x128xf32, #tpu.memory_space<vmem>>, vector<1x128xf32>
    %611 = arith.addf %610, %606 : vector<1x128xf32>
    %c0_444 = arith.constant 0 : index
    %c0_445 = arith.constant 0 : index
    %612 = vector.load %arg3[%c0_444, %c0_445] : memref<7x128xf32, #tpu.memory_space<vmem>>, vector<1x128xf32>
    tpu.vector_store %arg3[%c0_444, %c0_445], %611 {strides = array<i32>} : memref<7x128xf32, #tpu.memory_space<vmem>>, vector<1x128xf32>,
    %cst_446 = arith.constant 0.000000e+00 : f32
    %613 = vector.broadcast %cst_446 : f32 to vector<1x128xf32>
    %cst_447 = arith.constant 0.000000e+00 : f32
    %614 = vector.broadcast %cst_447 : f32 to vector<1x128xf32>
    %c2_448 = arith.constant 2 : index
    %c0_449 = arith.constant 0 : index
    %c0_450 = arith.constant 0 : index
    %615 = vector.load %arg1[%c2_448, %c0_449, %c0_450] : memref<8x32x128xf32, #tpu.memory_space<vmem>>, vector<1x8x128xf32>
    %616 = vector.shape_cast %615 : vector<1x8x128xf32> to vector<8x128xf32>
    %c3_451 = arith.constant 3 : index
    %c0_452 = arith.constant 0 : index
    %c0_453 = arith.constant 0 : index
    %617 = vector.load %arg1[%c3_451, %c0_452, %c0_453] : memref<8x32x128xf32, #tpu.memory_space<vmem>>, vector<1x8x128xf32>
    %618 = vector.shape_cast %617 : vector<1x8x128xf32> to vector<8x128xf32>
    %619 = arith.subf %616, %618 : vector<8x128xf32>
    %620 = arith.mulf %619, %619 : vector<8x128xf32>
    %cst_454 = arith.constant dense<0.000000e+00> : vector<128xf32>
    %621 = vector.multi_reduction <add>, %620, %cst_454 [0] : vector<8x128xf32> to vector<128xf32>
    %622 = vector.shape_cast %621 : vector<128xf32> to vector<1x128xf32>
    %623 = arith.addf %614, %622 : vector<1x128xf32>
    %c2_455 = arith.constant 2 : index
    %c8_456 = arith.constant 8 : index
    %c0_457 = arith.constant 0 : index
    %624 = vector.load %arg1[%c2_455, %c8_456, %c0_457] : memref<8x32x128xf32, #tpu.memory_space<vmem>>, vector<1x8x128xf32>
    %625 = vector.shape_cast %624 : vector<1x8x128xf32> to vector<8x128xf32>
    %c3_458 = arith.constant 3 : index
    %c8_459 = arith.constant 8 : index
    %c0_460 = arith.constant 0 : index
    %626 = vector.load %arg1[%c3_458, %c8_459, %c0_460] : memref<8x32x128xf32, #tpu.memory_space<vmem>>, vector<1x8x128xf32>
    %627 = vector.shape_cast %626 : vector<1x8x128xf32> to vector<8x128xf32>
    %628 = arith.subf %625, %627 : vector<8x128xf32>
    %629 = arith.mulf %628, %628 : vector<8x128xf32>
    %cst_461 = arith.constant dense<0.000000e+00> : vector<128xf32>
    %630 = vector.multi_reduction <add>, %629, %cst_461 [0] : vector<8x128xf32> to vector<128xf32>
    %631 = vector.shape_cast %630 : vector<128xf32> to vector<1x128xf32>
    %632 = arith.addf %623, %631 : vector<1x128xf32>
    %c2_462 = arith.constant 2 : index
    %c16_463 = arith.constant 16 : index
    %c0_464 = arith.constant 0 : index
    %633 = vector.load %arg1[%c2_462, %c16_463, %c0_464] : memref<8x32x128xf32, #tpu.memory_space<vmem>>, vector<1x8x128xf32>
    %634 = vector.shape_cast %633 : vector<1x8x128xf32> to vector<8x128xf32>
    %c3_465 = arith.constant 3 : index
    %c16_466 = arith.constant 16 : index
    %c0_467 = arith.constant 0 : index
    %635 = vector.load %arg1[%c3_465, %c16_466, %c0_467] : memref<8x32x128xf32, #tpu.memory_space<vmem>>, vector<1x8x128xf32>
    %636 = vector.shape_cast %635 : vector<1x8x128xf32> to vector<8x128xf32>
    %637 = arith.subf %634, %636 : vector<8x128xf32>
    %638 = arith.mulf %637, %637 : vector<8x128xf32>
    %cst_468 = arith.constant dense<0.000000e+00> : vector<128xf32>
    %639 = vector.multi_reduction <add>, %638, %cst_468 [0] : vector<8x128xf32> to vector<128xf32>
    %640 = vector.shape_cast %639 : vector<128xf32> to vector<1x128xf32>
    %641 = arith.addf %632, %640 : vector<1x128xf32>
    %c2_469 = arith.constant 2 : index
    %c24_470 = arith.constant 24 : index
    %c0_471 = arith.constant 0 : index
    %642 = vector.load %arg1[%c2_469, %c24_470, %c0_471] : memref<8x32x128xf32, #tpu.memory_space<vmem>>, vector<1x8x128xf32>
    %643 = vector.shape_cast %642 : vector<1x8x128xf32> to vector<8x128xf32>
    %c3_472 = arith.constant 3 : index
    %c24_473 = arith.constant 24 : index
    %c0_474 = arith.constant 0 : index
    %644 = vector.load %arg1[%c3_472, %c24_473, %c0_474] : memref<8x32x128xf32, #tpu.memory_space<vmem>>, vector<1x8x128xf32>
    %645 = vector.shape_cast %644 : vector<1x8x128xf32> to vector<8x128xf32>
    %646 = arith.subf %643, %645 : vector<8x128xf32>
    %647 = arith.mulf %646, %646 : vector<8x128xf32>
    %cst_475 = arith.constant dense<0.000000e+00> : vector<128xf32>
    %648 = vector.multi_reduction <add>, %647, %cst_475 [0] : vector<8x128xf32> to vector<128xf32>
    %649 = vector.shape_cast %648 : vector<128xf32> to vector<1x128xf32>
    %650 = arith.addf %641, %649 : vector<1x128xf32>
    %651 = math.sqrt %650 : vector<1x128xf32>
    %cst_476 = arith.constant -1.000000e+00 : f32
    %652 = vector.broadcast %cst_476 : f32 to vector<1x128xf32>
    %653 = arith.mulf %651, %652 : vector<1x128xf32>
    %654 = math.exp %653 : vector<1x128xf32>
    %655 = arith.addf %613, %654 : vector<1x128xf32>
    %c2_477 = arith.constant 2 : index
    %c0_478 = arith.constant 0 : index
    %656 = vector.load %arg3[%c2_477, %c0_478] : memref<7x128xf32, #tpu.memory_space<vmem>>, vector<1x128xf32>
    %657 = arith.addf %656, %654 : vector<1x128xf32>
    %c2_479 = arith.constant 2 : index
    %c0_480 = arith.constant 0 : index
    %658 = vector.load %arg3[%c2_479, %c0_480] : memref<7x128xf32, #tpu.memory_space<vmem>>, vector<1x128xf32>
    tpu.vector_store %arg3[%c2_479, %c0_480], %657 {strides = array<i32>} : memref<7x128xf32, #tpu.memory_space<vmem>>, vector<1x128xf32>,
    %cst_481 = arith.constant 0.000000e+00 : f32
    %659 = vector.broadcast %cst_481 : f32 to vector<1x128xf32>
    %c2_482 = arith.constant 2 : index
    %c0_483 = arith.constant 0 : index
    %c0_484 = arith.constant 0 : index
    %660 = vector.load %arg1[%c2_482, %c0_483, %c0_484] : memref<8x32x128xf32, #tpu.memory_space<vmem>>, vector<1x8x128xf32>
    %661 = vector.shape_cast %660 : vector<1x8x128xf32> to vector<8x128xf32>
    %c4_485 = arith.constant 4 : index
    %c0_486 = arith.constant 0 : index
    %c0_487 = arith.constant 0 : index
    %662 = vector.load %arg1[%c4_485, %c0_486, %c0_487] : memref<8x32x128xf32, #tpu.memory_space<vmem>>, vector<1x8x128xf32>
    %663 = vector.shape_cast %662 : vector<1x8x128xf32> to vector<8x128xf32>
    %664 = arith.subf %661, %663 : vector<8x128xf32>
    %665 = arith.mulf %664, %664 : vector<8x128xf32>
    %cst_488 = arith.constant dense<0.000000e+00> : vector<128xf32>
    %666 = vector.multi_reduction <add>, %665, %cst_488 [0] : vector<8x128xf32> to vector<128xf32>
    %667 = vector.shape_cast %666 : vector<128xf32> to vector<1x128xf32>
    %668 = arith.addf %659, %667 : vector<1x128xf32>
    %c2_489 = arith.constant 2 : index
    %c8_490 = arith.constant 8 : index
    %c0_491 = arith.constant 0 : index
    %669 = vector.load %arg1[%c2_489, %c8_490, %c0_491] : memref<8x32x128xf32, #tpu.memory_space<vmem>>, vector<1x8x128xf32>
    %670 = vector.shape_cast %669 : vector<1x8x128xf32> to vector<8x128xf32>
    %c4_492 = arith.constant 4 : index
    %c8_493 = arith.constant 8 : index
    %c0_494 = arith.constant 0 : index
    %671 = vector.load %arg1[%c4_492, %c8_493, %c0_494] : memref<8x32x128xf32, #tpu.memory_space<vmem>>, vector<1x8x128xf32>
    %672 = vector.shape_cast %671 : vector<1x8x128xf32> to vector<8x128xf32>
    %673 = arith.subf %670, %672 : vector<8x128xf32>
    %674 = arith.mulf %673, %673 : vector<8x128xf32>
    %cst_495 = arith.constant dense<0.000000e+00> : vector<128xf32>
    %675 = vector.multi_reduction <add>, %674, %cst_495 [0] : vector<8x128xf32> to vector<128xf32>
    %676 = vector.shape_cast %675 : vector<128xf32> to vector<1x128xf32>
    %677 = arith.addf %668, %676 : vector<1x128xf32>
    %c2_496 = arith.constant 2 : index
    %c16_497 = arith.constant 16 : index
    %c0_498 = arith.constant 0 : index
    %678 = vector.load %arg1[%c2_496, %c16_497, %c0_498] : memref<8x32x128xf32, #tpu.memory_space<vmem>>, vector<1x8x128xf32>
    %679 = vector.shape_cast %678 : vector<1x8x128xf32> to vector<8x128xf32>
    %c4_499 = arith.constant 4 : index
    %c16_500 = arith.constant 16 : index
    %c0_501 = arith.constant 0 : index
    %680 = vector.load %arg1[%c4_499, %c16_500, %c0_501] : memref<8x32x128xf32, #tpu.memory_space<vmem>>, vector<1x8x128xf32>
    %681 = vector.shape_cast %680 : vector<1x8x128xf32> to vector<8x128xf32>
    %682 = arith.subf %679, %681 : vector<8x128xf32>
    %683 = arith.mulf %682, %682 : vector<8x128xf32>
    %cst_502 = arith.constant dense<0.000000e+00> : vector<128xf32>
    %684 = vector.multi_reduction <add>, %683, %cst_502 [0] : vector<8x128xf32> to vector<128xf32>
    %685 = vector.shape_cast %684 : vector<128xf32> to vector<1x128xf32>
    %686 = arith.addf %677, %685 : vector<1x128xf32>
    %c2_503 = arith.constant 2 : index
    %c24_504 = arith.constant 24 : index
    %c0_505 = arith.constant 0 : index
    %687 = vector.load %arg1[%c2_503, %c24_504, %c0_505] : memref<8x32x128xf32, #tpu.memory_space<vmem>>, vector<1x8x128xf32>
    %688 = vector.shape_cast %687 : vector<1x8x128xf32> to vector<8x128xf32>
    %c4_506 = arith.constant 4 : index
    %c24_507 = arith.constant 24 : index
    %c0_508 = arith.constant 0 : index
    %689 = vector.load %arg1[%c4_506, %c24_507, %c0_508] : memref<8x32x128xf32, #tpu.memory_space<vmem>>, vector<1x8x128xf32>
    %690 = vector.shape_cast %689 : vector<1x8x128xf32> to vector<8x128xf32>
    %691 = arith.subf %688, %690 : vector<8x128xf32>
    %692 = arith.mulf %691, %691 : vector<8x128xf32>
    %cst_509 = arith.constant dense<0.000000e+00> : vector<128xf32>
    %693 = vector.multi_reduction <add>, %692, %cst_509 [0] : vector<8x128xf32> to vector<128xf32>
    %694 = vector.shape_cast %693 : vector<128xf32> to vector<1x128xf32>
    %695 = arith.addf %686, %694 : vector<1x128xf32>
    %696 = math.sqrt %695 : vector<1x128xf32>
    %cst_510 = arith.constant -1.000000e+00 : f32
    %697 = vector.broadcast %cst_510 : f32 to vector<1x128xf32>
    %698 = arith.mulf %696, %697 : vector<1x128xf32>
    %699 = math.exp %698 : vector<1x128xf32>
    %700 = arith.addf %655, %699 : vector<1x128xf32>
    %c3_511 = arith.constant 3 : index
    %c0_512 = arith.constant 0 : index
    %701 = vector.load %arg3[%c3_511, %c0_512] : memref<7x128xf32, #tpu.memory_space<vmem>>, vector<1x128xf32>
    %702 = arith.addf %701, %699 : vector<1x128xf32>
    %c3_513 = arith.constant 3 : index
    %c0_514 = arith.constant 0 : index
    %703 = vector.load %arg3[%c3_513, %c0_514] : memref<7x128xf32, #tpu.memory_space<vmem>>, vector<1x128xf32>
    tpu.vector_store %arg3[%c3_513, %c0_514], %702 {strides = array<i32>} : memref<7x128xf32, #tpu.memory_space<vmem>>, vector<1x128xf32>,
    %cst_515 = arith.constant 0.000000e+00 : f32
    %704 = vector.broadcast %cst_515 : f32 to vector<1x128xf32>
    %c2_516 = arith.constant 2 : index
    %c0_517 = arith.constant 0 : index
    %c0_518 = arith.constant 0 : index
    %705 = vector.load %arg1[%c2_516, %c0_517, %c0_518] : memref<8x32x128xf32, #tpu.memory_space<vmem>>, vector<1x8x128xf32>
    %706 = vector.shape_cast %705 : vector<1x8x128xf32> to vector<8x128xf32>
    %c5_519 = arith.constant 5 : index
    %c0_520 = arith.constant 0 : index
    %c0_521 = arith.constant 0 : index
    %707 = vector.load %arg1[%c5_519, %c0_520, %c0_521] : memref<8x32x128xf32, #tpu.memory_space<vmem>>, vector<1x8x128xf32>
    %708 = vector.shape_cast %707 : vector<1x8x128xf32> to vector<8x128xf32>
    %709 = arith.subf %706, %708 : vector<8x128xf32>
    %710 = arith.mulf %709, %709 : vector<8x128xf32>
    %cst_522 = arith.constant dense<0.000000e+00> : vector<128xf32>
    %711 = vector.multi_reduction <add>, %710, %cst_522 [0] : vector<8x128xf32> to vector<128xf32>
    %712 = vector.shape_cast %711 : vector<128xf32> to vector<1x128xf32>
    %713 = arith.addf %704, %712 : vector<1x128xf32>
    %c2_523 = arith.constant 2 : index
    %c8_524 = arith.constant 8 : index
    %c0_525 = arith.constant 0 : index
    %714 = vector.load %arg1[%c2_523, %c8_524, %c0_525] : memref<8x32x128xf32, #tpu.memory_space<vmem>>, vector<1x8x128xf32>
    %715 = vector.shape_cast %714 : vector<1x8x128xf32> to vector<8x128xf32>
    %c5_526 = arith.constant 5 : index
    %c8_527 = arith.constant 8 : index
    %c0_528 = arith.constant 0 : index
    %716 = vector.load %arg1[%c5_526, %c8_527, %c0_528] : memref<8x32x128xf32, #tpu.memory_space<vmem>>, vector<1x8x128xf32>
    %717 = vector.shape_cast %716 : vector<1x8x128xf32> to vector<8x128xf32>
    %718 = arith.subf %715, %717 : vector<8x128xf32>
    %719 = arith.mulf %718, %718 : vector<8x128xf32>
    %cst_529 = arith.constant dense<0.000000e+00> : vector<128xf32>
    %720 = vector.multi_reduction <add>, %719, %cst_529 [0] : vector<8x128xf32> to vector<128xf32>
    %721 = vector.shape_cast %720 : vector<128xf32> to vector<1x128xf32>
    %722 = arith.addf %713, %721 : vector<1x128xf32>
    %c2_530 = arith.constant 2 : index
    %c16_531 = arith.constant 16 : index
    %c0_532 = arith.constant 0 : index
    %723 = vector.load %arg1[%c2_530, %c16_531, %c0_532] : memref<8x32x128xf32, #tpu.memory_space<vmem>>, vector<1x8x128xf32>
    %724 = vector.shape_cast %723 : vector<1x8x128xf32> to vector<8x128xf32>
    %c5_533 = arith.constant 5 : index
    %c16_534 = arith.constant 16 : index
    %c0_535 = arith.constant 0 : index
    %725 = vector.load %arg1[%c5_533, %c16_534, %c0_535] : memref<8x32x128xf32, #tpu.memory_space<vmem>>, vector<1x8x128xf32>
    %726 = vector.shape_cast %725 : vector<1x8x128xf32> to vector<8x128xf32>
    %727 = arith.subf %724, %726 : vector<8x128xf32>
    %728 = arith.mulf %727, %727 : vector<8x128xf32>
    %cst_536 = arith.constant dense<0.000000e+00> : vector<128xf32>
    %729 = vector.multi_reduction <add>, %728, %cst_536 [0] : vector<8x128xf32> to vector<128xf32>
    %730 = vector.shape_cast %729 : vector<128xf32> to vector<1x128xf32>
    %731 = arith.addf %722, %730 : vector<1x128xf32>
    %c2_537 = arith.constant 2 : index
    %c24_538 = arith.constant 24 : index
    %c0_539 = arith.constant 0 : index
    %732 = vector.load %arg1[%c2_537, %c24_538, %c0_539] : memref<8x32x128xf32, #tpu.memory_space<vmem>>, vector<1x8x128xf32>
    %733 = vector.shape_cast %732 : vector<1x8x128xf32> to vector<8x128xf32>
    %c5_540 = arith.constant 5 : index
    %c24_541 = arith.constant 24 : index
    %c0_542 = arith.constant 0 : index
    %734 = vector.load %arg1[%c5_540, %c24_541, %c0_542] : memref<8x32x128xf32, #tpu.memory_space<vmem>>, vector<1x8x128xf32>
    %735 = vector.shape_cast %734 : vector<1x8x128xf32> to vector<8x128xf32>
    %736 = arith.subf %733, %735 : vector<8x128xf32>
    %737 = arith.mulf %736, %736 : vector<8x128xf32>
    %cst_543 = arith.constant dense<0.000000e+00> : vector<128xf32>
    %738 = vector.multi_reduction <add>, %737, %cst_543 [0] : vector<8x128xf32> to vector<128xf32>
    %739 = vector.shape_cast %738 : vector<128xf32> to vector<1x128xf32>
    %740 = arith.addf %731, %739 : vector<1x128xf32>
    %741 = math.sqrt %740 : vector<1x128xf32>
    %cst_544 = arith.constant -1.000000e+00 : f32
    %742 = vector.broadcast %cst_544 : f32 to vector<1x128xf32>
    %743 = arith.mulf %741, %742 : vector<1x128xf32>
    %744 = math.exp %743 : vector<1x128xf32>
    %745 = arith.addf %700, %744 : vector<1x128xf32>
    %c4_545 = arith.constant 4 : index
    %c0_546 = arith.constant 0 : index
    %746 = vector.load %arg3[%c4_545, %c0_546] : memref<7x128xf32, #tpu.memory_space<vmem>>, vector<1x128xf32>
    %747 = arith.addf %746, %744 : vector<1x128xf32>
    %c4_547 = arith.constant 4 : index
    %c0_548 = arith.constant 0 : index
    %748 = vector.load %arg3[%c4_547, %c0_548] : memref<7x128xf32, #tpu.memory_space<vmem>>, vector<1x128xf32>
    tpu.vector_store %arg3[%c4_547, %c0_548], %747 {strides = array<i32>} : memref<7x128xf32, #tpu.memory_space<vmem>>, vector<1x128xf32>,
    %cst_549 = arith.constant 0.000000e+00 : f32
    %749 = vector.broadcast %cst_549 : f32 to vector<1x128xf32>
    %c2_550 = arith.constant 2 : index
    %c0_551 = arith.constant 0 : index
    %c0_552 = arith.constant 0 : index
    %750 = vector.load %arg1[%c2_550, %c0_551, %c0_552] : memref<8x32x128xf32, #tpu.memory_space<vmem>>, vector<1x8x128xf32>
    %751 = vector.shape_cast %750 : vector<1x8x128xf32> to vector<8x128xf32>
    %c6_553 = arith.constant 6 : index
    %c0_554 = arith.constant 0 : index
    %c0_555 = arith.constant 0 : index
    %752 = vector.load %arg1[%c6_553, %c0_554, %c0_555] : memref<8x32x128xf32, #tpu.memory_space<vmem>>, vector<1x8x128xf32>
    %753 = vector.shape_cast %752 : vector<1x8x128xf32> to vector<8x128xf32>
    %754 = arith.subf %751, %753 : vector<8x128xf32>
    %755 = arith.mulf %754, %754 : vector<8x128xf32>
    %cst_556 = arith.constant dense<0.000000e+00> : vector<128xf32>
    %756 = vector.multi_reduction <add>, %755, %cst_556 [0] : vector<8x128xf32> to vector<128xf32>
    %757 = vector.shape_cast %756 : vector<128xf32> to vector<1x128xf32>
    %758 = arith.addf %749, %757 : vector<1x128xf32>
    %c2_557 = arith.constant 2 : index
    %c8_558 = arith.constant 8 : index
    %c0_559 = arith.constant 0 : index
    %759 = vector.load %arg1[%c2_557, %c8_558, %c0_559] : memref<8x32x128xf32, #tpu.memory_space<vmem>>, vector<1x8x128xf32>
    %760 = vector.shape_cast %759 : vector<1x8x128xf32> to vector<8x128xf32>
    %c6_560 = arith.constant 6 : index
    %c8_561 = arith.constant 8 : index
    %c0_562 = arith.constant 0 : index
    %761 = vector.load %arg1[%c6_560, %c8_561, %c0_562] : memref<8x32x128xf32, #tpu.memory_space<vmem>>, vector<1x8x128xf32>
    %762 = vector.shape_cast %761 : vector<1x8x128xf32> to vector<8x128xf32>
    %763 = arith.subf %760, %762 : vector<8x128xf32>
    %764 = arith.mulf %763, %763 : vector<8x128xf32>
    %cst_563 = arith.constant dense<0.000000e+00> : vector<128xf32>
    %765 = vector.multi_reduction <add>, %764, %cst_563 [0] : vector<8x128xf32> to vector<128xf32>
    %766 = vector.shape_cast %765 : vector<128xf32> to vector<1x128xf32>
    %767 = arith.addf %758, %766 : vector<1x128xf32>
    %c2_564 = arith.constant 2 : index
    %c16_565 = arith.constant 16 : index
    %c0_566 = arith.constant 0 : index
    %768 = vector.load %arg1[%c2_564, %c16_565, %c0_566] : memref<8x32x128xf32, #tpu.memory_space<vmem>>, vector<1x8x128xf32>
    %769 = vector.shape_cast %768 : vector<1x8x128xf32> to vector<8x128xf32>
    %c6_567 = arith.constant 6 : index
    %c16_568 = arith.constant 16 : index
    %c0_569 = arith.constant 0 : index
    %770 = vector.load %arg1[%c6_567, %c16_568, %c0_569] : memref<8x32x128xf32, #tpu.memory_space<vmem>>, vector<1x8x128xf32>
    %771 = vector.shape_cast %770 : vector<1x8x128xf32> to vector<8x128xf32>
    %772 = arith.subf %769, %771 : vector<8x128xf32>
    %773 = arith.mulf %772, %772 : vector<8x128xf32>
    %cst_570 = arith.constant dense<0.000000e+00> : vector<128xf32>
    %774 = vector.multi_reduction <add>, %773, %cst_570 [0] : vector<8x128xf32> to vector<128xf32>
    %775 = vector.shape_cast %774 : vector<128xf32> to vector<1x128xf32>
    %776 = arith.addf %767, %775 : vector<1x128xf32>
    %c2_571 = arith.constant 2 : index
    %c24_572 = arith.constant 24 : index
    %c0_573 = arith.constant 0 : index
    %777 = vector.load %arg1[%c2_571, %c24_572, %c0_573] : memref<8x32x128xf32, #tpu.memory_space<vmem>>, vector<1x8x128xf32>
    %778 = vector.shape_cast %777 : vector<1x8x128xf32> to vector<8x128xf32>
    %c6_574 = arith.constant 6 : index
    %c24_575 = arith.constant 24 : index
    %c0_576 = arith.constant 0 : index
    %779 = vector.load %arg1[%c6_574, %c24_575, %c0_576] : memref<8x32x128xf32, #tpu.memory_space<vmem>>, vector<1x8x128xf32>
    %780 = vector.shape_cast %779 : vector<1x8x128xf32> to vector<8x128xf32>
    %781 = arith.subf %778, %780 : vector<8x128xf32>
    %782 = arith.mulf %781, %781 : vector<8x128xf32>
    %cst_577 = arith.constant dense<0.000000e+00> : vector<128xf32>
    %783 = vector.multi_reduction <add>, %782, %cst_577 [0] : vector<8x128xf32> to vector<128xf32>
    %784 = vector.shape_cast %783 : vector<128xf32> to vector<1x128xf32>
    %785 = arith.addf %776, %784 : vector<1x128xf32>
    %786 = math.sqrt %785 : vector<1x128xf32>
    %cst_578 = arith.constant -1.000000e+00 : f32
    %787 = vector.broadcast %cst_578 : f32 to vector<1x128xf32>
    %788 = arith.mulf %786, %787 : vector<1x128xf32>
    %789 = math.exp %788 : vector<1x128xf32>
    %790 = arith.addf %745, %789 : vector<1x128xf32>
    %c5_579 = arith.constant 5 : index
    %c0_580 = arith.constant 0 : index
    %791 = vector.load %arg3[%c5_579, %c0_580] : memref<7x128xf32, #tpu.memory_space<vmem>>, vector<1x128xf32>
    %792 = arith.addf %791, %789 : vector<1x128xf32>
    %c5_581 = arith.constant 5 : index
    %c0_582 = arith.constant 0 : index
    %793 = vector.load %arg3[%c5_581, %c0_582] : memref<7x128xf32, #tpu.memory_space<vmem>>, vector<1x128xf32>
    tpu.vector_store %arg3[%c5_581, %c0_582], %792 {strides = array<i32>} : memref<7x128xf32, #tpu.memory_space<vmem>>, vector<1x128xf32>,
    %cst_583 = arith.constant 0.000000e+00 : f32
    %794 = vector.broadcast %cst_583 : f32 to vector<1x128xf32>
    %c2_584 = arith.constant 2 : index
    %c0_585 = arith.constant 0 : index
    %c0_586 = arith.constant 0 : index
    %795 = vector.load %arg1[%c2_584, %c0_585, %c0_586] : memref<8x32x128xf32, #tpu.memory_space<vmem>>, vector<1x8x128xf32>
    %796 = vector.shape_cast %795 : vector<1x8x128xf32> to vector<8x128xf32>
    %c7_587 = arith.constant 7 : index
    %c0_588 = arith.constant 0 : index
    %c0_589 = arith.constant 0 : index
    %797 = vector.load %arg1[%c7_587, %c0_588, %c0_589] : memref<8x32x128xf32, #tpu.memory_space<vmem>>, vector<1x8x128xf32>
    %798 = vector.shape_cast %797 : vector<1x8x128xf32> to vector<8x128xf32>
    %799 = arith.subf %796, %798 : vector<8x128xf32>
    %800 = arith.mulf %799, %799 : vector<8x128xf32>
    %cst_590 = arith.constant dense<0.000000e+00> : vector<128xf32>
    %801 = vector.multi_reduction <add>, %800, %cst_590 [0] : vector<8x128xf32> to vector<128xf32>
    %802 = vector.shape_cast %801 : vector<128xf32> to vector<1x128xf32>
    %803 = arith.addf %794, %802 : vector<1x128xf32>
    %c2_591 = arith.constant 2 : index
    %c8_592 = arith.constant 8 : index
    %c0_593 = arith.constant 0 : index
    %804 = vector.load %arg1[%c2_591, %c8_592, %c0_593] : memref<8x32x128xf32, #tpu.memory_space<vmem>>, vector<1x8x128xf32>
    %805 = vector.shape_cast %804 : vector<1x8x128xf32> to vector<8x128xf32>
    %c7_594 = arith.constant 7 : index
    %c8_595 = arith.constant 8 : index
    %c0_596 = arith.constant 0 : index
    %806 = vector.load %arg1[%c7_594, %c8_595, %c0_596] : memref<8x32x128xf32, #tpu.memory_space<vmem>>, vector<1x8x128xf32>
    %807 = vector.shape_cast %806 : vector<1x8x128xf32> to vector<8x128xf32>
    %808 = arith.subf %805, %807 : vector<8x128xf32>
    %809 = arith.mulf %808, %808 : vector<8x128xf32>
    %cst_597 = arith.constant dense<0.000000e+00> : vector<128xf32>
    %810 = vector.multi_reduction <add>, %809, %cst_597 [0] : vector<8x128xf32> to vector<128xf32>
    %811 = vector.shape_cast %810 : vector<128xf32> to vector<1x128xf32>
    %812 = arith.addf %803, %811 : vector<1x128xf32>
    %c2_598 = arith.constant 2 : index
    %c16_599 = arith.constant 16 : index
    %c0_600 = arith.constant 0 : index
    %813 = vector.load %arg1[%c2_598, %c16_599, %c0_600] : memref<8x32x128xf32, #tpu.memory_space<vmem>>, vector<1x8x128xf32>
    %814 = vector.shape_cast %813 : vector<1x8x128xf32> to vector<8x128xf32>
    %c7_601 = arith.constant 7 : index
    %c16_602 = arith.constant 16 : index
    %c0_603 = arith.constant 0 : index
    %815 = vector.load %arg1[%c7_601, %c16_602, %c0_603] : memref<8x32x128xf32, #tpu.memory_space<vmem>>, vector<1x8x128xf32>
    %816 = vector.shape_cast %815 : vector<1x8x128xf32> to vector<8x128xf32>
    %817 = arith.subf %814, %816 : vector<8x128xf32>
    %818 = arith.mulf %817, %817 : vector<8x128xf32>
    %cst_604 = arith.constant dense<0.000000e+00> : vector<128xf32>
    %819 = vector.multi_reduction <add>, %818, %cst_604 [0] : vector<8x128xf32> to vector<128xf32>
    %820 = vector.shape_cast %819 : vector<128xf32> to vector<1x128xf32>
    %821 = arith.addf %812, %820 : vector<1x128xf32>
    %c2_605 = arith.constant 2 : index
    %c24_606 = arith.constant 24 : index
    %c0_607 = arith.constant 0 : index
    %822 = vector.load %arg1[%c2_605, %c24_606, %c0_607] : memref<8x32x128xf32, #tpu.memory_space<vmem>>, vector<1x8x128xf32>
    %823 = vector.shape_cast %822 : vector<1x8x128xf32> to vector<8x128xf32>
    %c7_608 = arith.constant 7 : index
    %c24_609 = arith.constant 24 : index
    %c0_610 = arith.constant 0 : index
    %824 = vector.load %arg1[%c7_608, %c24_609, %c0_610] : memref<8x32x128xf32, #tpu.memory_space<vmem>>, vector<1x8x128xf32>
    %825 = vector.shape_cast %824 : vector<1x8x128xf32> to vector<8x128xf32>
    %826 = arith.subf %823, %825 : vector<8x128xf32>
    %827 = arith.mulf %826, %826 : vector<8x128xf32>
    %cst_611 = arith.constant dense<0.000000e+00> : vector<128xf32>
    %828 = vector.multi_reduction <add>, %827, %cst_611 [0] : vector<8x128xf32> to vector<128xf32>
    %829 = vector.shape_cast %828 : vector<128xf32> to vector<1x128xf32>
    %830 = arith.addf %821, %829 : vector<1x128xf32>
    %831 = math.sqrt %830 : vector<1x128xf32>
    %cst_612 = arith.constant -1.000000e+00 : f32
    %832 = vector.broadcast %cst_612 : f32 to vector<1x128xf32>
    %833 = arith.mulf %831, %832 : vector<1x128xf32>
    %834 = math.exp %833 : vector<1x128xf32>
    %835 = arith.addf %790, %834 : vector<1x128xf32>
    %c6_613 = arith.constant 6 : index
    %c0_614 = arith.constant 0 : index
    %836 = vector.load %arg3[%c6_613, %c0_614] : memref<7x128xf32, #tpu.memory_space<vmem>>, vector<1x128xf32>
    %837 = arith.addf %836, %834 : vector<1x128xf32>
    %c6_615 = arith.constant 6 : index
    %c0_616 = arith.constant 0 : index
    %838 = vector.load %arg3[%c6_615, %c0_616] : memref<7x128xf32, #tpu.memory_space<vmem>>, vector<1x128xf32>
    tpu.vector_store %arg3[%c6_615, %c0_616], %837 {strides = array<i32>} : memref<7x128xf32, #tpu.memory_space<vmem>>, vector<1x128xf32>,
    %c1_617 = arith.constant 1 : index
    %c0_618 = arith.constant 0 : index
    %839 = vector.load %arg3[%c1_617, %c0_618] : memref<7x128xf32, #tpu.memory_space<vmem>>, vector<1x128xf32>
    %840 = arith.addf %839, %835 : vector<1x128xf32>
    %c1_619 = arith.constant 1 : index
    %c0_620 = arith.constant 0 : index
    %841 = vector.load %arg3[%c1_619, %c0_620] : memref<7x128xf32, #tpu.memory_space<vmem>>, vector<1x128xf32>
    tpu.vector_store %arg3[%c1_619, %c0_620], %840 {strides = array<i32>} : memref<7x128xf32, #tpu.memory_space<vmem>>, vector<1x128xf32>,
    %cst_621 = arith.constant 0.000000e+00 : f32
    %842 = vector.broadcast %cst_621 : f32 to vector<1x128xf32>
    %cst_622 = arith.constant 0.000000e+00 : f32
    %843 = vector.broadcast %cst_622 : f32 to vector<1x128xf32>
    %c3_623 = arith.constant 3 : index
    %c0_624 = arith.constant 0 : index
    %c0_625 = arith.constant 0 : index
    %844 = vector.load %arg1[%c3_623, %c0_624, %c0_625] : memref<8x32x128xf32, #tpu.memory_space<vmem>>, vector<1x8x128xf32>
    %845 = vector.shape_cast %844 : vector<1x8x128xf32> to vector<8x128xf32>
    %c4_626 = arith.constant 4 : index
    %c0_627 = arith.constant 0 : index
    %c0_628 = arith.constant 0 : index
    %846 = vector.load %arg1[%c4_626, %c0_627, %c0_628] : memref<8x32x128xf32, #tpu.memory_space<vmem>>, vector<1x8x128xf32>
    %847 = vector.shape_cast %846 : vector<1x8x128xf32> to vector<8x128xf32>
    %848 = arith.subf %845, %847 : vector<8x128xf32>
    %849 = arith.mulf %848, %848 : vector<8x128xf32>
    %cst_629 = arith.constant dense<0.000000e+00> : vector<128xf32>
    %850 = vector.multi_reduction <add>, %849, %cst_629 [0] : vector<8x128xf32> to vector<128xf32>
    %851 = vector.shape_cast %850 : vector<128xf32> to vector<1x128xf32>
    %852 = arith.addf %843, %851 : vector<1x128xf32>
    %c3_630 = arith.constant 3 : index
    %c8_631 = arith.constant 8 : index
    %c0_632 = arith.constant 0 : index
    %853 = vector.load %arg1[%c3_630, %c8_631, %c0_632] : memref<8x32x128xf32, #tpu.memory_space<vmem>>, vector<1x8x128xf32>
    %854 = vector.shape_cast %853 : vector<1x8x128xf32> to vector<8x128xf32>
    %c4_633 = arith.constant 4 : index
    %c8_634 = arith.constant 8 : index
    %c0_635 = arith.constant 0 : index
    %855 = vector.load %arg1[%c4_633, %c8_634, %c0_635] : memref<8x32x128xf32, #tpu.memory_space<vmem>>, vector<1x8x128xf32>
    %856 = vector.shape_cast %855 : vector<1x8x128xf32> to vector<8x128xf32>
    %857 = arith.subf %854, %856 : vector<8x128xf32>
    %858 = arith.mulf %857, %857 : vector<8x128xf32>
    %cst_636 = arith.constant dense<0.000000e+00> : vector<128xf32>
    %859 = vector.multi_reduction <add>, %858, %cst_636 [0] : vector<8x128xf32> to vector<128xf32>
    %860 = vector.shape_cast %859 : vector<128xf32> to vector<1x128xf32>
    %861 = arith.addf %852, %860 : vector<1x128xf32>
    %c3_637 = arith.constant 3 : index
    %c16_638 = arith.constant 16 : index
    %c0_639 = arith.constant 0 : index
    %862 = vector.load %arg1[%c3_637, %c16_638, %c0_639] : memref<8x32x128xf32, #tpu.memory_space<vmem>>, vector<1x8x128xf32>
    %863 = vector.shape_cast %862 : vector<1x8x128xf32> to vector<8x128xf32>
    %c4_640 = arith.constant 4 : index
    %c16_641 = arith.constant 16 : index
    %c0_642 = arith.constant 0 : index
    %864 = vector.load %arg1[%c4_640, %c16_641, %c0_642] : memref<8x32x128xf32, #tpu.memory_space<vmem>>, vector<1x8x128xf32>
    %865 = vector.shape_cast %864 : vector<1x8x128xf32> to vector<8x128xf32>
    %866 = arith.subf %863, %865 : vector<8x128xf32>
    %867 = arith.mulf %866, %866 : vector<8x128xf32>
    %cst_643 = arith.constant dense<0.000000e+00> : vector<128xf32>
    %868 = vector.multi_reduction <add>, %867, %cst_643 [0] : vector<8x128xf32> to vector<128xf32>
    %869 = vector.shape_cast %868 : vector<128xf32> to vector<1x128xf32>
    %870 = arith.addf %861, %869 : vector<1x128xf32>
    %c3_644 = arith.constant 3 : index
    %c24_645 = arith.constant 24 : index
    %c0_646 = arith.constant 0 : index
    %871 = vector.load %arg1[%c3_644, %c24_645, %c0_646] : memref<8x32x128xf32, #tpu.memory_space<vmem>>, vector<1x8x128xf32>
    %872 = vector.shape_cast %871 : vector<1x8x128xf32> to vector<8x128xf32>
    %c4_647 = arith.constant 4 : index
    %c24_648 = arith.constant 24 : index
    %c0_649 = arith.constant 0 : index
    %873 = vector.load %arg1[%c4_647, %c24_648, %c0_649] : memref<8x32x128xf32, #tpu.memory_space<vmem>>, vector<1x8x128xf32>
    %874 = vector.shape_cast %873 : vector<1x8x128xf32> to vector<8x128xf32>
    %875 = arith.subf %872, %874 : vector<8x128xf32>
    %876 = arith.mulf %875, %875 : vector<8x128xf32>
    %cst_650 = arith.constant dense<0.000000e+00> : vector<128xf32>
    %877 = vector.multi_reduction <add>, %876, %cst_650 [0] : vector<8x128xf32> to vector<128xf32>
    %878 = vector.shape_cast %877 : vector<128xf32> to vector<1x128xf32>
    %879 = arith.addf %870, %878 : vector<1x128xf32>
    %880 = math.sqrt %879 : vector<1x128xf32>
    %cst_651 = arith.constant -1.000000e+00 : f32
    %881 = vector.broadcast %cst_651 : f32 to vector<1x128xf32>
    %882 = arith.mulf %880, %881 : vector<1x128xf32>
    %883 = math.exp %882 : vector<1x128xf32>
    %884 = arith.addf %842, %883 : vector<1x128xf32>
    %c3_652 = arith.constant 3 : index
    %c0_653 = arith.constant 0 : index
    %885 = vector.load %arg3[%c3_652, %c0_653] : memref<7x128xf32, #tpu.memory_space<vmem>>, vector<1x128xf32>
    %886 = arith.addf %885, %883 : vector<1x128xf32>
    %c3_654 = arith.constant 3 : index
    %c0_655 = arith.constant 0 : index
    %887 = vector.load %arg3[%c3_654, %c0_655] : memref<7x128xf32, #tpu.memory_space<vmem>>, vector<1x128xf32>
    tpu.vector_store %arg3[%c3_654, %c0_655], %886 {strides = array<i32>} : memref<7x128xf32, #tpu.memory_space<vmem>>, vector<1x128xf32>,
    %cst_656 = arith.constant 0.000000e+00 : f32
    %888 = vector.broadcast %cst_656 : f32 to vector<1x128xf32>
    %c3_657 = arith.constant 3 : index
    %c0_658 = arith.constant 0 : index
    %c0_659 = arith.constant 0 : index
    %889 = vector.load %arg1[%c3_657, %c0_658, %c0_659] : memref<8x32x128xf32, #tpu.memory_space<vmem>>, vector<1x8x128xf32>
    %890 = vector.shape_cast %889 : vector<1x8x128xf32> to vector<8x128xf32>
    %c5_660 = arith.constant 5 : index
    %c0_661 = arith.constant 0 : index
    %c0_662 = arith.constant 0 : index
    %891 = vector.load %arg1[%c5_660, %c0_661, %c0_662] : memref<8x32x128xf32, #tpu.memory_space<vmem>>, vector<1x8x128xf32>
    %892 = vector.shape_cast %891 : vector<1x8x128xf32> to vector<8x128xf32>
    %893 = arith.subf %890, %892 : vector<8x128xf32>
    %894 = arith.mulf %893, %893 : vector<8x128xf32>
    %cst_663 = arith.constant dense<0.000000e+00> : vector<128xf32>
    %895 = vector.multi_reduction <add>, %894, %cst_663 [0] : vector<8x128xf32> to vector<128xf32>
    %896 = vector.shape_cast %895 : vector<128xf32> to vector<1x128xf32>
    %897 = arith.addf %888, %896 : vector<1x128xf32>
    %c3_664 = arith.constant 3 : index
    %c8_665 = arith.constant 8 : index
    %c0_666 = arith.constant 0 : index
    %898 = vector.load %arg1[%c3_664, %c8_665, %c0_666] : memref<8x32x128xf32, #tpu.memory_space<vmem>>, vector<1x8x128xf32>
    %899 = vector.shape_cast %898 : vector<1x8x128xf32> to vector<8x128xf32>
    %c5_667 = arith.constant 5 : index
    %c8_668 = arith.constant 8 : index
    %c0_669 = arith.constant 0 : index
    %900 = vector.load %arg1[%c5_667, %c8_668, %c0_669] : memref<8x32x128xf32, #tpu.memory_space<vmem>>, vector<1x8x128xf32>
    %901 = vector.shape_cast %900 : vector<1x8x128xf32> to vector<8x128xf32>
    %902 = arith.subf %899, %901 : vector<8x128xf32>
    %903 = arith.mulf %902, %902 : vector<8x128xf32>
    %cst_670 = arith.constant dense<0.000000e+00> : vector<128xf32>
    %904 = vector.multi_reduction <add>, %903, %cst_670 [0] : vector<8x128xf32> to vector<128xf32>
    %905 = vector.shape_cast %904 : vector<128xf32> to vector<1x128xf32>
    %906 = arith.addf %897, %905 : vector<1x128xf32>
    %c3_671 = arith.constant 3 : index
    %c16_672 = arith.constant 16 : index
    %c0_673 = arith.constant 0 : index
    %907 = vector.load %arg1[%c3_671, %c16_672, %c0_673] : memref<8x32x128xf32, #tpu.memory_space<vmem>>, vector<1x8x128xf32>
    %908 = vector.shape_cast %907 : vector<1x8x128xf32> to vector<8x128xf32>
    %c5_674 = arith.constant 5 : index
    %c16_675 = arith.constant 16 : index
    %c0_676 = arith.constant 0 : index
    %909 = vector.load %arg1[%c5_674, %c16_675, %c0_676] : memref<8x32x128xf32, #tpu.memory_space<vmem>>, vector<1x8x128xf32>
    %910 = vector.shape_cast %909 : vector<1x8x128xf32> to vector<8x128xf32>
    %911 = arith.subf %908, %910 : vector<8x128xf32>
    %912 = arith.mulf %911, %911 : vector<8x128xf32>
    %cst_677 = arith.constant dense<0.000000e+00> : vector<128xf32>
    %913 = vector.multi_reduction <add>, %912, %cst_677 [0] : vector<8x128xf32> to vector<128xf32>
    %914 = vector.shape_cast %913 : vector<128xf32> to vector<1x128xf32>
    %915 = arith.addf %906, %914 : vector<1x128xf32>
    %c3_678 = arith.constant 3 : index
    %c24_679 = arith.constant 24 : index
    %c0_680 = arith.constant 0 : index
    %916 = vector.load %arg1[%c3_678, %c24_679, %c0_680] : memref<8x32x128xf32, #tpu.memory_space<vmem>>, vector<1x8x128xf32>
    %917 = vector.shape_cast %916 : vector<1x8x128xf32> to vector<8x128xf32>
    %c5_681 = arith.constant 5 : index
    %c24_682 = arith.constant 24 : index
    %c0_683 = arith.constant 0 : index
    %918 = vector.load %arg1[%c5_681, %c24_682, %c0_683] : memref<8x32x128xf32, #tpu.memory_space<vmem>>, vector<1x8x128xf32>
    %919 = vector.shape_cast %918 : vector<1x8x128xf32> to vector<8x128xf32>
    %920 = arith.subf %917, %919 : vector<8x128xf32>
    %921 = arith.mulf %920, %920 : vector<8x128xf32>
    %cst_684 = arith.constant dense<0.000000e+00> : vector<128xf32>
    %922 = vector.multi_reduction <add>, %921, %cst_684 [0] : vector<8x128xf32> to vector<128xf32>
    %923 = vector.shape_cast %922 : vector<128xf32> to vector<1x128xf32>
    %924 = arith.addf %915, %923 : vector<1x128xf32>
    %925 = math.sqrt %924 : vector<1x128xf32>
    %cst_685 = arith.constant -1.000000e+00 : f32
    %926 = vector.broadcast %cst_685 : f32 to vector<1x128xf32>
    %927 = arith.mulf %925, %926 : vector<1x128xf32>
    %928 = math.exp %927 : vector<1x128xf32>
    %929 = arith.addf %884, %928 : vector<1x128xf32>
    %c4_686 = arith.constant 4 : index
    %c0_687 = arith.constant 0 : index
    %930 = vector.load %arg3[%c4_686, %c0_687] : memref<7x128xf32, #tpu.memory_space<vmem>>, vector<1x128xf32>
    %931 = arith.addf %930, %928 : vector<1x128xf32>
    %c4_688 = arith.constant 4 : index
    %c0_689 = arith.constant 0 : index
    %932 = vector.load %arg3[%c4_688, %c0_689] : memref<7x128xf32, #tpu.memory_space<vmem>>, vector<1x128xf32>
    tpu.vector_store %arg3[%c4_688, %c0_689], %931 {strides = array<i32>} : memref<7x128xf32, #tpu.memory_space<vmem>>, vector<1x128xf32>,
    %cst_690 = arith.constant 0.000000e+00 : f32
    %933 = vector.broadcast %cst_690 : f32 to vector<1x128xf32>
    %c3_691 = arith.constant 3 : index
    %c0_692 = arith.constant 0 : index
    %c0_693 = arith.constant 0 : index
    %934 = vector.load %arg1[%c3_691, %c0_692, %c0_693] : memref<8x32x128xf32, #tpu.memory_space<vmem>>, vector<1x8x128xf32>
    %935 = vector.shape_cast %934 : vector<1x8x128xf32> to vector<8x128xf32>
    %c6_694 = arith.constant 6 : index
    %c0_695 = arith.constant 0 : index
    %c0_696 = arith.constant 0 : index
    %936 = vector.load %arg1[%c6_694, %c0_695, %c0_696] : memref<8x32x128xf32, #tpu.memory_space<vmem>>, vector<1x8x128xf32>
    %937 = vector.shape_cast %936 : vector<1x8x128xf32> to vector<8x128xf32>
    %938 = arith.subf %935, %937 : vector<8x128xf32>
    %939 = arith.mulf %938, %938 : vector<8x128xf32>
    %cst_697 = arith.constant dense<0.000000e+00> : vector<128xf32>
    %940 = vector.multi_reduction <add>, %939, %cst_697 [0] : vector<8x128xf32> to vector<128xf32>
    %941 = vector.shape_cast %940 : vector<128xf32> to vector<1x128xf32>
    %942 = arith.addf %933, %941 : vector<1x128xf32>
    %c3_698 = arith.constant 3 : index
    %c8_699 = arith.constant 8 : index
    %c0_700 = arith.constant 0 : index
    %943 = vector.load %arg1[%c3_698, %c8_699, %c0_700] : memref<8x32x128xf32, #tpu.memory_space<vmem>>, vector<1x8x128xf32>
    %944 = vector.shape_cast %943 : vector<1x8x128xf32> to vector<8x128xf32>
    %c6_701 = arith.constant 6 : index
    %c8_702 = arith.constant 8 : index
    %c0_703 = arith.constant 0 : index
    %945 = vector.load %arg1[%c6_701, %c8_702, %c0_703] : memref<8x32x128xf32, #tpu.memory_space<vmem>>, vector<1x8x128xf32>
    %946 = vector.shape_cast %945 : vector<1x8x128xf32> to vector<8x128xf32>
    %947 = arith.subf %944, %946 : vector<8x128xf32>
    %948 = arith.mulf %947, %947 : vector<8x128xf32>
    %cst_704 = arith.constant dense<0.000000e+00> : vector<128xf32>
    %949 = vector.multi_reduction <add>, %948, %cst_704 [0] : vector<8x128xf32> to vector<128xf32>
    %950 = vector.shape_cast %949 : vector<128xf32> to vector<1x128xf32>
    %951 = arith.addf %942, %950 : vector<1x128xf32>
    %c3_705 = arith.constant 3 : index
    %c16_706 = arith.constant 16 : index
    %c0_707 = arith.constant 0 : index
    %952 = vector.load %arg1[%c3_705, %c16_706, %c0_707] : memref<8x32x128xf32, #tpu.memory_space<vmem>>, vector<1x8x128xf32>
    %953 = vector.shape_cast %952 : vector<1x8x128xf32> to vector<8x128xf32>
    %c6_708 = arith.constant 6 : index
    %c16_709 = arith.constant 16 : index
    %c0_710 = arith.constant 0 : index
    %954 = vector.load %arg1[%c6_708, %c16_709, %c0_710] : memref<8x32x128xf32, #tpu.memory_space<vmem>>, vector<1x8x128xf32>
    %955 = vector.shape_cast %954 : vector<1x8x128xf32> to vector<8x128xf32>
    %956 = arith.subf %953, %955 : vector<8x128xf32>
    %957 = arith.mulf %956, %956 : vector<8x128xf32>
    %cst_711 = arith.constant dense<0.000000e+00> : vector<128xf32>
    %958 = vector.multi_reduction <add>, %957, %cst_711 [0] : vector<8x128xf32> to vector<128xf32>
    %959 = vector.shape_cast %958 : vector<128xf32> to vector<1x128xf32>
    %960 = arith.addf %951, %959 : vector<1x128xf32>
    %c3_712 = arith.constant 3 : index
    %c24_713 = arith.constant 24 : index
    %c0_714 = arith.constant 0 : index
    %961 = vector.load %arg1[%c3_712, %c24_713, %c0_714] : memref<8x32x128xf32, #tpu.memory_space<vmem>>, vector<1x8x128xf32>
    %962 = vector.shape_cast %961 : vector<1x8x128xf32> to vector<8x128xf32>
    %c6_715 = arith.constant 6 : index
    %c24_716 = arith.constant 24 : index
    %c0_717 = arith.constant 0 : index
    %963 = vector.load %arg1[%c6_715, %c24_716, %c0_717] : memref<8x32x128xf32, #tpu.memory_space<vmem>>, vector<1x8x128xf32>
    %964 = vector.shape_cast %963 : vector<1x8x128xf32> to vector<8x128xf32>
    %965 = arith.subf %962, %964 : vector<8x128xf32>
    %966 = arith.mulf %965, %965 : vector<8x128xf32>
    %cst_718 = arith.constant dense<0.000000e+00> : vector<128xf32>
    %967 = vector.multi_reduction <add>, %966, %cst_718 [0] : vector<8x128xf32> to vector<128xf32>
    %968 = vector.shape_cast %967 : vector<128xf32> to vector<1x128xf32>
    %969 = arith.addf %960, %968 : vector<1x128xf32>
    %970 = math.sqrt %969 : vector<1x128xf32>
    %cst_719 = arith.constant -1.000000e+00 : f32
    %971 = vector.broadcast %cst_719 : f32 to vector<1x128xf32>
    %972 = arith.mulf %970, %971 : vector<1x128xf32>
    %973 = math.exp %972 : vector<1x128xf32>
    %974 = arith.addf %929, %973 : vector<1x128xf32>
    %c5_720 = arith.constant 5 : index
    %c0_721 = arith.constant 0 : index
    %975 = vector.load %arg3[%c5_720, %c0_721] : memref<7x128xf32, #tpu.memory_space<vmem>>, vector<1x128xf32>
    %976 = arith.addf %975, %973 : vector<1x128xf32>
    %c5_722 = arith.constant 5 : index
    %c0_723 = arith.constant 0 : index
    %977 = vector.load %arg3[%c5_722, %c0_723] : memref<7x128xf32, #tpu.memory_space<vmem>>, vector<1x128xf32>
    tpu.vector_store %arg3[%c5_722, %c0_723], %976 {strides = array<i32>} : memref<7x128xf32, #tpu.memory_space<vmem>>, vector<1x128xf32>,
    %cst_724 = arith.constant 0.000000e+00 : f32
    %978 = vector.broadcast %cst_724 : f32 to vector<1x128xf32>
    %c3_725 = arith.constant 3 : index
    %c0_726 = arith.constant 0 : index
    %c0_727 = arith.constant 0 : index
    %979 = vector.load %arg1[%c3_725, %c0_726, %c0_727] : memref<8x32x128xf32, #tpu.memory_space<vmem>>, vector<1x8x128xf32>
    %980 = vector.shape_cast %979 : vector<1x8x128xf32> to vector<8x128xf32>
    %c7_728 = arith.constant 7 : index
    %c0_729 = arith.constant 0 : index
    %c0_730 = arith.constant 0 : index
    %981 = vector.load %arg1[%c7_728, %c0_729, %c0_730] : memref<8x32x128xf32, #tpu.memory_space<vmem>>, vector<1x8x128xf32>
    %982 = vector.shape_cast %981 : vector<1x8x128xf32> to vector<8x128xf32>
    %983 = arith.subf %980, %982 : vector<8x128xf32>
    %984 = arith.mulf %983, %983 : vector<8x128xf32>
    %cst_731 = arith.constant dense<0.000000e+00> : vector<128xf32>
    %985 = vector.multi_reduction <add>, %984, %cst_731 [0] : vector<8x128xf32> to vector<128xf32>
    %986 = vector.shape_cast %985 : vector<128xf32> to vector<1x128xf32>
    %987 = arith.addf %978, %986 : vector<1x128xf32>
    %c3_732 = arith.constant 3 : index
    %c8_733 = arith.constant 8 : index
    %c0_734 = arith.constant 0 : index
    %988 = vector.load %arg1[%c3_732, %c8_733, %c0_734] : memref<8x32x128xf32, #tpu.memory_space<vmem>>, vector<1x8x128xf32>
    %989 = vector.shape_cast %988 : vector<1x8x128xf32> to vector<8x128xf32>
    %c7_735 = arith.constant 7 : index
    %c8_736 = arith.constant 8 : index
    %c0_737 = arith.constant 0 : index
    %990 = vector.load %arg1[%c7_735, %c8_736, %c0_737] : memref<8x32x128xf32, #tpu.memory_space<vmem>>, vector<1x8x128xf32>
    %991 = vector.shape_cast %990 : vector<1x8x128xf32> to vector<8x128xf32>
    %992 = arith.subf %989, %991 : vector<8x128xf32>
    %993 = arith.mulf %992, %992 : vector<8x128xf32>
    %cst_738 = arith.constant dense<0.000000e+00> : vector<128xf32>
    %994 = vector.multi_reduction <add>, %993, %cst_738 [0] : vector<8x128xf32> to vector<128xf32>
    %995 = vector.shape_cast %994 : vector<128xf32> to vector<1x128xf32>
    %996 = arith.addf %987, %995 : vector<1x128xf32>
    %c3_739 = arith.constant 3 : index
    %c16_740 = arith.constant 16 : index
    %c0_741 = arith.constant 0 : index
    %997 = vector.load %arg1[%c3_739, %c16_740, %c0_741] : memref<8x32x128xf32, #tpu.memory_space<vmem>>, vector<1x8x128xf32>
    %998 = vector.shape_cast %997 : vector<1x8x128xf32> to vector<8x128xf32>
    %c7_742 = arith.constant 7 : index
    %c16_743 = arith.constant 16 : index
    %c0_744 = arith.constant 0 : index
    %999 = vector.load %arg1[%c7_742, %c16_743, %c0_744] : memref<8x32x128xf32, #tpu.memory_space<vmem>>, vector<1x8x128xf32>
    %1000 = vector.shape_cast %999 : vector<1x8x128xf32> to vector<8x128xf32>
    %1001 = arith.subf %998, %1000 : vector<8x128xf32>
    %1002 = arith.mulf %1001, %1001 : vector<8x128xf32>
    %cst_745 = arith.constant dense<0.000000e+00> : vector<128xf32>
    %1003 = vector.multi_reduction <add>, %1002, %cst_745 [0] : vector<8x128xf32> to vector<128xf32>
    %1004 = vector.shape_cast %1003 : vector<128xf32> to vector<1x128xf32>
    %1005 = arith.addf %996, %1004 : vector<1x128xf32>
    %c3_746 = arith.constant 3 : index
    %c24_747 = arith.constant 24 : index
    %c0_748 = arith.constant 0 : index
    %1006 = vector.load %arg1[%c3_746, %c24_747, %c0_748] : memref<8x32x128xf32, #tpu.memory_space<vmem>>, vector<1x8x128xf32>
    %1007 = vector.shape_cast %1006 : vector<1x8x128xf32> to vector<8x128xf32>
    %c7_749 = arith.constant 7 : index
    %c24_750 = arith.constant 24 : index
    %c0_751 = arith.constant 0 : index
    %1008 = vector.load %arg1[%c7_749, %c24_750, %c0_751] : memref<8x32x128xf32, #tpu.memory_space<vmem>>, vector<1x8x128xf32>
    %1009 = vector.shape_cast %1008 : vector<1x8x128xf32> to vector<8x128xf32>
    %1010 = arith.subf %1007, %1009 : vector<8x128xf32>
    %1011 = arith.mulf %1010, %1010 : vector<8x128xf32>
    %cst_752 = arith.constant dense<0.000000e+00> : vector<128xf32>
    %1012 = vector.multi_reduction <add>, %1011, %cst_752 [0] : vector<8x128xf32> to vector<128xf32>
    %1013 = vector.shape_cast %1012 : vector<128xf32> to vector<1x128xf32>
    %1014 = arith.addf %1005, %1013 : vector<1x128xf32>
    %1015 = math.sqrt %1014 : vector<1x128xf32>
    %cst_753 = arith.constant -1.000000e+00 : f32
    %1016 = vector.broadcast %cst_753 : f32 to vector<1x128xf32>
    %1017 = arith.mulf %1015, %1016 : vector<1x128xf32>
    %1018 = math.exp %1017 : vector<1x128xf32>
    %1019 = arith.addf %974, %1018 : vector<1x128xf32>
    %c6_754 = arith.constant 6 : index
    %c0_755 = arith.constant 0 : index
    %1020 = vector.load %arg3[%c6_754, %c0_755] : memref<7x128xf32, #tpu.memory_space<vmem>>, vector<1x128xf32>
    %1021 = arith.addf %1020, %1018 : vector<1x128xf32>
    %c6_756 = arith.constant 6 : index
    %c0_757 = arith.constant 0 : index
    %1022 = vector.load %arg3[%c6_756, %c0_757] : memref<7x128xf32, #tpu.memory_space<vmem>>, vector<1x128xf32>
    tpu.vector_store %arg3[%c6_756, %c0_757], %1021 {strides = array<i32>} : memref<7x128xf32, #tpu.memory_space<vmem>>, vector<1x128xf32>,
    %c2_758 = arith.constant 2 : index
    %c0_759 = arith.constant 0 : index
    %1023 = vector.load %arg3[%c2_758, %c0_759] : memref<7x128xf32, #tpu.memory_space<vmem>>, vector<1x128xf32>
    %1024 = arith.addf %1023, %1019 : vector<1x128xf32>
    %c2_760 = arith.constant 2 : index
    %c0_761 = arith.constant 0 : index
    %1025 = vector.load %arg3[%c2_760, %c0_761] : memref<7x128xf32, #tpu.memory_space<vmem>>, vector<1x128xf32>
    tpu.vector_store %arg3[%c2_760, %c0_761], %1024 {strides = array<i32>} : memref<7x128xf32, #tpu.memory_space<vmem>>, vector<1x128xf32>,
    %cst_762 = arith.constant 0.000000e+00 : f32
    %1026 = vector.broadcast %cst_762 : f32 to vector<1x128xf32>
    %cst_763 = arith.constant 0.000000e+00 : f32
    %1027 = vector.broadcast %cst_763 : f32 to vector<1x128xf32>
    %c4_764 = arith.constant 4 : index
    %c0_765 = arith.constant 0 : index
    %c0_766 = arith.constant 0 : index
    %1028 = vector.load %arg1[%c4_764, %c0_765, %c0_766] : memref<8x32x128xf32, #tpu.memory_space<vmem>>, vector<1x8x128xf32>
    %1029 = vector.shape_cast %1028 : vector<1x8x128xf32> to vector<8x128xf32>
    %c5_767 = arith.constant 5 : index
    %c0_768 = arith.constant 0 : index
    %c0_769 = arith.constant 0 : index
    %1030 = vector.load %arg1[%c5_767, %c0_768, %c0_769] : memref<8x32x128xf32, #tpu.memory_space<vmem>>, vector<1x8x128xf32>
    %1031 = vector.shape_cast %1030 : vector<1x8x128xf32> to vector<8x128xf32>
    %1032 = arith.subf %1029, %1031 : vector<8x128xf32>
    %1033 = arith.mulf %1032, %1032 : vector<8x128xf32>
    %cst_770 = arith.constant dense<0.000000e+00> : vector<128xf32>
    %1034 = vector.multi_reduction <add>, %1033, %cst_770 [0] : vector<8x128xf32> to vector<128xf32>
    %1035 = vector.shape_cast %1034 : vector<128xf32> to vector<1x128xf32>
    %1036 = arith.addf %1027, %1035 : vector<1x128xf32>
    %c4_771 = arith.constant 4 : index
    %c8_772 = arith.constant 8 : index
    %c0_773 = arith.constant 0 : index
    %1037 = vector.load %arg1[%c4_771, %c8_772, %c0_773] : memref<8x32x128xf32, #tpu.memory_space<vmem>>, vector<1x8x128xf32>
    %1038 = vector.shape_cast %1037 : vector<1x8x128xf32> to vector<8x128xf32>
    %c5_774 = arith.constant 5 : index
    %c8_775 = arith.constant 8 : index
    %c0_776 = arith.constant 0 : index
    %1039 = vector.load %arg1[%c5_774, %c8_775, %c0_776] : memref<8x32x128xf32, #tpu.memory_space<vmem>>, vector<1x8x128xf32>
    %1040 = vector.shape_cast %1039 : vector<1x8x128xf32> to vector<8x128xf32>
    %1041 = arith.subf %1038, %1040 : vector<8x128xf32>
    %1042 = arith.mulf %1041, %1041 : vector<8x128xf32>
    %cst_777 = arith.constant dense<0.000000e+00> : vector<128xf32>
    %1043 = vector.multi_reduction <add>, %1042, %cst_777 [0] : vector<8x128xf32> to vector<128xf32>
    %1044 = vector.shape_cast %1043 : vector<128xf32> to vector<1x128xf32>
    %1045 = arith.addf %1036, %1044 : vector<1x128xf32>
    %c4_778 = arith.constant 4 : index
    %c16_779 = arith.constant 16 : index
    %c0_780 = arith.constant 0 : index
    %1046 = vector.load %arg1[%c4_778, %c16_779, %c0_780] : memref<8x32x128xf32, #tpu.memory_space<vmem>>, vector<1x8x128xf32>
    %1047 = vector.shape_cast %1046 : vector<1x8x128xf32> to vector<8x128xf32>
    %c5_781 = arith.constant 5 : index
    %c16_782 = arith.constant 16 : index
    %c0_783 = arith.constant 0 : index
    %1048 = vector.load %arg1[%c5_781, %c16_782, %c0_783] : memref<8x32x128xf32, #tpu.memory_space<vmem>>, vector<1x8x128xf32>
    %1049 = vector.shape_cast %1048 : vector<1x8x128xf32> to vector<8x128xf32>
    %1050 = arith.subf %1047, %1049 : vector<8x128xf32>
    %1051 = arith.mulf %1050, %1050 : vector<8x128xf32>
    %cst_784 = arith.constant dense<0.000000e+00> : vector<128xf32>
    %1052 = vector.multi_reduction <add>, %1051, %cst_784 [0] : vector<8x128xf32> to vector<128xf32>
    %1053 = vector.shape_cast %1052 : vector<128xf32> to vector<1x128xf32>
    %1054 = arith.addf %1045, %1053 : vector<1x128xf32>
    %c4_785 = arith.constant 4 : index
    %c24_786 = arith.constant 24 : index
    %c0_787 = arith.constant 0 : index
    %1055 = vector.load %arg1[%c4_785, %c24_786, %c0_787] : memref<8x32x128xf32, #tpu.memory_space<vmem>>, vector<1x8x128xf32>
    %1056 = vector.shape_cast %1055 : vector<1x8x128xf32> to vector<8x128xf32>
    %c5_788 = arith.constant 5 : index
    %c24_789 = arith.constant 24 : index
    %c0_790 = arith.constant 0 : index
    %1057 = vector.load %arg1[%c5_788, %c24_789, %c0_790] : memref<8x32x128xf32, #tpu.memory_space<vmem>>, vector<1x8x128xf32>
    %1058 = vector.shape_cast %1057 : vector<1x8x128xf32> to vector<8x128xf32>
    %1059 = arith.subf %1056, %1058 : vector<8x128xf32>
    %1060 = arith.mulf %1059, %1059 : vector<8x128xf32>
    %cst_791 = arith.constant dense<0.000000e+00> : vector<128xf32>
    %1061 = vector.multi_reduction <add>, %1060, %cst_791 [0] : vector<8x128xf32> to vector<128xf32>
    %1062 = vector.shape_cast %1061 : vector<128xf32> to vector<1x128xf32>
    %1063 = arith.addf %1054, %1062 : vector<1x128xf32>
    %1064 = math.sqrt %1063 : vector<1x128xf32>
    %cst_792 = arith.constant -1.000000e+00 : f32
    %1065 = vector.broadcast %cst_792 : f32 to vector<1x128xf32>
    %1066 = arith.mulf %1064, %1065 : vector<1x128xf32>
    %1067 = math.exp %1066 : vector<1x128xf32>
    %1068 = arith.addf %1026, %1067 : vector<1x128xf32>
    %c4_793 = arith.constant 4 : index
    %c0_794 = arith.constant 0 : index
    %1069 = vector.load %arg3[%c4_793, %c0_794] : memref<7x128xf32, #tpu.memory_space<vmem>>, vector<1x128xf32>
    %1070 = arith.addf %1069, %1067 : vector<1x128xf32>
    %c4_795 = arith.constant 4 : index
    %c0_796 = arith.constant 0 : index
    %1071 = vector.load %arg3[%c4_795, %c0_796] : memref<7x128xf32, #tpu.memory_space<vmem>>, vector<1x128xf32>
    tpu.vector_store %arg3[%c4_795, %c0_796], %1070 {strides = array<i32>} : memref<7x128xf32, #tpu.memory_space<vmem>>, vector<1x128xf32>,
    %cst_797 = arith.constant 0.000000e+00 : f32
    %1072 = vector.broadcast %cst_797 : f32 to vector<1x128xf32>
    %c4_798 = arith.constant 4 : index
    %c0_799 = arith.constant 0 : index
    %c0_800 = arith.constant 0 : index
    %1073 = vector.load %arg1[%c4_798, %c0_799, %c0_800] : memref<8x32x128xf32, #tpu.memory_space<vmem>>, vector<1x8x128xf32>
    %1074 = vector.shape_cast %1073 : vector<1x8x128xf32> to vector<8x128xf32>
    %c6_801 = arith.constant 6 : index
    %c0_802 = arith.constant 0 : index
    %c0_803 = arith.constant 0 : index
    %1075 = vector.load %arg1[%c6_801, %c0_802, %c0_803] : memref<8x32x128xf32, #tpu.memory_space<vmem>>, vector<1x8x128xf32>
    %1076 = vector.shape_cast %1075 : vector<1x8x128xf32> to vector<8x128xf32>
    %1077 = arith.subf %1074, %1076 : vector<8x128xf32>
    %1078 = arith.mulf %1077, %1077 : vector<8x128xf32>
    %cst_804 = arith.constant dense<0.000000e+00> : vector<128xf32>
    %1079 = vector.multi_reduction <add>, %1078, %cst_804 [0] : vector<8x128xf32> to vector<128xf32>
    %1080 = vector.shape_cast %1079 : vector<128xf32> to vector<1x128xf32>
    %1081 = arith.addf %1072, %1080 : vector<1x128xf32>
    %c4_805 = arith.constant 4 : index
    %c8_806 = arith.constant 8 : index
    %c0_807 = arith.constant 0 : index
    %1082 = vector.load %arg1[%c4_805, %c8_806, %c0_807] : memref<8x32x128xf32, #tpu.memory_space<vmem>>, vector<1x8x128xf32>
    %1083 = vector.shape_cast %1082 : vector<1x8x128xf32> to vector<8x128xf32>
    %c6_808 = arith.constant 6 : index
    %c8_809 = arith.constant 8 : index
    %c0_810 = arith.constant 0 : index
    %1084 = vector.load %arg1[%c6_808, %c8_809, %c0_810] : memref<8x32x128xf32, #tpu.memory_space<vmem>>, vector<1x8x128xf32>
    %1085 = vector.shape_cast %1084 : vector<1x8x128xf32> to vector<8x128xf32>
    %1086 = arith.subf %1083, %1085 : vector<8x128xf32>
    %1087 = arith.mulf %1086, %1086 : vector<8x128xf32>
    %cst_811 = arith.constant dense<0.000000e+00> : vector<128xf32>
    %1088 = vector.multi_reduction <add>, %1087, %cst_811 [0] : vector<8x128xf32> to vector<128xf32>
    %1089 = vector.shape_cast %1088 : vector<128xf32> to vector<1x128xf32>
    %1090 = arith.addf %1081, %1089 : vector<1x128xf32>
    %c4_812 = arith.constant 4 : index
    %c16_813 = arith.constant 16 : index
    %c0_814 = arith.constant 0 : index
    %1091 = vector.load %arg1[%c4_812, %c16_813, %c0_814] : memref<8x32x128xf32, #tpu.memory_space<vmem>>, vector<1x8x128xf32>
    %1092 = vector.shape_cast %1091 : vector<1x8x128xf32> to vector<8x128xf32>
    %c6_815 = arith.constant 6 : index
    %c16_816 = arith.constant 16 : index
    %c0_817 = arith.constant 0 : index
    %1093 = vector.load %arg1[%c6_815, %c16_816, %c0_817] : memref<8x32x128xf32, #tpu.memory_space<vmem>>, vector<1x8x128xf32>
    %1094 = vector.shape_cast %1093 : vector<1x8x128xf32> to vector<8x128xf32>
    %1095 = arith.subf %1092, %1094 : vector<8x128xf32>
    %1096 = arith.mulf %1095, %1095 : vector<8x128xf32>
    %cst_818 = arith.constant dense<0.000000e+00> : vector<128xf32>
    %1097 = vector.multi_reduction <add>, %1096, %cst_818 [0] : vector<8x128xf32> to vector<128xf32>
    %1098 = vector.shape_cast %1097 : vector<128xf32> to vector<1x128xf32>
    %1099 = arith.addf %1090, %1098 : vector<1x128xf32>
    %c4_819 = arith.constant 4 : index
    %c24_820 = arith.constant 24 : index
    %c0_821 = arith.constant 0 : index
    %1100 = vector.load %arg1[%c4_819, %c24_820, %c0_821] : memref<8x32x128xf32, #tpu.memory_space<vmem>>, vector<1x8x128xf32>
    %1101 = vector.shape_cast %1100 : vector<1x8x128xf32> to vector<8x128xf32>
    %c6_822 = arith.constant 6 : index
    %c24_823 = arith.constant 24 : index
    %c0_824 = arith.constant 0 : index
    %1102 = vector.load %arg1[%c6_822, %c24_823, %c0_824] : memref<8x32x128xf32, #tpu.memory_space<vmem>>, vector<1x8x128xf32>
    %1103 = vector.shape_cast %1102 : vector<1x8x128xf32> to vector<8x128xf32>
    %1104 = arith.subf %1101, %1103 : vector<8x128xf32>
    %1105 = arith.mulf %1104, %1104 : vector<8x128xf32>
    %cst_825 = arith.constant dense<0.000000e+00> : vector<128xf32>
    %1106 = vector.multi_reduction <add>, %1105, %cst_825 [0] : vector<8x128xf32> to vector<128xf32>
    %1107 = vector.shape_cast %1106 : vector<128xf32> to vector<1x128xf32>
    %1108 = arith.addf %1099, %1107 : vector<1x128xf32>
    %1109 = math.sqrt %1108 : vector<1x128xf32>
    %cst_826 = arith.constant -1.000000e+00 : f32
    %1110 = vector.broadcast %cst_826 : f32 to vector<1x128xf32>
    %1111 = arith.mulf %1109, %1110 : vector<1x128xf32>
    %1112 = math.exp %1111 : vector<1x128xf32>
    %1113 = arith.addf %1068, %1112 : vector<1x128xf32>
    %c5_827 = arith.constant 5 : index
    %c0_828 = arith.constant 0 : index
    %1114 = vector.load %arg3[%c5_827, %c0_828] : memref<7x128xf32, #tpu.memory_space<vmem>>, vector<1x128xf32>
    %1115 = arith.addf %1114, %1112 : vector<1x128xf32>
    %c5_829 = arith.constant 5 : index
    %c0_830 = arith.constant 0 : index
    %1116 = vector.load %arg3[%c5_829, %c0_830] : memref<7x128xf32, #tpu.memory_space<vmem>>, vector<1x128xf32>
    tpu.vector_store %arg3[%c5_829, %c0_830], %1115 {strides = array<i32>} : memref<7x128xf32, #tpu.memory_space<vmem>>, vector<1x128xf32>,
    %cst_831 = arith.constant 0.000000e+00 : f32
    %1117 = vector.broadcast %cst_831 : f32 to vector<1x128xf32>
    %c4_832 = arith.constant 4 : index
    %c0_833 = arith.constant 0 : index
    %c0_834 = arith.constant 0 : index
    %1118 = vector.load %arg1[%c4_832, %c0_833, %c0_834] : memref<8x32x128xf32, #tpu.memory_space<vmem>>, vector<1x8x128xf32>
    %1119 = vector.shape_cast %1118 : vector<1x8x128xf32> to vector<8x128xf32>
    %c7_835 = arith.constant 7 : index
    %c0_836 = arith.constant 0 : index
    %c0_837 = arith.constant 0 : index
    %1120 = vector.load %arg1[%c7_835, %c0_836, %c0_837] : memref<8x32x128xf32, #tpu.memory_space<vmem>>, vector<1x8x128xf32>
    %1121 = vector.shape_cast %1120 : vector<1x8x128xf32> to vector<8x128xf32>
    %1122 = arith.subf %1119, %1121 : vector<8x128xf32>
    %1123 = arith.mulf %1122, %1122 : vector<8x128xf32>
    %cst_838 = arith.constant dense<0.000000e+00> : vector<128xf32>
    %1124 = vector.multi_reduction <add>, %1123, %cst_838 [0] : vector<8x128xf32> to vector<128xf32>
    %1125 = vector.shape_cast %1124 : vector<128xf32> to vector<1x128xf32>
    %1126 = arith.addf %1117, %1125 : vector<1x128xf32>
    %c4_839 = arith.constant 4 : index
    %c8_840 = arith.constant 8 : index
    %c0_841 = arith.constant 0 : index
    %1127 = vector.load %arg1[%c4_839, %c8_840, %c0_841] : memref<8x32x128xf32, #tpu.memory_space<vmem>>, vector<1x8x128xf32>
    %1128 = vector.shape_cast %1127 : vector<1x8x128xf32> to vector<8x128xf32>
    %c7_842 = arith.constant 7 : index
    %c8_843 = arith.constant 8 : index
    %c0_844 = arith.constant 0 : index
    %1129 = vector.load %arg1[%c7_842, %c8_843, %c0_844] : memref<8x32x128xf32, #tpu.memory_space<vmem>>, vector<1x8x128xf32>
    %1130 = vector.shape_cast %1129 : vector<1x8x128xf32> to vector<8x128xf32>
    %1131 = arith.subf %1128, %1130 : vector<8x128xf32>
    %1132 = arith.mulf %1131, %1131 : vector<8x128xf32>
    %cst_845 = arith.constant dense<0.000000e+00> : vector<128xf32>
    %1133 = vector.multi_reduction <add>, %1132, %cst_845 [0] : vector<8x128xf32> to vector<128xf32>
    %1134 = vector.shape_cast %1133 : vector<128xf32> to vector<1x128xf32>
    %1135 = arith.addf %1126, %1134 : vector<1x128xf32>
    %c4_846 = arith.constant 4 : index
    %c16_847 = arith.constant 16 : index
    %c0_848 = arith.constant 0 : index
    %1136 = vector.load %arg1[%c4_846, %c16_847, %c0_848] : memref<8x32x128xf32, #tpu.memory_space<vmem>>, vector<1x8x128xf32>
    %1137 = vector.shape_cast %1136 : vector<1x8x128xf32> to vector<8x128xf32>
    %c7_849 = arith.constant 7 : index
    %c16_850 = arith.constant 16 : index
    %c0_851 = arith.constant 0 : index
    %1138 = vector.load %arg1[%c7_849, %c16_850, %c0_851] : memref<8x32x128xf32, #tpu.memory_space<vmem>>, vector<1x8x128xf32>
    %1139 = vector.shape_cast %1138 : vector<1x8x128xf32> to vector<8x128xf32>
    %1140 = arith.subf %1137, %1139 : vector<8x128xf32>
    %1141 = arith.mulf %1140, %1140 : vector<8x128xf32>
    %cst_852 = arith.constant dense<0.000000e+00> : vector<128xf32>
    %1142 = vector.multi_reduction <add>, %1141, %cst_852 [0] : vector<8x128xf32> to vector<128xf32>
    %1143 = vector.shape_cast %1142 : vector<128xf32> to vector<1x128xf32>
    %1144 = arith.addf %1135, %1143 : vector<1x128xf32>
    %c4_853 = arith.constant 4 : index
    %c24_854 = arith.constant 24 : index
    %c0_855 = arith.constant 0 : index
    %1145 = vector.load %arg1[%c4_853, %c24_854, %c0_855] : memref<8x32x128xf32, #tpu.memory_space<vmem>>, vector<1x8x128xf32>
    %1146 = vector.shape_cast %1145 : vector<1x8x128xf32> to vector<8x128xf32>
    %c7_856 = arith.constant 7 : index
    %c24_857 = arith.constant 24 : index
    %c0_858 = arith.constant 0 : index
    %1147 = vector.load %arg1[%c7_856, %c24_857, %c0_858] : memref<8x32x128xf32, #tpu.memory_space<vmem>>, vector<1x8x128xf32>
    %1148 = vector.shape_cast %1147 : vector<1x8x128xf32> to vector<8x128xf32>
    %1149 = arith.subf %1146, %1148 : vector<8x128xf32>
    %1150 = arith.mulf %1149, %1149 : vector<8x128xf32>
    %cst_859 = arith.constant dense<0.000000e+00> : vector<128xf32>
    %1151 = vector.multi_reduction <add>, %1150, %cst_859 [0] : vector<8x128xf32> to vector<128xf32>
    %1152 = vector.shape_cast %1151 : vector<128xf32> to vector<1x128xf32>
    %1153 = arith.addf %1144, %1152 : vector<1x128xf32>
    %1154 = math.sqrt %1153 : vector<1x128xf32>
    %cst_860 = arith.constant -1.000000e+00 : f32
    %1155 = vector.broadcast %cst_860 : f32 to vector<1x128xf32>
    %1156 = arith.mulf %1154, %1155 : vector<1x128xf32>
    %1157 = math.exp %1156 : vector<1x128xf32>
    %1158 = arith.addf %1113, %1157 : vector<1x128xf32>
    %c6_861 = arith.constant 6 : index
    %c0_862 = arith.constant 0 : index
    %1159 = vector.load %arg3[%c6_861, %c0_862] : memref<7x128xf32, #tpu.memory_space<vmem>>, vector<1x128xf32>
    %1160 = arith.addf %1159, %1157 : vector<1x128xf32>
    %c6_863 = arith.constant 6 : index
    %c0_864 = arith.constant 0 : index
    %1161 = vector.load %arg3[%c6_863, %c0_864] : memref<7x128xf32, #tpu.memory_space<vmem>>, vector<1x128xf32>
    tpu.vector_store %arg3[%c6_863, %c0_864], %1160 {strides = array<i32>} : memref<7x128xf32, #tpu.memory_space<vmem>>, vector<1x128xf32>,
    %c3_865 = arith.constant 3 : index
    %c0_866 = arith.constant 0 : index
    %1162 = vector.load %arg3[%c3_865, %c0_866] : memref<7x128xf32, #tpu.memory_space<vmem>>, vector<1x128xf32>
    %1163 = arith.addf %1162, %1158 : vector<1x128xf32>
    %c3_867 = arith.constant 3 : index
    %c0_868 = arith.constant 0 : index
    %1164 = vector.load %arg3[%c3_867, %c0_868] : memref<7x128xf32, #tpu.memory_space<vmem>>, vector<1x128xf32>
    tpu.vector_store %arg3[%c3_867, %c0_868], %1163 {strides = array<i32>} : memref<7x128xf32, #tpu.memory_space<vmem>>, vector<1x128xf32>,
    %cst_869 = arith.constant 0.000000e+00 : f32
    %1165 = vector.broadcast %cst_869 : f32 to vector<1x128xf32>
    %cst_870 = arith.constant 0.000000e+00 : f32
    %1166 = vector.broadcast %cst_870 : f32 to vector<1x128xf32>
    %c5_871 = arith.constant 5 : index
    %c0_872 = arith.constant 0 : index
    %c0_873 = arith.constant 0 : index
    %1167 = vector.load %arg1[%c5_871, %c0_872, %c0_873] : memref<8x32x128xf32, #tpu.memory_space<vmem>>, vector<1x8x128xf32>
    %1168 = vector.shape_cast %1167 : vector<1x8x128xf32> to vector<8x128xf32>
    %c6_874 = arith.constant 6 : index
    %c0_875 = arith.constant 0 : index
    %c0_876 = arith.constant 0 : index
    %1169 = vector.load %arg1[%c6_874, %c0_875, %c0_876] : memref<8x32x128xf32, #tpu.memory_space<vmem>>, vector<1x8x128xf32>
    %1170 = vector.shape_cast %1169 : vector<1x8x128xf32> to vector<8x128xf32>
    %1171 = arith.subf %1168, %1170 : vector<8x128xf32>
    %1172 = arith.mulf %1171, %1171 : vector<8x128xf32>
    %cst_877 = arith.constant dense<0.000000e+00> : vector<128xf32>
    %1173 = vector.multi_reduction <add>, %1172, %cst_877 [0] : vector<8x128xf32> to vector<128xf32>
    %1174 = vector.shape_cast %1173 : vector<128xf32> to vector<1x128xf32>
    %1175 = arith.addf %1166, %1174 : vector<1x128xf32>
    %c5_878 = arith.constant 5 : index
    %c8_879 = arith.constant 8 : index
    %c0_880 = arith.constant 0 : index
    %1176 = vector.load %arg1[%c5_878, %c8_879, %c0_880] : memref<8x32x128xf32, #tpu.memory_space<vmem>>, vector<1x8x128xf32>
    %1177 = vector.shape_cast %1176 : vector<1x8x128xf32> to vector<8x128xf32>
    %c6_881 = arith.constant 6 : index
    %c8_882 = arith.constant 8 : index
    %c0_883 = arith.constant 0 : index
    %1178 = vector.load %arg1[%c6_881, %c8_882, %c0_883] : memref<8x32x128xf32, #tpu.memory_space<vmem>>, vector<1x8x128xf32>
    %1179 = vector.shape_cast %1178 : vector<1x8x128xf32> to vector<8x128xf32>
    %1180 = arith.subf %1177, %1179 : vector<8x128xf32>
    %1181 = arith.mulf %1180, %1180 : vector<8x128xf32>
    %cst_884 = arith.constant dense<0.000000e+00> : vector<128xf32>
    %1182 = vector.multi_reduction <add>, %1181, %cst_884 [0] : vector<8x128xf32> to vector<128xf32>
    %1183 = vector.shape_cast %1182 : vector<128xf32> to vector<1x128xf32>
    %1184 = arith.addf %1175, %1183 : vector<1x128xf32>
    %c5_885 = arith.constant 5 : index
    %c16_886 = arith.constant 16 : index
    %c0_887 = arith.constant 0 : index
    %1185 = vector.load %arg1[%c5_885, %c16_886, %c0_887] : memref<8x32x128xf32, #tpu.memory_space<vmem>>, vector<1x8x128xf32>
    %1186 = vector.shape_cast %1185 : vector<1x8x128xf32> to vector<8x128xf32>
    %c6_888 = arith.constant 6 : index
    %c16_889 = arith.constant 16 : index
    %c0_890 = arith.constant 0 : index
    %1187 = vector.load %arg1[%c6_888, %c16_889, %c0_890] : memref<8x32x128xf32, #tpu.memory_space<vmem>>, vector<1x8x128xf32>
    %1188 = vector.shape_cast %1187 : vector<1x8x128xf32> to vector<8x128xf32>
    %1189 = arith.subf %1186, %1188 : vector<8x128xf32>
    %1190 = arith.mulf %1189, %1189 : vector<8x128xf32>
    %cst_891 = arith.constant dense<0.000000e+00> : vector<128xf32>
    %1191 = vector.multi_reduction <add>, %1190, %cst_891 [0] : vector<8x128xf32> to vector<128xf32>
    %1192 = vector.shape_cast %1191 : vector<128xf32> to vector<1x128xf32>
    %1193 = arith.addf %1184, %1192 : vector<1x128xf32>
    %c5_892 = arith.constant 5 : index
    %c24_893 = arith.constant 24 : index
    %c0_894 = arith.constant 0 : index
    %1194 = vector.load %arg1[%c5_892, %c24_893, %c0_894] : memref<8x32x128xf32, #tpu.memory_space<vmem>>, vector<1x8x128xf32>
    %1195 = vector.shape_cast %1194 : vector<1x8x128xf32> to vector<8x128xf32>
    %c6_895 = arith.constant 6 : index
    %c24_896 = arith.constant 24 : index
    %c0_897 = arith.constant 0 : index
    %1196 = vector.load %arg1[%c6_895, %c24_896, %c0_897] : memref<8x32x128xf32, #tpu.memory_space<vmem>>, vector<1x8x128xf32>
    %1197 = vector.shape_cast %1196 : vector<1x8x128xf32> to vector<8x128xf32>
    %1198 = arith.subf %1195, %1197 : vector<8x128xf32>
    %1199 = arith.mulf %1198, %1198 : vector<8x128xf32>
    %cst_898 = arith.constant dense<0.000000e+00> : vector<128xf32>
    %1200 = vector.multi_reduction <add>, %1199, %cst_898 [0] : vector<8x128xf32> to vector<128xf32>
    %1201 = vector.shape_cast %1200 : vector<128xf32> to vector<1x128xf32>
    %1202 = arith.addf %1193, %1201 : vector<1x128xf32>
    %1203 = math.sqrt %1202 : vector<1x128xf32>
    %cst_899 = arith.constant -1.000000e+00 : f32
    %1204 = vector.broadcast %cst_899 : f32 to vector<1x128xf32>
    %1205 = arith.mulf %1203, %1204 : vector<1x128xf32>
    %1206 = math.exp %1205 : vector<1x128xf32>
    %1207 = arith.addf %1165, %1206 : vector<1x128xf32>
    %c5_900 = arith.constant 5 : index
    %c0_901 = arith.constant 0 : index
    %1208 = vector.load %arg3[%c5_900, %c0_901] : memref<7x128xf32, #tpu.memory_space<vmem>>, vector<1x128xf32>
    %1209 = arith.addf %1208, %1206 : vector<1x128xf32>
    %c5_902 = arith.constant 5 : index
    %c0_903 = arith.constant 0 : index
    %1210 = vector.load %arg3[%c5_902, %c0_903] : memref<7x128xf32, #tpu.memory_space<vmem>>, vector<1x128xf32>
    tpu.vector_store %arg3[%c5_902, %c0_903], %1209 {strides = array<i32>} : memref<7x128xf32, #tpu.memory_space<vmem>>, vector<1x128xf32>,
    %cst_904 = arith.constant 0.000000e+00 : f32
    %1211 = vector.broadcast %cst_904 : f32 to vector<1x128xf32>
    %c5_905 = arith.constant 5 : index
    %c0_906 = arith.constant 0 : index
    %c0_907 = arith.constant 0 : index
    %1212 = vector.load %arg1[%c5_905, %c0_906, %c0_907] : memref<8x32x128xf32, #tpu.memory_space<vmem>>, vector<1x8x128xf32>
    %1213 = vector.shape_cast %1212 : vector<1x8x128xf32> to vector<8x128xf32>
    %c7_908 = arith.constant 7 : index
    %c0_909 = arith.constant 0 : index
    %c0_910 = arith.constant 0 : index
    %1214 = vector.load %arg1[%c7_908, %c0_909, %c0_910] : memref<8x32x128xf32, #tpu.memory_space<vmem>>, vector<1x8x128xf32>
    %1215 = vector.shape_cast %1214 : vector<1x8x128xf32> to vector<8x128xf32>
    %1216 = arith.subf %1213, %1215 : vector<8x128xf32>
    %1217 = arith.mulf %1216, %1216 : vector<8x128xf32>
    %cst_911 = arith.constant dense<0.000000e+00> : vector<128xf32>
    %1218 = vector.multi_reduction <add>, %1217, %cst_911 [0] : vector<8x128xf32> to vector<128xf32>
    %1219 = vector.shape_cast %1218 : vector<128xf32> to vector<1x128xf32>
    %1220 = arith.addf %1211, %1219 : vector<1x128xf32>
    %c5_912 = arith.constant 5 : index
    %c8_913 = arith.constant 8 : index
    %c0_914 = arith.constant 0 : index
    %1221 = vector.load %arg1[%c5_912, %c8_913, %c0_914] : memref<8x32x128xf32, #tpu.memory_space<vmem>>, vector<1x8x128xf32>
    %1222 = vector.shape_cast %1221 : vector<1x8x128xf32> to vector<8x128xf32>
    %c7_915 = arith.constant 7 : index
    %c8_916 = arith.constant 8 : index
    %c0_917 = arith.constant 0 : index
    %1223 = vector.load %arg1[%c7_915, %c8_916, %c0_917] : memref<8x32x128xf32, #tpu.memory_space<vmem>>, vector<1x8x128xf32>
    %1224 = vector.shape_cast %1223 : vector<1x8x128xf32> to vector<8x128xf32>
    %1225 = arith.subf %1222, %1224 : vector<8x128xf32>
    %1226 = arith.mulf %1225, %1225 : vector<8x128xf32>
    %cst_918 = arith.constant dense<0.000000e+00> : vector<128xf32>
    %1227 = vector.multi_reduction <add>, %1226, %cst_918 [0] : vector<8x128xf32> to vector<128xf32>
    %1228 = vector.shape_cast %1227 : vector<128xf32> to vector<1x128xf32>
    %1229 = arith.addf %1220, %1228 : vector<1x128xf32>
    %c5_919 = arith.constant 5 : index
    %c16_920 = arith.constant 16 : index
    %c0_921 = arith.constant 0 : index
    %1230 = vector.load %arg1[%c5_919, %c16_920, %c0_921] : memref<8x32x128xf32, #tpu.memory_space<vmem>>, vector<1x8x128xf32>
    %1231 = vector.shape_cast %1230 : vector<1x8x128xf32> to vector<8x128xf32>
    %c7_922 = arith.constant 7 : index
    %c16_923 = arith.constant 16 : index
    %c0_924 = arith.constant 0 : index
    %1232 = vector.load %arg1[%c7_922, %c16_923, %c0_924] : memref<8x32x128xf32, #tpu.memory_space<vmem>>, vector<1x8x128xf32>
    %1233 = vector.shape_cast %1232 : vector<1x8x128xf32> to vector<8x128xf32>
    %1234 = arith.subf %1231, %1233 : vector<8x128xf32>
    %1235 = arith.mulf %1234, %1234 : vector<8x128xf32>
    %cst_925 = arith.constant dense<0.000000e+00> : vector<128xf32>
    %1236 = vector.multi_reduction <add>, %1235, %cst_925 [0] : vector<8x128xf32> to vector<128xf32>
    %1237 = vector.shape_cast %1236 : vector<128xf32> to vector<1x128xf32>
    %1238 = arith.addf %1229, %1237 : vector<1x128xf32>
    %c5_926 = arith.constant 5 : index
    %c24_927 = arith.constant 24 : index
    %c0_928 = arith.constant 0 : index
    %1239 = vector.load %arg1[%c5_926, %c24_927, %c0_928] : memref<8x32x128xf32, #tpu.memory_space<vmem>>, vector<1x8x128xf32>
    %1240 = vector.shape_cast %1239 : vector<1x8x128xf32> to vector<8x128xf32>
    %c7_929 = arith.constant 7 : index
    %c24_930 = arith.constant 24 : index
    %c0_931 = arith.constant 0 : index
    %1241 = vector.load %arg1[%c7_929, %c24_930, %c0_931] : memref<8x32x128xf32, #tpu.memory_space<vmem>>, vector<1x8x128xf32>
    %1242 = vector.shape_cast %1241 : vector<1x8x128xf32> to vector<8x128xf32>
    %1243 = arith.subf %1240, %1242 : vector<8x128xf32>
    %1244 = arith.mulf %1243, %1243 : vector<8x128xf32>
    %cst_932 = arith.constant dense<0.000000e+00> : vector<128xf32>
    %1245 = vector.multi_reduction <add>, %1244, %cst_932 [0] : vector<8x128xf32> to vector<128xf32>
    %1246 = vector.shape_cast %1245 : vector<128xf32> to vector<1x128xf32>
    %1247 = arith.addf %1238, %1246 : vector<1x128xf32>
    %1248 = math.sqrt %1247 : vector<1x128xf32>
    %cst_933 = arith.constant -1.000000e+00 : f32
    %1249 = vector.broadcast %cst_933 : f32 to vector<1x128xf32>
    %1250 = arith.mulf %1248, %1249 : vector<1x128xf32>
    %1251 = math.exp %1250 : vector<1x128xf32>
    %1252 = arith.addf %1207, %1251 : vector<1x128xf32>
    %c6_934 = arith.constant 6 : index
    %c0_935 = arith.constant 0 : index
    %1253 = vector.load %arg3[%c6_934, %c0_935] : memref<7x128xf32, #tpu.memory_space<vmem>>, vector<1x128xf32>
    %1254 = arith.addf %1253, %1251 : vector<1x128xf32>
    %c6_936 = arith.constant 6 : index
    %c0_937 = arith.constant 0 : index
    %1255 = vector.load %arg3[%c6_936, %c0_937] : memref<7x128xf32, #tpu.memory_space<vmem>>, vector<1x128xf32>
    tpu.vector_store %arg3[%c6_936, %c0_937], %1254 {strides = array<i32>} : memref<7x128xf32, #tpu.memory_space<vmem>>, vector<1x128xf32>,
    %c4_938 = arith.constant 4 : index
    %c0_939 = arith.constant 0 : index
    %1256 = vector.load %arg3[%c4_938, %c0_939] : memref<7x128xf32, #tpu.memory_space<vmem>>, vector<1x128xf32>
    %1257 = arith.addf %1256, %1252 : vector<1x128xf32>
    %c4_940 = arith.constant 4 : index
    %c0_941 = arith.constant 0 : index
    %1258 = vector.load %arg3[%c4_940, %c0_941] : memref<7x128xf32, #tpu.memory_space<vmem>>, vector<1x128xf32>
    tpu.vector_store %arg3[%c4_940, %c0_941], %1257 {strides = array<i32>} : memref<7x128xf32, #tpu.memory_space<vmem>>, vector<1x128xf32>,
    %cst_942 = arith.constant 0.000000e+00 : f32
    %1259 = vector.broadcast %cst_942 : f32 to vector<1x128xf32>
    %cst_943 = arith.constant 0.000000e+00 : f32
    %1260 = vector.broadcast %cst_943 : f32 to vector<1x128xf32>
    %c6_944 = arith.constant 6 : index
    %c0_945 = arith.constant 0 : index
    %c0_946 = arith.constant 0 : index
    %1261 = vector.load %arg1[%c6_944, %c0_945, %c0_946] : memref<8x32x128xf32, #tpu.memory_space<vmem>>, vector<1x8x128xf32>
    %1262 = vector.shape_cast %1261 : vector<1x8x128xf32> to vector<8x128xf32>
    %c7_947 = arith.constant 7 : index
    %c0_948 = arith.constant 0 : index
    %c0_949 = arith.constant 0 : index
    %1263 = vector.load %arg1[%c7_947, %c0_948, %c0_949] : memref<8x32x128xf32, #tpu.memory_space<vmem>>, vector<1x8x128xf32>
    %1264 = vector.shape_cast %1263 : vector<1x8x128xf32> to vector<8x128xf32>
    %1265 = arith.subf %1262, %1264 : vector<8x128xf32>
    %1266 = arith.mulf %1265, %1265 : vector<8x128xf32>
    %cst_950 = arith.constant dense<0.000000e+00> : vector<128xf32>
    %1267 = vector.multi_reduction <add>, %1266, %cst_950 [0] : vector<8x128xf32> to vector<128xf32>
    %1268 = vector.shape_cast %1267 : vector<128xf32> to vector<1x128xf32>
    %1269 = arith.addf %1260, %1268 : vector<1x128xf32>
    %c6_951 = arith.constant 6 : index
    %c8_952 = arith.constant 8 : index
    %c0_953 = arith.constant 0 : index
    %1270 = vector.load %arg1[%c6_951, %c8_952, %c0_953] : memref<8x32x128xf32, #tpu.memory_space<vmem>>, vector<1x8x128xf32>
    %1271 = vector.shape_cast %1270 : vector<1x8x128xf32> to vector<8x128xf32>
    %c7_954 = arith.constant 7 : index
    %c8_955 = arith.constant 8 : index
    %c0_956 = arith.constant 0 : index
    %1272 = vector.load %arg1[%c7_954, %c8_955, %c0_956] : memref<8x32x128xf32, #tpu.memory_space<vmem>>, vector<1x8x128xf32>
    %1273 = vector.shape_cast %1272 : vector<1x8x128xf32> to vector<8x128xf32>
    %1274 = arith.subf %1271, %1273 : vector<8x128xf32>
    %1275 = arith.mulf %1274, %1274 : vector<8x128xf32>
    %cst_957 = arith.constant dense<0.000000e+00> : vector<128xf32>
    %1276 = vector.multi_reduction <add>, %1275, %cst_957 [0] : vector<8x128xf32> to vector<128xf32>
    %1277 = vector.shape_cast %1276 : vector<128xf32> to vector<1x128xf32>
    %1278 = arith.addf %1269, %1277 : vector<1x128xf32>
    %c6_958 = arith.constant 6 : index
    %c16_959 = arith.constant 16 : index
    %c0_960 = arith.constant 0 : index
    %1279 = vector.load %arg1[%c6_958, %c16_959, %c0_960] : memref<8x32x128xf32, #tpu.memory_space<vmem>>, vector<1x8x128xf32>
    %1280 = vector.shape_cast %1279 : vector<1x8x128xf32> to vector<8x128xf32>
    %c7_961 = arith.constant 7 : index
    %c16_962 = arith.constant 16 : index
    %c0_963 = arith.constant 0 : index
    %1281 = vector.load %arg1[%c7_961, %c16_962, %c0_963] : memref<8x32x128xf32, #tpu.memory_space<vmem>>, vector<1x8x128xf32>
    %1282 = vector.shape_cast %1281 : vector<1x8x128xf32> to vector<8x128xf32>
    %1283 = arith.subf %1280, %1282 : vector<8x128xf32>
    %1284 = arith.mulf %1283, %1283 : vector<8x128xf32>
    %cst_964 = arith.constant dense<0.000000e+00> : vector<128xf32>
    %1285 = vector.multi_reduction <add>, %1284, %cst_964 [0] : vector<8x128xf32> to vector<128xf32>
    %1286 = vector.shape_cast %1285 : vector<128xf32> to vector<1x128xf32>
    %1287 = arith.addf %1278, %1286 : vector<1x128xf32>
    %c6_965 = arith.constant 6 : index
    %c24_966 = arith.constant 24 : index
    %c0_967 = arith.constant 0 : index
    %1288 = vector.load %arg1[%c6_965, %c24_966, %c0_967] : memref<8x32x128xf32, #tpu.memory_space<vmem>>, vector<1x8x128xf32>
    %1289 = vector.shape_cast %1288 : vector<1x8x128xf32> to vector<8x128xf32>
    %c7_968 = arith.constant 7 : index
    %c24_969 = arith.constant 24 : index
    %c0_970 = arith.constant 0 : index
    %1290 = vector.load %arg1[%c7_968, %c24_969, %c0_970] : memref<8x32x128xf32, #tpu.memory_space<vmem>>, vector<1x8x128xf32>
    %1291 = vector.shape_cast %1290 : vector<1x8x128xf32> to vector<8x128xf32>
    %1292 = arith.subf %1289, %1291 : vector<8x128xf32>
    %1293 = arith.mulf %1292, %1292 : vector<8x128xf32>
    %cst_971 = arith.constant dense<0.000000e+00> : vector<128xf32>
    %1294 = vector.multi_reduction <add>, %1293, %cst_971 [0] : vector<8x128xf32> to vector<128xf32>
    %1295 = vector.shape_cast %1294 : vector<128xf32> to vector<1x128xf32>
    %1296 = arith.addf %1287, %1295 : vector<1x128xf32>
    %1297 = math.sqrt %1296 : vector<1x128xf32>
    %cst_972 = arith.constant -1.000000e+00 : f32
    %1298 = vector.broadcast %cst_972 : f32 to vector<1x128xf32>
    %1299 = arith.mulf %1297, %1298 : vector<1x128xf32>
    %1300 = math.exp %1299 : vector<1x128xf32>
    %1301 = arith.addf %1259, %1300 : vector<1x128xf32>
    %c6_973 = arith.constant 6 : index
    %c0_974 = arith.constant 0 : index
    %1302 = vector.load %arg3[%c6_973, %c0_974] : memref<7x128xf32, #tpu.memory_space<vmem>>, vector<1x128xf32>
    %1303 = arith.addf %1302, %1300 : vector<1x128xf32>
    %c6_975 = arith.constant 6 : index
    %c0_976 = arith.constant 0 : index
    %1304 = vector.load %arg3[%c6_975, %c0_976] : memref<7x128xf32, #tpu.memory_space<vmem>>, vector<1x128xf32>
    tpu.vector_store %arg3[%c6_975, %c0_976], %1303 {strides = array<i32>} : memref<7x128xf32, #tpu.memory_space<vmem>>, vector<1x128xf32>,
    %c5_977 = arith.constant 5 : index
    %c0_978 = arith.constant 0 : index
    %1305 = vector.load %arg3[%c5_977, %c0_978] : memref<7x128xf32, #tpu.memory_space<vmem>>, vector<1x128xf32>
    %1306 = arith.addf %1305, %1301 : vector<1x128xf32>
    %c5_979 = arith.constant 5 : index
    %c0_980 = arith.constant 0 : index
    %1307 = vector.load %arg3[%c5_979, %c0_980] : memref<7x128xf32, #tpu.memory_space<vmem>>, vector<1x128xf32>
    tpu.vector_store %arg3[%c5_979, %c0_980], %1306 {strides = array<i32>} : memref<7x128xf32, #tpu.memory_space<vmem>>, vector<1x128xf32>,
    %c0_981 = arith.constant 0 : index
    %c0_982 = arith.constant 0 : index
    %1308 = vector.load %arg3[%c0_981, %c0_982] : memref<7x128xf32, #tpu.memory_space<vmem>>, vector<7x128xf32>
    %cst_983 = arith.constant 7.000000e+00 : f32
    %cst_984 = arith.constant 9.99999993E-9 : f32
    %1309 = arith.mulf %cst_983, %cst_984 : f32
    %1310 = vector.broadcast %1309 : f32 to vector<7x128xf32>
    %1311 = arith.addf %1308, %1310 : vector<7x128xf32>
    %1312 = math.log %1311 : vector<7x128xf32>
    %cst_985 = arith.constant dense<0.000000e+00> : vector<128xf32>
    %1313 = vector.multi_reduction <add>, %1312, %cst_985 [0] : vector<7x128xf32> to vector<128xf32>
    %1314 = vector.shape_cast %1313 : vector<128xf32> to vector<1x128xf32>
    %1315 = arith.subf %1314, %338 : vector<1x128xf32>
    %cst_986 = arith.constant 0.07341405 : f32
    %1316 = vector.broadcast %cst_986 : f32 to vector<1x128xf32>
    %1317 = arith.mulf %1315, %1316 : vector<1x128xf32>
    %c0_987 = arith.constant 0 : index
    %c0_988 = arith.constant 0 : index
    %1318 = vector.load %arg2[%c0_987, %c0_988] : memref<1x128xf32, #tpu.memory_space<vmem>>, vector<1x128xf32>
    tpu.vector_store %arg2[%c0_987, %c0_988], %1317 {strides = array<i32>} : memref<1x128xf32, #tpu.memory_space<vmem>>, vector<1x128xf32>,
    return
  }
  func.func @transform_0(%arg0: i32) -> (i32, i32, i32) {
    %c0_i32 = arith.constant 0 : i32
    %c0_i32_0 = arith.constant 0 : i32
    %c0_i32_1 = arith.constant 0 : i32
    return %c0_i32, %c0_i32_0, %arg0 : i32, i32, i32
  }
  func.func @transform_1(%arg0: i32) -> (i32, i32) {
    %c0_i32 = arith.constant 0 : i32
    %c0_i32_0 = arith.constant 0 : i32
    return %c0_i32, %arg0 : i32, i32
  }
}

</mosaic_0001>

<llo_original>
// kernel: tpu_custom_call.1
$region0: #{tpu_custom_call.1}
  #allocation0 [shape = 'u32[]', space=smem, size = 0x4, offset = 0x4, fixed_abs, tag = 'smem constant byte address 0x4 - core index']
  #allocation1 [shape = 'u32[144,128]{1,0:T(1,128)}', space=vmem, size = 0x12000, scoped, tag = 'internal scratch']
  #allocation2 [shape = 'f32[7,128]{1,0:T(8,128)}', space=vmem, size = 0x1000, scoped, tag = 'scratch operand']
  %s0 = inlined_call_operand.hbm [shape: f32[8,32,128], index: 0, kind: input, shape index: {}]
  %s1 = inlined_call_operand.hbm [shape: f32[1,128], index: 1, kind: output, shape index: {}]
  %s2 = sld [smem:[#allocation0]]
  $region18: #{tpu_custom_call.1} parent=0
    _
  %s4 = ssub.s32 1, %s2
  %s5 = scalar_select 0, %s4, %s2
  $region1: #{tpu_custom_call.1} parent=0
    #allocation3 [shape = 'u8[131072]{0}', space=vmem, size = 0x20000, scoped, tag = 'input window, operand 0, single buffered']
    #allocation4 [shape = 's32[1]{0}', space=sflag, size = 0x4, scoped, tag = 'scoped memory for tpu_custom_call.1']
    #allocation5 [shape = 's32[1]{0}', space=sflag, size = 0x4, scoped, tag = 'scoped memory for tpu_custom_call.1']
    #allocation6 [shape = 'u8[512]{0}', space=vmem, size = 0x400, scoped, tag = 'output window, operand 0, single buffered']
    %6 = vsyncpa [#allocation4], 0
    %7 = vsyncpa [#allocation5], 0
    // Predicated region
    $region2: #{tpu_custom_call.1} parent=1 // pred_check
      _
    $region3: #{tpu_custom_call.1} parent=1 // pred_check_branch
      %9 = sbr.rel (0) target = $region5
    $region4: #{tpu_custom_call.1} parent=1 // pred_region
      %s11 = ssub.s32 4096, 4096
      %12 = vsyncadd [#allocation4], %s11
      %s13 = sshll.u32 [#allocation3], 4
      %s14 = int_to_ptr.vmem [resolvable:$true] %s13
      %19 = dma.hbm_to_vmem [thread:$0]  %s0, 4096, %s14, [#allocation4], 128, 128, 8
    $region5: #{tpu_custom_call.1} parent=1 // pred_fallthru
      _
    // Predicated region
    $region6: #{tpu_custom_call.1} parent=1 // pred_check
      _
    $region7: #{tpu_custom_call.1} parent=1 // pred_check_branch
      %21 = sbr.rel (0) target = $region9
    $region8: #{tpu_custom_call.1} parent=1 // pred_region
      %22 = dma.done [#allocation4], 4096
    $region9: #{tpu_custom_call.1} parent=1 // pred_fallthru
      _
    %23 = vst [vmem:[#allocation2] sm:$0x7f] 0.0
    %v24 = vld [vmem:[#allocation3] sm:$0xff]
    %s25 = scalar_lea.vmem [#allocation3], 32
    %v26 = vld [vmem:[%s25] sm:$0xff]
    %v27 = vsub.f32 %v24, %v26
    %v28 = vmul.f32 %v27, %v27
    %v29 = vrot.slane %v28, 4
    %v30 = vadd.f32 %v28, %v29
    %v31 = vrot.slane %v30, 2
    %v32 = vadd.f32 %v30, %v31
    %v33 = vrot.slane %v32, 1
    %v34 = vadd.f32 %v32, %v33
    %v35 = vadd.f32 %v34, 0.0
    %v36 = vld [vmem:[#allocation3 + $0x8] sm:$0xff]
    %v37 = vld [vmem:[%s25 + $0x8] sm:$0xff]
    %v38 = vsub.f32 %v36, %v37
    %v39 = vmul.f32 %v38, %v38
    %v40 = vrot.slane %v39, 4
    %v41 = vadd.f32 %v39, %v40
    %v42 = vrot.slane %v41, 2
    %v43 = vadd.f32 %v41, %v42
    %v44 = vrot.slane %v43, 1
    %v45 = vadd.f32 %v43, %v44
    %v46 = vadd.f32 %v35, %v45
    %v47 = vld [vmem:[#allocation3 + $0x10] sm:$0xff]
    %v48 = vld [vmem:[%s25 + $0x10] sm:$0xff]
    %v49 = vsub.f32 %v47, %v48
    %v50 = vmul.f32 %v49, %v49
    %v51 = vrot.slane %v50, 4
    %v52 = vadd.f32 %v50, %v51
    %v53 = vrot.slane %v52, 2
    %v54 = vadd.f32 %v52, %v53
    %v55 = vrot.slane %v54, 1
    %v56 = vadd.f32 %v54, %v55
    %v57 = vadd.f32 %v46, %v56
    %v58 = vld [vmem:[#allocation3 + $0x18] sm:$0xff]
    %v59 = vld [vmem:[%s25 + $0x18] sm:$0xff]
    %v60 = vsub.f32 %v58, %v59
    %v61 = vmul.f32 %v60, %v60
    %v62 = vrot.slane %v61, 4
    %v63 = vadd.f32 %v61, %v62
    %v64 = vrot.slane %v63, 2
    %v65 = vadd.f32 %v63, %v64
    %v66 = vrot.slane %v65, 1
    %v67 = vadd.f32 %v65, %v66
    %v68 = vadd.f32 %v57, %v67
    %v69 = vrsqrt.pop %v68
    %v70 = vmul.f32 %v68, %v69
    %vm71 = vcmp.eq.f32.partialorder %v68, inf
    %v72 = vsel %vm71, %v68, %v70
    %vm73 = vcmp.eq.f32.partialorder %v68, 0.0
    %v74 = vand.u32 %v68, 2147483648
    %v75 = vsel %vm73, %v74, %v72
    %v76 = vmul.f32 %v75, -1.0
    %v77 = vmul.f32 %v76, 1.442695
    %v78 = vpow.pop %v77
    %v79 = vld [vmem:[#allocation2] sm:$0x1]
    %v80 = vadd.f32 %v79, %v78
    %81 = vst [vmem:[#allocation2] sm:$0x1] %v80
    %v82 = vadd.f32 %v78, 1e-08
    %v83 = vlog2.pop %v82
    %v84 = vmul.f32 %v83, 0.6931472
    %v85 = vadd.f32 %v84, 0.0
    %v86 = vld [vmem:[#allocation3] sm:$0xff]
    %s87 = scalar_lea.vmem [#allocation3], 64
    %v88 = vld [vmem:[%s87] sm:$0xff]
    %v89 = vsub.f32 %v86, %v88
    %v90 = vmul.f32 %v89, %v89
    %v91 = vrot.slane %v90, 4
    %v92 = vadd.f32 %v90, %v91
    %v93 = vrot.slane %v92, 2
    %v94 = vadd.f32 %v92, %v93
    %v95 = vrot.slane %v94, 1
    %v96 = vadd.f32 %v94, %v95
    %v97 = vadd.f32 %v96, 0.0
    %v98 = vld [vmem:[#allocation3 + $0x8] sm:$0xff]
    %v99 = vld [vmem:[%s87 + $0x8] sm:$0xff]
    %v100 = vsub.f32 %v98, %v99
    %v101 = vmul.f32 %v100, %v100
    %v102 = vrot.slane %v101, 4
    %v103 = vadd.f32 %v101, %v102
    %v104 = vrot.slane %v103, 2
    %v105 = vadd.f32 %v103, %v104
    %v106 = vrot.slane %v105, 1
    %v107 = vadd.f32 %v105, %v106
    %v108 = vadd.f32 %v97, %v107
    %v109 = vld [vmem:[#allocation3 + $0x10] sm:$0xff]
    %v110 = vld [vmem:[%s87 + $0x10] sm:$0xff]
    %v111 = vsub.f32 %v109, %v110
    %v112 = vmul.f32 %v111, %v111
    %v113 = vrot.slane %v112, 4
    %v114 = vadd.f32 %v112, %v113
    %v115 = vrot.slane %v114, 2
    %v116 = vadd.f32 %v114, %v115
    %v117 = vrot.slane %v116, 1
    %v118 = vadd.f32 %v116, %v117
    %v119 = vadd.f32 %v108, %v118
    %v120 = vld [vmem:[#allocation3 + $0x18] sm:$0xff]
    %v121 = vld [vmem:[%s87 + $0x18] sm:$0xff]
    %v122 = vsub.f32 %v120, %v121
    %v123 = vmul.f32 %v122, %v122
    %v124 = vrot.slane %v123, 4
    %v125 = vadd.f32 %v123, %v124
    %v126 = vrot.slane %v125, 2
    %v127 = vadd.f32 %v125, %v126
    %v128 = vrot.slane %v127, 1
    %v129 = vadd.f32 %v127, %v128
    %v130 = vadd.f32 %v119, %v129
    %v131 = vrsqrt.pop %v130
    %v132 = vmul.f32 %v130, %v131
    %vm133 = vcmp.eq.f32.partialorder %v130, inf
    %v134 = vsel %vm133, %v130, %v132
    %vm135 = vcmp.eq.f32.partialorder %v130, 0.0
    %v136 = vand.u32 %v130, 2147483648
    %v137 = vsel %vm135, %v136, %v134
    %v138 = vmul.f32 %v137, -1.0
    %v139 = vmul.f32 %v138, 1.442695
    %v140 = vpow.pop %v139
    %v141 = vld [vmem:[#allocation2 + $0x1] sm:$0x1]
    %v142 = vadd.f32 %v141, %v140
    %143 = vst [vmem:[#allocation2 + $0x1] sm:$0x1] %v142
    %v144 = vadd.f32 %v140, 1e-08
    %v145 = vlog2.pop %v144
    %v146 = vmul.f32 %v145, 0.6931472
    %v147 = vadd.f32 %v85, %v146
    %v148 = vld [vmem:[#allocation3] sm:$0xff]
    %s149 = scalar_lea.vmem [#allocation3], 96
    %v150 = vld [vmem:[%s149] sm:$0xff]
    %v151 = vsub.f32 %v148, %v150
    %v152 = vmul.f32 %v151, %v151
    %v153 = vrot.slane %v152, 4
    %v154 = vadd.f32 %v152, %v153
    %v155 = vrot.slane %v154, 2
    %v156 = vadd.f32 %v154, %v155
    %v157 = vrot.slane %v156, 1
    %v158 = vadd.f32 %v156, %v157
    %v159 = vadd.f32 %v158, 0.0
    %v160 = vld [vmem:[#allocation3 + $0x8] sm:$0xff]
    %v161 = vld [vmem:[%s149 + $0x8] sm:$0xff]
    %v162 = vsub.f32 %v160, %v161
    %v163 = vmul.f32 %v162, %v162
    %v164 = vrot.slane %v163, 4
    %v165 = vadd.f32 %v163, %v164
    %v166 = vrot.slane %v165, 2
    %v167 = vadd.f32 %v165, %v166
    %v168 = vrot.slane %v167, 1
    %v169 = vadd.f32 %v167, %v168
    %v170 = vadd.f32 %v159, %v169
    %v171 = vld [vmem:[#allocation3 + $0x10] sm:$0xff]
    %v172 = vld [vmem:[%s149 + $0x10] sm:$0xff]
    %v173 = vsub.f32 %v171, %v172
    %v174 = vmul.f32 %v173, %v173
    %v175 = vrot.slane %v174, 4
    %v176 = vadd.f32 %v174, %v175
    %v177 = vrot.slane %v176, 2
    %v178 = vadd.f32 %v176, %v177
    %v179 = vrot.slane %v178, 1
    %v180 = vadd.f32 %v178, %v179
    %v181 = vadd.f32 %v170, %v180
    %v182 = vld [vmem:[#allocation3 + $0x18] sm:$0xff]
    %v183 = vld [vmem:[%s149 + $0x18] sm:$0xff]
    %v184 = vsub.f32 %v182, %v183
    %v185 = vmul.f32 %v184, %v184
    %v186 = vrot.slane %v185, 4
    %v187 = vadd.f32 %v185, %v186
    %v188 = vrot.slane %v187, 2
    %v189 = vadd.f32 %v187, %v188
    %v190 = vrot.slane %v189, 1
    %v191 = vadd.f32 %v189, %v190
    %v192 = vadd.f32 %v181, %v191
    %v193 = vrsqrt.pop %v192
    %v194 = vmul.f32 %v192, %v193
    %vm195 = vcmp.eq.f32.partialorder %v192, inf
    %v196 = vsel %vm195, %v192, %v194
    %vm197 = vcmp.eq.f32.partialorder %v192, 0.0
    %v198 = vand.u32 %v192, 2147483648
    %v199 = vsel %vm197, %v198, %v196
    %v200 = vmul.f32 %v199, -1.0
    %v201 = vmul.f32 %v200, 1.442695
    %v202 = vpow.pop %v201
    %v203 = vld [vmem:[#allocation2 + $0x2] sm:$0x1]
    %v204 = vadd.f32 %v203, %v202
    %205 = vst [vmem:[#allocation2 + $0x2] sm:$0x1] %v204
    %v206 = vadd.f32 %v202, 1e-08
    %v207 = vlog2.pop %v206
    %v208 = vmul.f32 %v207, 0.6931472
    %v209 = vadd.f32 %v147, %v208
    %v210 = vld [vmem:[#allocation3] sm:$0xff]
    %s211 = scalar_lea.vmem [#allocation3], 128
    %v212 = vld [vmem:[%s211] sm:$0xff]
    %v213 = vsub.f32 %v210, %v212
    %v214 = vmul.f32 %v213, %v213
    %v215 = vrot.slane %v214, 4
    %v216 = vadd.f32 %v214, %v215
    %v217 = vrot.slane %v216, 2
    %v218 = vadd.f32 %v216, %v217
    %v219 = vrot.slane %v218, 1
    %v220 = vadd.f32 %v218, %v219
    %v221 = vadd.f32 %v220, 0.0
    %v222 = vld [vmem:[#allocation3 + $0x8] sm:$0xff]
    %v223 = vld [vmem:[%s211 + $0x8] sm:$0xff]
    %v224 = vsub.f32 %v222, %v223
    %v225 = vmul.f32 %v224, %v224
    %v226 = vrot.slane %v225, 4
    %v227 = vadd.f32 %v225, %v226
    %v228 = vrot.slane %v227, 2
    %v229 = vadd.f32 %v227, %v228
    %v230 = vrot.slane %v229, 1
    %v231 = vadd.f32 %v229, %v230
    %v232 = vadd.f32 %v221, %v231
    %v233 = vld [vmem:[#allocation3 + $0x10] sm:$0xff]
    %v234 = vld [vmem:[%s211 + $0x10] sm:$0xff]
    %v235 = vsub.f32 %v233, %v234
    %v236 = vmul.f32 %v235, %v235
    %v237 = vrot.slane %v236, 4
    %v238 = vadd.f32 %v236, %v237
    %v239 = vrot.slane %v238, 2
    %v240 = vadd.f32 %v238, %v239
    %v241 = vrot.slane %v240, 1
    %v242 = vadd.f32 %v240, %v241
    %v243 = vadd.f32 %v232, %v242
    %v244 = vld [vmem:[#allocation3 + $0x18] sm:$0xff]
    %v245 = vld [vmem:[%s211 + $0x18] sm:$0xff]
    %v246 = vsub.f32 %v244, %v245
    %v247 = vmul.f32 %v246, %v246
    %v248 = vrot.slane %v247, 4
    %v249 = vadd.f32 %v247, %v248
    %v250 = vrot.slane %v249, 2
    %v251 = vadd.f32 %v249, %v250
    %v252 = vrot.slane %v251, 1
    %v253 = vadd.f32 %v251, %v252
    %v254 = vadd.f32 %v243, %v253
    %v255 = vrsqrt.pop %v254
    %v256 = vmul.f32 %v254, %v255
    %vm257 = vcmp.eq.f32.partialorder %v254, inf
    %v258 = vsel %vm257, %v254, %v256
    %vm259 = vcmp.eq.f32.partialorder %v254, 0.0
    %v260 = vand.u32 %v254, 2147483648
    %v261 = vsel %vm259, %v260, %v258
    %v262 = vmul.f32 %v261, -1.0
    %v263 = vmul.f32 %v262, 1.442695
    %v264 = vpow.pop %v263
    %v265 = vld [vmem:[#allocation2 + $0x3] sm:$0x1]
    %v266 = vadd.f32 %v265, %v264
    %267 = vst [vmem:[#allocation2 + $0x3] sm:$0x1] %v266
    %v268 = vadd.f32 %v264, 1e-08
    %v269 = vlog2.pop %v268
    %v270 = vmul.f32 %v269, 0.6931472
    %v271 = vadd.f32 %v209, %v270
    %v272 = vld [vmem:[#allocation3] sm:$0xff]
    %s273 = scalar_lea.vmem [#allocation3], 160
    %v274 = vld [vmem:[%s273] sm:$0xff]
    %v275 = vsub.f32 %v272, %v274
    %v276 = vmul.f32 %v275, %v275
    %v277 = vrot.slane %v276, 4
    %v278 = vadd.f32 %v276, %v277
    %v279 = vrot.slane %v278, 2
    %v280 = vadd.f32 %v278, %v279
    %v281 = vrot.slane %v280, 1
    %v282 = vadd.f32 %v280, %v281
    %v283 = vadd.f32 %v282, 0.0
    %v284 = vld [vmem:[#allocation3 + $0x8] sm:$0xff]
    %v285 = vld [vmem:[%s273 + $0x8] sm:$0xff]
    %v286 = vsub.f32 %v284, %v285
    %v287 = vmul.f32 %v286, %v286
    %v288 = vrot.slane %v287, 4
    %v289 = vadd.f32 %v287, %v288
    %v290 = vrot.slane %v289, 2
    %v291 = vadd.f32 %v289, %v290
    %v292 = vrot.slane %v291, 1
    %v293 = vadd.f32 %v291, %v292
    %v294 = vadd.f32 %v283, %v293
    %v295 = vld [vmem:[#allocation3 + $0x10] sm:$0xff]
    %v296 = vld [vmem:[%s273 + $0x10] sm:$0xff]
    %v297 = vsub.f32 %v295, %v296
    %v298 = vmul.f32 %v297, %v297
    %v299 = vrot.slane %v298, 4
    %v300 = vadd.f32 %v298, %v299
    %v301 = vrot.slane %v300, 2
    %v302 = vadd.f32 %v300, %v301
    %v303 = vrot.slane %v302, 1
    %v304 = vadd.f32 %v302, %v303
    %v305 = vadd.f32 %v294, %v304
    %v306 = vld [vmem:[#allocation3 + $0x18] sm:$0xff]
    %v307 = vld [vmem:[%s273 + $0x18] sm:$0xff]
    %v308 = vsub.f32 %v306, %v307
    %v309 = vmul.f32 %v308, %v308
    %v310 = vrot.slane %v309, 4
    %v311 = vadd.f32 %v309, %v310
    %v312 = vrot.slane %v311, 2
    %v313 = vadd.f32 %v311, %v312
    %v314 = vrot.slane %v313, 1
    %v315 = vadd.f32 %v313, %v314
    %v316 = vadd.f32 %v305, %v315
    %v317 = vrsqrt.pop %v316
    %v318 = vmul.f32 %v316, %v317
    %vm319 = vcmp.eq.f32.partialorder %v316, inf
    %v320 = vsel %vm319, %v316, %v318
    %vm321 = vcmp.eq.f32.partialorder %v316, 0.0
    %v322 = vand.u32 %v316, 2147483648
    %v323 = vsel %vm321, %v322, %v320
    %v324 = vmul.f32 %v323, -1.0
    %v325 = vmul.f32 %v324, 1.442695
    %v326 = vpow.pop %v325
    %v327 = vld [vmem:[#allocation2 + $0x4] sm:$0x1]
    %v328 = vadd.f32 %v327, %v326
    %329 = vst [vmem:[#allocation2 + $0x4] sm:$0x1] %v328
    %v330 = vadd.f32 %v326, 1e-08
    %v331 = vlog2.pop %v330
    %v332 = vmul.f32 %v331, 0.6931472
    %v333 = vadd.f32 %v271, %v332
    %v334 = vld [vmem:[#allocation3] sm:$0xff]
    %s335 = scalar_lea.vmem [#allocation3], 192
    %v336 = vld [vmem:[%s335] sm:$0xff]
    %v337 = vsub.f32 %v334, %v336
    %v338 = vmul.f32 %v337, %v337
    %v339 = vrot.slane %v338, 4
    %v340 = vadd.f32 %v338, %v339
    %v341 = vrot.slane %v340, 2
    %v342 = vadd.f32 %v340, %v341
    %v343 = vrot.slane %v342, 1
    %v344 = vadd.f32 %v342, %v343
    %v345 = vadd.f32 %v344, 0.0
    %v346 = vld [vmem:[#allocation3 + $0x8] sm:$0xff]
    %v347 = vld [vmem:[%s335 + $0x8] sm:$0xff]
    %v348 = vsub.f32 %v346, %v347
    %v349 = vmul.f32 %v348, %v348
    %v350 = vrot.slane %v349, 4
    %v351 = vadd.f32 %v349, %v350
    %v352 = vrot.slane %v351, 2
    %v353 = vadd.f32 %v351, %v352
    %v354 = vrot.slane %v353, 1
    %v355 = vadd.f32 %v353, %v354
    %v356 = vadd.f32 %v345, %v355
    %v357 = vld [vmem:[#allocation3 + $0x10] sm:$0xff]
    %v358 = vld [vmem:[%s335 + $0x10] sm:$0xff]
    %v359 = vsub.f32 %v357, %v358
    %v360 = vmul.f32 %v359, %v359
    %v361 = vrot.slane %v360, 4
    %v362 = vadd.f32 %v360, %v361
    %v363 = vrot.slane %v362, 2
    %v364 = vadd.f32 %v362, %v363
    %v365 = vrot.slane %v364, 1
    %v366 = vadd.f32 %v364, %v365
    %v367 = vadd.f32 %v356, %v366
    %v368 = vld [vmem:[#allocation3 + $0x18] sm:$0xff]
    %v369 = vld [vmem:[%s335 + $0x18] sm:$0xff]
    %v370 = vsub.f32 %v368, %v369
    %v371 = vmul.f32 %v370, %v370
    %v372 = vrot.slane %v371, 4
    %v373 = vadd.f32 %v371, %v372
    %v374 = vrot.slane %v373, 2
    %v375 = vadd.f32 %v373, %v374
    %v376 = vrot.slane %v375, 1
    %v377 = vadd.f32 %v375, %v376
    %v378 = vadd.f32 %v367, %v377
    %v379 = vrsqrt.pop %v378
    %v380 = vmul.f32 %v378, %v379
    %vm381 = vcmp.eq.f32.partialorder %v378, inf
    %v382 = vsel %vm381, %v378, %v380
    %vm383 = vcmp.eq.f32.partialorder %v378, 0.0
    %v384 = vand.u32 %v378, 2147483648
    %v385 = vsel %vm383, %v384, %v382
    %v386 = vmul.f32 %v385, -1.0
    %v387 = vmul.f32 %v386, 1.442695
    %v388 = vpow.pop %v387
    %v389 = vld [vmem:[#allocation2 + $0x5] sm:$0x1]
    %v390 = vadd.f32 %v389, %v388
    %391 = vst [vmem:[#allocation2 + $0x5] sm:$0x1] %v390
    %v392 = vadd.f32 %v388, 1e-08
    %v393 = vlog2.pop %v392
    %v394 = vmul.f32 %v393, 0.6931472
    %v395 = vadd.f32 %v333, %v394
    %v396 = vld [vmem:[#allocation3] sm:$0xff]
    %s397 = scalar_lea.vmem [#allocation3], 224
    %v398 = vld [vmem:[%s397] sm:$0xff]
    %v399 = vsub.f32 %v396, %v398
    %v400 = vmul.f32 %v399, %v399
    %v401 = vrot.slane %v400, 4
    %v402 = vadd.f32 %v400, %v401
    %v403 = vrot.slane %v402, 2
    %v404 = vadd.f32 %v402, %v403
    %v405 = vrot.slane %v404, 1
    %v406 = vadd.f32 %v404, %v405
    %v407 = vadd.f32 %v406, 0.0
    %v408 = vld [vmem:[#allocation3 + $0x8] sm:$0xff]
    %v409 = vld [vmem:[%s397 + $0x8] sm:$0xff]
    %v410 = vsub.f32 %v408, %v409
    %v411 = vmul.f32 %v410, %v410
    %v412 = vrot.slane %v411, 4
    %v413 = vadd.f32 %v411, %v412
    %v414 = vrot.slane %v413, 2
    %v415 = vadd.f32 %v413, %v414
    %v416 = vrot.slane %v415, 1
    %v417 = vadd.f32 %v415, %v416
    %v418 = vadd.f32 %v407, %v417
    %v419 = vld [vmem:[#allocation3 + $0x10] sm:$0xff]
    %v420 = vld [vmem:[%s397 + $0x10] sm:$0xff]
    %v421 = vsub.f32 %v419, %v420
    %v422 = vmul.f32 %v421, %v421
    %v423 = vrot.slane %v422, 4
    %v424 = vadd.f32 %v422, %v423
    %v425 = vrot.slane %v424, 2
    %v426 = vadd.f32 %v424, %v425
    %v427 = vrot.slane %v426, 1
    %v428 = vadd.f32 %v426, %v427
    %v429 = vadd.f32 %v418, %v428
    %v430 = vld [vmem:[#allocation3 + $0x18] sm:$0xff]
    %v431 = vld [vmem:[%s397 + $0x18] sm:$0xff]
    %v432 = vsub.f32 %v430, %v431
    %v433 = vmul.f32 %v432, %v432
    %v434 = vrot.slane %v433, 4
    %v435 = vadd.f32 %v433, %v434
    %v436 = vrot.slane %v435, 2
    %v437 = vadd.f32 %v435, %v436
    %v438 = vrot.slane %v437, 1
    %v439 = vadd.f32 %v437, %v438
    %v440 = vadd.f32 %v429, %v439
    %v441 = vrsqrt.pop %v440
    %v442 = vmul.f32 %v440, %v441
    %vm443 = vcmp.eq.f32.partialorder %v440, inf
    %v444 = vsel %vm443, %v440, %v442
    %vm445 = vcmp.eq.f32.partialorder %v440, 0.0
    %v446 = vand.u32 %v440, 2147483648
    %v447 = vsel %vm445, %v446, %v444
    %v448 = vmul.f32 %v447, -1.0
    %v449 = vmul.f32 %v448, 1.442695
    %v450 = vpow.pop %v449
    %v451 = vld [vmem:[#allocation2 + $0x6] sm:$0x1]
    %v452 = vadd.f32 %v451, %v450
    %453 = vst [vmem:[#allocation2 + $0x6] sm:$0x1] %v452
    %v454 = vadd.f32 %v450, 1e-08
    %v455 = vlog2.pop %v454
    %v456 = vmul.f32 %v455, 0.6931472
    %v457 = vadd.f32 %v395, %v456
    %v458 = vld [vmem:[%s25] sm:$0xff]
    %v459 = vld [vmem:[%s87] sm:$0xff]
    %v460 = vsub.f32 %v458, %v459
    %v461 = vmul.f32 %v460, %v460
    %v462 = vrot.slane %v461, 4
    %v463 = vadd.f32 %v461, %v462
    %v464 = vrot.slane %v463, 2
    %v465 = vadd.f32 %v463, %v464
    %v466 = vrot.slane %v465, 1
    %v467 = vadd.f32 %v465, %v466
    %v468 = vadd.f32 %v467, 0.0
    %v469 = vld [vmem:[%s25 + $0x8] sm:$0xff]
    %v470 = vld [vmem:[%s87 + $0x8] sm:$0xff]
    %v471 = vsub.f32 %v469, %v470
    %v472 = vmul.f32 %v471, %v471
    %v473 = vrot.slane %v472, 4
    %v474 = vadd.f32 %v472, %v473
    %v475 = vrot.slane %v474, 2
    %v476 = vadd.f32 %v474, %v475
    %v477 = vrot.slane %v476, 1
    %v478 = vadd.f32 %v476, %v477
    %v479 = vadd.f32 %v468, %v478
    %v480 = vld [vmem:[%s25 + $0x10] sm:$0xff]
    %v481 = vld [vmem:[%s87 + $0x10] sm:$0xff]
    %v482 = vsub.f32 %v480, %v481
    %v483 = vmul.f32 %v482, %v482
    %v484 = vrot.slane %v483, 4
    %v485 = vadd.f32 %v483, %v484
    %v486 = vrot.slane %v485, 2
    %v487 = vadd.f32 %v485, %v486
    %v488 = vrot.slane %v487, 1
    %v489 = vadd.f32 %v487, %v488
    %v490 = vadd.f32 %v479, %v489
    %v491 = vld [vmem:[%s25 + $0x18] sm:$0xff]
    %v492 = vld [vmem:[%s87 + $0x18] sm:$0xff]
    %v493 = vsub.f32 %v491, %v492
    %v494 = vmul.f32 %v493, %v493
    %v495 = vrot.slane %v494, 4
    %v496 = vadd.f32 %v494, %v495
    %v497 = vrot.slane %v496, 2
    %v498 = vadd.f32 %v496, %v497
    %v499 = vrot.slane %v498, 1
    %v500 = vadd.f32 %v498, %v499
    %v501 = vadd.f32 %v490, %v500
    %v502 = vrsqrt.pop %v501
    %v503 = vmul.f32 %v501, %v502
    %vm504 = vcmp.eq.f32.partialorder %v501, inf
    %v505 = vsel %vm504, %v501, %v503
    %vm506 = vcmp.eq.f32.partialorder %v501, 0.0
    %v507 = vand.u32 %v501, 2147483648
    %v508 = vsel %vm506, %v507, %v505
    %v509 = vmul.f32 %v508, -1.0
    %v510 = vmul.f32 %v509, 1.442695
    %v511 = vpow.pop %v510
    %v512 = vadd.f32 %v511, 0.0
    %v513 = vld [vmem:[#allocation2 + $0x1] sm:$0x1]
    %v514 = vadd.f32 %v513, %v511
    %515 = vst [vmem:[#allocation2 + $0x1] sm:$0x1] %v514
    %v516 = vld [vmem:[%s25] sm:$0xff]
    %v517 = vld [vmem:[%s149] sm:$0xff]
    %v518 = vsub.f32 %v516, %v517
    %v519 = vmul.f32 %v518, %v518
    %v520 = vrot.slane %v519, 4
    %v521 = vadd.f32 %v519, %v520
    %v522 = vrot.slane %v521, 2
    %v523 = vadd.f32 %v521, %v522
    %v524 = vrot.slane %v523, 1
    %v525 = vadd.f32 %v523, %v524
    %v526 = vadd.f32 %v525, 0.0
    %v527 = vld [vmem:[%s25 + $0x8] sm:$0xff]
    %v528 = vld [vmem:[%s149 + $0x8] sm:$0xff]
    %v529 = vsub.f32 %v527, %v528
    %v530 = vmul.f32 %v529, %v529
    %v531 = vrot.slane %v530, 4
    %v532 = vadd.f32 %v530, %v531
    %v533 = vrot.slane %v532, 2
    %v534 = vadd.f32 %v532, %v533
    %v535 = vrot.slane %v534, 1
    %v536 = vadd.f32 %v534, %v535
    %v537 = vadd.f32 %v526, %v536
    %v538 = vld [vmem:[%s25 + $0x10] sm:$0xff]
    %v539 = vld [vmem:[%s149 + $0x10] sm:$0xff]
    %v540 = vsub.f32 %v538, %v539
    %v541 = vmul.f32 %v540, %v540
    %v542 = vrot.slane %v541, 4
    %v543 = vadd.f32 %v541, %v542
    %v544 = vrot.slane %v543, 2
    %v545 = vadd.f32 %v543, %v544
    %v546 = vrot.slane %v545, 1
    %v547 = vadd.f32 %v545, %v546
    %v548 = vadd.f32 %v537, %v547
    %v549 = vld [vmem:[%s25 + $0x18] sm:$0xff]
    %v550 = vld [vmem:[%s149 + $0x18] sm:$0xff]
    %v551 = vsub.f32 %v549, %v550
    %v552 = vmul.f32 %v551, %v551
    %v553 = vrot.slane %v552, 4
    %v554 = vadd.f32 %v552, %v553
    %v555 = vrot.slane %v554, 2
    %v556 = vadd.f32 %v554, %v555
    %v557 = vrot.slane %v556, 1
    %v558 = vadd.f32 %v556, %v557
    %v559 = vadd.f32 %v548, %v558
    %v560 = vrsqrt.pop %v559
    %v561 = vmul.f32 %v559, %v560
    %vm562 = vcmp.eq.f32.partialorder %v559, inf
    %v563 = vsel %vm562, %v559, %v561
    %vm564 = vcmp.eq.f32.partialorder %v559, 0.0
    %v565 = vand.u32 %v559, 2147483648
    %v566 = vsel %vm564, %v565, %v563
    %v567 = vmul.f32 %v566, -1.0
    %v568 = vmul.f32 %v567, 1.442695
    %v569 = vpow.pop %v568
    %v570 = vadd.f32 %v512, %v569
    %v571 = vld [vmem:[#allocation2 + $0x2] sm:$0x1]
    %v572 = vadd.f32 %v571, %v569
    %573 = vst [vmem:[#allocation2 + $0x2] sm:$0x1] %v572
    %v574 = vld [vmem:[%s25] sm:$0xff]
    %v575 = vld [vmem:[%s211] sm:$0xff]
    %v576 = vsub.f32 %v574, %v575
    %v577 = vmul.f32 %v576, %v576
    %v578 = vrot.slane %v577, 4
    %v579 = vadd.f32 %v577, %v578
    %v580 = vrot.slane %v579, 2
    %v581 = vadd.f32 %v579, %v580
    %v582 = vrot.slane %v581, 1
    %v583 = vadd.f32 %v581, %v582
    %v584 = vadd.f32 %v583, 0.0
    %v585 = vld [vmem:[%s25 + $0x8] sm:$0xff]
    %v586 = vld [vmem:[%s211 + $0x8] sm:$0xff]
    %v587 = vsub.f32 %v585, %v586
    %v588 = vmul.f32 %v587, %v587
    %v589 = vrot.slane %v588, 4
    %v590 = vadd.f32 %v588, %v589
    %v591 = vrot.slane %v590, 2
    %v592 = vadd.f32 %v590, %v591
    %v593 = vrot.slane %v592, 1
    %v594 = vadd.f32 %v592, %v593
    %v595 = vadd.f32 %v584, %v594
    %v596 = vld [vmem:[%s25 + $0x10] sm:$0xff]
    %v597 = vld [vmem:[%s211 + $0x10] sm:$0xff]
    %v598 = vsub.f32 %v596, %v597
    %v599 = vmul.f32 %v598, %v598
    %v600 = vrot.slane %v599, 4
    %v601 = vadd.f32 %v599, %v600
    %v602 = vrot.slane %v601, 2
    %v603 = vadd.f32 %v601, %v602
    %v604 = vrot.slane %v603, 1
    %v605 = vadd.f32 %v603, %v604
    %v606 = vadd.f32 %v595, %v605
    %v607 = vld [vmem:[%s25 + $0x18] sm:$0xff]
    %v608 = vld [vmem:[%s211 + $0x18] sm:$0xff]
    %v609 = vsub.f32 %v607, %v608
    %v610 = vmul.f32 %v609, %v609
    %v611 = vrot.slane %v610, 4
    %v612 = vadd.f32 %v610, %v611
    %v613 = vrot.slane %v612, 2
    %v614 = vadd.f32 %v612, %v613
    %v615 = vrot.slane %v614, 1
    %v616 = vadd.f32 %v614, %v615
    %v617 = vadd.f32 %v606, %v616
    %v618 = vrsqrt.pop %v617
    %v619 = vmul.f32 %v617, %v618
    %vm620 = vcmp.eq.f32.partialorder %v617, inf
    %v621 = vsel %vm620, %v617, %v619
    %vm622 = vcmp.eq.f32.partialorder %v617, 0.0
    %v623 = vand.u32 %v617, 2147483648
    %v624 = vsel %vm622, %v623, %v621
    %v625 = vmul.f32 %v624, -1.0
    %v626 = vmul.f32 %v625, 1.442695
    %v627 = vpow.pop %v626
    %v628 = vadd.f32 %v570, %v627
    %v629 = vld [vmem:[#allocation2 + $0x3] sm:$0x1]
    %v630 = vadd.f32 %v629, %v627
    %631 = vst [vmem:[#allocation2 + $0x3] sm:$0x1] %v630
    %v632 = vld [vmem:[%s25] sm:$0xff]
    %v633 = vld [vmem:[%s273] sm:$0xff]
    %v634 = vsub.f32 %v632, %v633
    %v635 = vmul.f32 %v634, %v634
    %v636 = vrot.slane %v635, 4
    %v637 = vadd.f32 %v635, %v636
    %v638 = vrot.slane %v637, 2
    %v639 = vadd.f32 %v637, %v638
    %v640 = vrot.slane %v639, 1
    %v641 = vadd.f32 %v639, %v640
    %v642 = vadd.f32 %v641, 0.0
    %v643 = vld [vmem:[%s25 + $0x8] sm:$0xff]
    %v644 = vld [vmem:[%s273 + $0x8] sm:$0xff]
    %v645 = vsub.f32 %v643, %v644
    %v646 = vmul.f32 %v645, %v645
    %v647 = vrot.slane %v646, 4
    %v648 = vadd.f32 %v646, %v647
    %v649 = vrot.slane %v648, 2
    %v650 = vadd.f32 %v648, %v649
    %v651 = vrot.slane %v650, 1
    %v652 = vadd.f32 %v650, %v651
    %v653 = vadd.f32 %v642, %v652
    %v654 = vld [vmem:[%s25 + $0x10] sm:$0xff]
    %v655 = vld [vmem:[%s273 + $0x10] sm:$0xff]
    %v656 = vsub.f32 %v654, %v655
    %v657 = vmul.f32 %v656, %v656
    %v658 = vrot.slane %v657, 4
    %v659 = vadd.f32 %v657, %v658
    %v660 = vrot.slane %v659, 2
    %v661 = vadd.f32 %v659, %v660
    %v662 = vrot.slane %v661, 1
    %v663 = vadd.f32 %v661, %v662
    %v664 = vadd.f32 %v653, %v663
    %v665 = vld [vmem:[%s25 + $0x18] sm:$0xff]
    %v666 = vld [vmem:[%s273 + $0x18] sm:$0xff]
    %v667 = vsub.f32 %v665, %v666
    %v668 = vmul.f32 %v667, %v667
    %v669 = vrot.slane %v668, 4
    %v670 = vadd.f32 %v668, %v669
    %v671 = vrot.slane %v670, 2
    %v672 = vadd.f32 %v670, %v671
    %v673 = vrot.slane %v672, 1
    %v674 = vadd.f32 %v672, %v673
    %v675 = vadd.f32 %v664, %v674
    %v676 = vrsqrt.pop %v675
    %v677 = vmul.f32 %v675, %v676
    %vm678 = vcmp.eq.f32.partialorder %v675, inf
    %v679 = vsel %vm678, %v675, %v677
    %vm680 = vcmp.eq.f32.partialorder %v675, 0.0
    %v681 = vand.u32 %v675, 2147483648
    %v682 = vsel %vm680, %v681, %v679
    %v683 = vmul.f32 %v682, -1.0
    %v684 = vmul.f32 %v683, 1.442695
    %v685 = vpow.pop %v684
    %v686 = vadd.f32 %v628, %v685
    %v687 = vld [vmem:[#allocation2 + $0x4] sm:$0x1]
    %v688 = vadd.f32 %v687, %v685
    %689 = vst [vmem:[#allocation2 + $0x4] sm:$0x1] %v688
    %v690 = vld [vmem:[%s25] sm:$0xff]
    %v691 = vld [vmem:[%s335] sm:$0xff]
    %v692 = vsub.f32 %v690, %v691
    %v693 = vmul.f32 %v692, %v692
    %v694 = vrot.slane %v693, 4
    %v695 = vadd.f32 %v693, %v694
    %v696 = vrot.slane %v695, 2
    %v697 = vadd.f32 %v695, %v696
    %v698 = vrot.slane %v697, 1
    %v699 = vadd.f32 %v697, %v698
    %v700 = vadd.f32 %v699, 0.0
    %v701 = vld [vmem:[%s25 + $0x8] sm:$0xff]
    %v702 = vld [vmem:[%s335 + $0x8] sm:$0xff]
    %v703 = vsub.f32 %v701, %v702
    %v704 = vmul.f32 %v703, %v703
    %v705 = vrot.slane %v704, 4
    %v706 = vadd.f32 %v704, %v705
    %v707 = vrot.slane %v706, 2
    %v708 = vadd.f32 %v706, %v707
    %v709 = vrot.slane %v708, 1
    %v710 = vadd.f32 %v708, %v709
    %v711 = vadd.f32 %v700, %v710
    %v712 = vld [vmem:[%s25 + $0x10] sm:$0xff]
    %v713 = vld [vmem:[%s335 + $0x10] sm:$0xff]
    %v714 = vsub.f32 %v712, %v713
    %v715 = vmul.f32 %v714, %v714
    %v716 = vrot.slane %v715, 4
    %v717 = vadd.f32 %v715, %v716
    %v718 = vrot.slane %v717, 2
    %v719 = vadd.f32 %v717, %v718
    %v720 = vrot.slane %v719, 1
    %v721 = vadd.f32 %v719, %v720
    %v722 = vadd.f32 %v711, %v721
    %v723 = vld [vmem:[%s25 + $0x18] sm:$0xff]
    %v724 = vld [vmem:[%s335 + $0x18] sm:$0xff]
    %v725 = vsub.f32 %v723, %v724
    %v726 = vmul.f32 %v725, %v725
    %v727 = vrot.slane %v726, 4
    %v728 = vadd.f32 %v726, %v727
    %v729 = vrot.slane %v728, 2
    %v730 = vadd.f32 %v728, %v729
    %v731 = vrot.slane %v730, 1
    %v732 = vadd.f32 %v730, %v731
    %v733 = vadd.f32 %v722, %v732
    %v734 = vrsqrt.pop %v733
    %v735 = vmul.f32 %v733, %v734
    %vm736 = vcmp.eq.f32.partialorder %v733, inf
    %v737 = vsel %vm736, %v733, %v735
    %vm738 = vcmp.eq.f32.partialorder %v733, 0.0
    %v739 = vand.u32 %v733, 2147483648
    %v740 = vsel %vm738, %v739, %v737
    %v741 = vmul.f32 %v740, -1.0
    %v742 = vmul.f32 %v741, 1.442695
    %v743 = vpow.pop %v742
    %v744 = vadd.f32 %v686, %v743
    %v745 = vld [vmem:[#allocation2 + $0x5] sm:$0x1]
    %v746 = vadd.f32 %v745, %v743
    %747 = vst [vmem:[#allocation2 + $0x5] sm:$0x1] %v746
    %v748 = vld [vmem:[%s25] sm:$0xff]
    %v749 = vld [vmem:[%s397] sm:$0xff]
    %v750 = vsub.f32 %v748, %v749
    %v751 = vmul.f32 %v750, %v750
    %v752 = vrot.slane %v751, 4
    %v753 = vadd.f32 %v751, %v752
    %v754 = vrot.slane %v753, 2
    %v755 = vadd.f32 %v753, %v754
    %v756 = vrot.slane %v755, 1
    %v757 = vadd.f32 %v755, %v756
    %v758 = vadd.f32 %v757, 0.0
    %v759 = vld [vmem:[%s25 + $0x8] sm:$0xff]
    %v760 = vld [vmem:[%s397 + $0x8] sm:$0xff]
    %v761 = vsub.f32 %v759, %v760
    %v762 = vmul.f32 %v761, %v761
    %v763 = vrot.slane %v762, 4
    %v764 = vadd.f32 %v762, %v763
    %v765 = vrot.slane %v764, 2
    %v766 = vadd.f32 %v764, %v765
    %v767 = vrot.slane %v766, 1
    %v768 = vadd.f32 %v766, %v767
    %v769 = vadd.f32 %v758, %v768
    %v770 = vld [vmem:[%s25 + $0x10] sm:$0xff]
    %v771 = vld [vmem:[%s397 + $0x10] sm:$0xff]
    %v772 = vsub.f32 %v770, %v771
    %v773 = vmul.f32 %v772, %v772
    %v774 = vrot.slane %v773, 4
    %v775 = vadd.f32 %v773, %v774
    %v776 = vrot.slane %v775, 2
    %v777 = vadd.f32 %v775, %v776
    %v778 = vrot.slane %v777, 1
    %v779 = vadd.f32 %v777, %v778
    %v780 = vadd.f32 %v769, %v779
    %v781 = vld [vmem:[%s25 + $0x18] sm:$0xff]
    %v782 = vld [vmem:[%s397 + $0x18] sm:$0xff]
    %v783 = vsub.f32 %v781, %v782
    %v784 = vmul.f32 %v783, %v783
    %v785 = vrot.slane %v784, 4
    %v786 = vadd.f32 %v784, %v785
    %v787 = vrot.slane %v786, 2
    %v788 = vadd.f32 %v786, %v787
    %v789 = vrot.slane %v788, 1
    %v790 = vadd.f32 %v788, %v789
    %v791 = vadd.f32 %v780, %v790
    %v792 = vrsqrt.pop %v791
    %v793 = vmul.f32 %v791, %v792
    %vm794 = vcmp.eq.f32.partialorder %v791, inf
    %v795 = vsel %vm794, %v791, %v793
    %vm796 = vcmp.eq.f32.partialorder %v791, 0.0
    %v797 = vand.u32 %v791, 2147483648
    %v798 = vsel %vm796, %v797, %v795
    %v799 = vmul.f32 %v798, -1.0
    %v800 = vmul.f32 %v799, 1.442695
    %v801 = vpow.pop %v800
    %v802 = vadd.f32 %v744, %v801
    %v803 = vld [vmem:[#allocation2 + $0x6] sm:$0x1]
    %v804 = vadd.f32 %v803, %v801
    %805 = vst [vmem:[#allocation2 + $0x6] sm:$0x1] %v804
    %v806 = vld [vmem:[#allocation2] sm:$0x1]
    %v807 = vadd.f32 %v806, %v802
    %808 = vst [vmem:[#allocation2] sm:$0x1] %v807
    %v809 = vld [vmem:[%s87] sm:$0xff]
    %v810 = vld [vmem:[%s149] sm:$0xff]
    %v811 = vsub.f32 %v809, %v810
    %v812 = vmul.f32 %v811, %v811
    %v813 = vrot.slane %v812, 4
    %v814 = vadd.f32 %v812, %v813
    %v815 = vrot.slane %v814, 2
    %v816 = vadd.f32 %v814, %v815
    %v817 = vrot.slane %v816, 1
    %v818 = vadd.f32 %v816, %v817
    %v819 = vadd.f32 %v818, 0.0
    %v820 = vld [vmem:[%s87 + $0x8] sm:$0xff]
    %v821 = vld [vmem:[%s149 + $0x8] sm:$0xff]
    %v822 = vsub.f32 %v820, %v821
    %v823 = vmul.f32 %v822, %v822
    %v824 = vrot.slane %v823, 4
    %v825 = vadd.f32 %v823, %v824
    %v826 = vrot.slane %v825, 2
    %v827 = vadd.f32 %v825, %v826
    %v828 = vrot.slane %v827, 1
    %v829 = vadd.f32 %v827, %v828
    %v830 = vadd.f32 %v819, %v829
    %v831 = vld [vmem:[%s87 + $0x10] sm:$0xff]
    %v832 = vld [vmem:[%s149 + $0x10] sm:$0xff]
    %v833 = vsub.f32 %v831, %v832
    %v834 = vmul.f32 %v833, %v833
    %v835 = vrot.slane %v834, 4
    %v836 = vadd.f32 %v834, %v835
    %v837 = vrot.slane %v836, 2
    %v838 = vadd.f32 %v836, %v837
    %v839 = vrot.slane %v838, 1
    %v840 = vadd.f32 %v838, %v839
    %v841 = vadd.f32 %v830, %v840
    %v842 = vld [vmem:[%s87 + $0x18] sm:$0xff]
    %v843 = vld [vmem:[%s149 + $0x18] sm:$0xff]
    %v844 = vsub.f32 %v842, %v843
    %v845 = vmul.f32 %v844, %v844
    %v846 = vrot.slane %v845, 4
    %v847 = vadd.f32 %v845, %v846
    %v848 = vrot.slane %v847, 2
    %v849 = vadd.f32 %v847, %v848
    %v850 = vrot.slane %v849, 1
    %v851 = vadd.f32 %v849, %v850
    %v852 = vadd.f32 %v841, %v851
    %v853 = vrsqrt.pop %v852
    %v854 = vmul.f32 %v852, %v853
    %vm855 = vcmp.eq.f32.partialorder %v852, inf
    %v856 = vsel %vm855, %v852, %v854
    %vm857 = vcmp.eq.f32.partialorder %v852, 0.0
    %v858 = vand.u32 %v852, 2147483648
    %v859 = vsel %vm857, %v858, %v856
    %v860 = vmul.f32 %v859, -1.0
    %v861 = vmul.f32 %v860, 1.442695
    %v862 = vpow.pop %v861
    %v863 = vadd.f32 %v862, 0.0
    %v864 = vld [vmem:[#allocation2 + $0x2] sm:$0x1]
    %v865 = vadd.f32 %v864, %v862
    %866 = vst [vmem:[#allocation2 + $0x2] sm:$0x1] %v865
    %v867 = vld [vmem:[%s87] sm:$0xff]
    %v868 = vld [vmem:[%s211] sm:$0xff]
    %v869 = vsub.f32 %v867, %v868
    %v870 = vmul.f32 %v869, %v869
    %v871 = vrot.slane %v870, 4
    %v872 = vadd.f32 %v870, %v871
    %v873 = vrot.slane %v872, 2
    %v874 = vadd.f32 %v872, %v873
    %v875 = vrot.slane %v874, 1
    %v876 = vadd.f32 %v874, %v875
    %v877 = vadd.f32 %v876, 0.0
    %v878 = vld [vmem:[%s87 + $0x8] sm:$0xff]
    %v879 = vld [vmem:[%s211 + $0x8] sm:$0xff]
    %v880 = vsub.f32 %v878, %v879
    %v881 = vmul.f32 %v880, %v880
    %v882 = vrot.slane %v881, 4
    %v883 = vadd.f32 %v881, %v882
    %v884 = vrot.slane %v883, 2
    %v885 = vadd.f32 %v883, %v884
    %v886 = vrot.slane %v885, 1
    %v887 = vadd.f32 %v885, %v886
    %v888 = vadd.f32 %v877, %v887
    %v889 = vld [vmem:[%s87 + $0x10] sm:$0xff]
    %v890 = vld [vmem:[%s211 + $0x10] sm:$0xff]
    %v891 = vsub.f32 %v889, %v890
    %v892 = vmul.f32 %v891, %v891
    %v893 = vrot.slane %v892, 4
    %v894 = vadd.f32 %v892, %v893
    %v895 = vrot.slane %v894, 2
    %v896 = vadd.f32 %v894, %v895
    %v897 = vrot.slane %v896, 1
    %v898 = vadd.f32 %v896, %v897
    %v899 = vadd.f32 %v888, %v898
    %v900 = vld [vmem:[%s87 + $0x18] sm:$0xff]
    %v901 = vld [vmem:[%s211 + $0x18] sm:$0xff]
    %v902 = vsub.f32 %v900, %v901
    %v903 = vmul.f32 %v902, %v902
    %v904 = vrot.slane %v903, 4
    %v905 = vadd.f32 %v903, %v904
    %v906 = vrot.slane %v905, 2
    %v907 = vadd.f32 %v905, %v906
    %v908 = vrot.slane %v907, 1
    %v909 = vadd.f32 %v907, %v908
    %v910 = vadd.f32 %v899, %v909
    %v911 = vrsqrt.pop %v910
    %v912 = vmul.f32 %v910, %v911
    %vm913 = vcmp.eq.f32.partialorder %v910, inf
    %v914 = vsel %vm913, %v910, %v912
    %vm915 = vcmp.eq.f32.partialorder %v910, 0.0
    %v916 = vand.u32 %v910, 2147483648
    %v917 = vsel %vm915, %v916, %v914
    %v918 = vmul.f32 %v917, -1.0
    %v919 = vmul.f32 %v918, 1.442695
    %v920 = vpow.pop %v919
    %v921 = vadd.f32 %v863, %v920
    %v922 = vld [vmem:[#allocation2 + $0x3] sm:$0x1]
    %v923 = vadd.f32 %v922, %v920
    %924 = vst [vmem:[#allocation2 + $0x3] sm:$0x1] %v923
    %v925 = vld [vmem:[%s87] sm:$0xff]
    %v926 = vld [vmem:[%s273] sm:$0xff]
    %v927 = vsub.f32 %v925, %v926
    %v928 = vmul.f32 %v927, %v927
    %v929 = vrot.slane %v928, 4
    %v930 = vadd.f32 %v928, %v929
    %v931 = vrot.slane %v930, 2
    %v932 = vadd.f32 %v930, %v931
    %v933 = vrot.slane %v932, 1
    %v934 = vadd.f32 %v932, %v933
    %v935 = vadd.f32 %v934, 0.0
    %v936 = vld [vmem:[%s87 + $0x8] sm:$0xff]
    %v937 = vld [vmem:[%s273 + $0x8] sm:$0xff]
    %v938 = vsub.f32 %v936, %v937
    %v939 = vmul.f32 %v938, %v938
    %v940 = vrot.slane %v939, 4
    %v941 = vadd.f32 %v939, %v940
    %v942 = vrot.slane %v941, 2
    %v943 = vadd.f32 %v941, %v942
    %v944 = vrot.slane %v943, 1
    %v945 = vadd.f32 %v943, %v944
    %v946 = vadd.f32 %v935, %v945
    %v947 = vld [vmem:[%s87 + $0x10] sm:$0xff]
    %v948 = vld [vmem:[%s273 + $0x10] sm:$0xff]
    %v949 = vsub.f32 %v947, %v948
    %v950 = vmul.f32 %v949, %v949
    %v951 = vrot.slane %v950, 4
    %v952 = vadd.f32 %v950, %v951
    %v953 = vrot.slane %v952, 2
    %v954 = vadd.f32 %v952, %v953
    %v955 = vrot.slane %v954, 1
    %v956 = vadd.f32 %v954, %v955
    %v957 = vadd.f32 %v946, %v956
    %v958 = vld [vmem:[%s87 + $0x18] sm:$0xff]
    %v959 = vld [vmem:[%s273 + $0x18] sm:$0xff]
    %v960 = vsub.f32 %v958, %v959
    %v961 = vmul.f32 %v960, %v960
    %v962 = vrot.slane %v961, 4
    %v963 = vadd.f32 %v961, %v962
    %v964 = vrot.slane %v963, 2
    %v965 = vadd.f32 %v963, %v964
    %v966 = vrot.slane %v965, 1
    %v967 = vadd.f32 %v965, %v966
    %v968 = vadd.f32 %v957, %v967
    %v969 = vrsqrt.pop %v968
    %v970 = vmul.f32 %v968, %v969
    %vm971 = vcmp.eq.f32.partialorder %v968, inf
    %v972 = vsel %vm971, %v968, %v970
    %vm973 = vcmp.eq.f32.partialorder %v968, 0.0
    %v974 = vand.u32 %v968, 2147483648
    %v975 = vsel %vm973, %v974, %v972
    %v976 = vmul.f32 %v975, -1.0
    %v977 = vmul.f32 %v976, 1.442695
    %v978 = vpow.pop %v977
    %v979 = vadd.f32 %v921, %v978
    %v980 = vld [vmem:[#allocation2 + $0x4] sm:$0x1]
    %v981 = vadd.f32 %v980, %v978
    %982 = vst [vmem:[#allocation2 + $0x4] sm:$0x1] %v981
    %v983 = vld [vmem:[%s87] sm:$0xff]
    %v984 = vld [vmem:[%s335] sm:$0xff]
    %v985 = vsub.f32 %v983, %v984
    %v986 = vmul.f32 %v985, %v985
    %v987 = vrot.slane %v986, 4
    %v988 = vadd.f32 %v986, %v987
    %v989 = vrot.slane %v988, 2
    %v990 = vadd.f32 %v988, %v989
    %v991 = vrot.slane %v990, 1
    %v992 = vadd.f32 %v990, %v991
    %v993 = vadd.f32 %v992, 0.0
    %v994 = vld [vmem:[%s87 + $0x8] sm:$0xff]
    %v995 = vld [vmem:[%s335 + $0x8] sm:$0xff]
    %v996 = vsub.f32 %v994, %v995
    %v997 = vmul.f32 %v996, %v996
    %v998 = vrot.slane %v997, 4
    %v999 = vadd.f32 %v997, %v998
    %v1000 = vrot.slane %v999, 2
    %v1001 = vadd.f32 %v999, %v1000
    %v1002 = vrot.slane %v1001, 1
    %v1003 = vadd.f32 %v1001, %v1002
    %v1004 = vadd.f32 %v993, %v1003
    %v1005 = vld [vmem:[%s87 + $0x10] sm:$0xff]
    %v1006 = vld [vmem:[%s335 + $0x10] sm:$0xff]
    %v1007 = vsub.f32 %v1005, %v1006
    %v1008 = vmul.f32 %v1007, %v1007
    %v1009 = vrot.slane %v1008, 4
    %v1010 = vadd.f32 %v1008, %v1009
    %v1011 = vrot.slane %v1010, 2
    %v1012 = vadd.f32 %v1010, %v1011
    %v1013 = vrot.slane %v1012, 1
    %v1014 = vadd.f32 %v1012, %v1013
    %v1015 = vadd.f32 %v1004, %v1014
    %v1016 = vld [vmem:[%s87 + $0x18] sm:$0xff]
    %v1017 = vld [vmem:[%s335 + $0x18] sm:$0xff]
    %v1018 = vsub.f32 %v1016, %v1017
    %v1019 = vmul.f32 %v1018, %v1018
    %v1020 = vrot.slane %v1019, 4
    %v1021 = vadd.f32 %v1019, %v1020
    %v1022 = vrot.slane %v1021, 2
    %v1023 = vadd.f32 %v1021, %v1022
    %v1024 = vrot.slane %v1023, 1
    %v1025 = vadd.f32 %v1023, %v1024
    %v1026 = vadd.f32 %v1015, %v1025
    %v1027 = vrsqrt.pop %v1026
    %v1028 = vmul.f32 %v1026, %v1027
    %vm1029 = vcmp.eq.f32.partialorder %v1026, inf
    %v1030 = vsel %vm1029, %v1026, %v1028
    %vm1031 = vcmp.eq.f32.partialorder %v1026, 0.0
    %v1032 = vand.u32 %v1026, 2147483648
    %v1033 = vsel %vm1031, %v1032, %v1030
    %v1034 = vmul.f32 %v1033, -1.0
    %v1035 = vmul.f32 %v1034, 1.442695
    %v1036 = vpow.pop %v1035
    %v1037 = vadd.f32 %v979, %v1036
    %v1038 = vld [vmem:[#allocation2 + $0x5] sm:$0x1]
    %v1039 = vadd.f32 %v1038, %v1036
    %1040 = vst [vmem:[#allocation2 + $0x5] sm:$0x1] %v1039
    %v1041 = vld [vmem:[%s87] sm:$0xff]
    %v1042 = vld [vmem:[%s397] sm:$0xff]
    %v1043 = vsub.f32 %v1041, %v1042
    %v1044 = vmul.f32 %v1043, %v1043
    %v1045 = vrot.slane %v1044, 4
    %v1046 = vadd.f32 %v1044, %v1045
    %v1047 = vrot.slane %v1046, 2
    %v1048 = vadd.f32 %v1046, %v1047
    %v1049 = vrot.slane %v1048, 1
    %v1050 = vadd.f32 %v1048, %v1049
    %v1051 = vadd.f32 %v1050, 0.0
    %v1052 = vld [vmem:[%s87 + $0x8] sm:$0xff]
    %v1053 = vld [vmem:[%s397 + $0x8] sm:$0xff]
    %v1054 = vsub.f32 %v1052, %v1053
    %v1055 = vmul.f32 %v1054, %v1054
    %v1056 = vrot.slane %v1055, 4
    %v1057 = vadd.f32 %v1055, %v1056
    %v1058 = vrot.slane %v1057, 2
    %v1059 = vadd.f32 %v1057, %v1058
    %v1060 = vrot.slane %v1059, 1
    %v1061 = vadd.f32 %v1059, %v1060
    %v1062 = vadd.f32 %v1051, %v1061
    %v1063 = vld [vmem:[%s87 + $0x10] sm:$0xff]
    %v1064 = vld [vmem:[%s397 + $0x10] sm:$0xff]
    %v1065 = vsub.f32 %v1063, %v1064
    %v1066 = vmul.f32 %v1065, %v1065
    %v1067 = vrot.slane %v1066, 4
    %v1068 = vadd.f32 %v1066, %v1067
    %v1069 = vrot.slane %v1068, 2
    %v1070 = vadd.f32 %v1068, %v1069
    %v1071 = vrot.slane %v1070, 1
    %v1072 = vadd.f32 %v1070, %v1071
    %v1073 = vadd.f32 %v1062, %v1072
    %v1074 = vld [vmem:[%s87 + $0x18] sm:$0xff]
    %v1075 = vld [vmem:[%s397 + $0x18] sm:$0xff]
    %v1076 = vsub.f32 %v1074, %v1075
    %v1077 = vmul.f32 %v1076, %v1076
    %v1078 = vrot.slane %v1077, 4
    %v1079 = vadd.f32 %v1077, %v1078
    %v1080 = vrot.slane %v1079, 2
    %v1081 = vadd.f32 %v1079, %v1080
    %v1082 = vrot.slane %v1081, 1
    %v1083 = vadd.f32 %v1081, %v1082
    %v1084 = vadd.f32 %v1073, %v1083
    %v1085 = vrsqrt.pop %v1084
    %v1086 = vmul.f32 %v1084, %v1085
    %vm1087 = vcmp.eq.f32.partialorder %v1084, inf
    %v1088 = vsel %vm1087, %v1084, %v1086
    %vm1089 = vcmp.eq.f32.partialorder %v1084, 0.0
    %v1090 = vand.u32 %v1084, 2147483648
    %v1091 = vsel %vm1089, %v1090, %v1088
    %v1092 = vmul.f32 %v1091, -1.0
    %v1093 = vmul.f32 %v1092, 1.442695
    %v1094 = vpow.pop %v1093
    %v1095 = vadd.f32 %v1037, %v1094
    %v1096 = vld [vmem:[#allocation2 + $0x6] sm:$0x1]
    %v1097 = vadd.f32 %v1096, %v1094
    %1098 = vst [vmem:[#allocation2 + $0x6] sm:$0x1] %v1097
    %v1099 = vld [vmem:[#allocation2 + $0x1] sm:$0x1]
    %v1100 = vadd.f32 %v1099, %v1095
    %1101 = vst [vmem:[#allocation2 + $0x1] sm:$0x1] %v1100
    %v1102 = vld [vmem:[%s149] sm:$0xff]
    %v1103 = vld [vmem:[%s211] sm:$0xff]
    %v1104 = vsub.f32 %v1102, %v1103
    %v1105 = vmul.f32 %v1104, %v1104
    %v1106 = vrot.slane %v1105, 4
    %v1107 = vadd.f32 %v1105, %v1106
    %v1108 = vrot.slane %v1107, 2
    %v1109 = vadd.f32 %v1107, %v1108
    %v1110 = vrot.slane %v1109, 1
    %v1111 = vadd.f32 %v1109, %v1110
    %v1112 = vadd.f32 %v1111, 0.0
    %v1113 = vld [vmem:[%s149 + $0x8] sm:$0xff]
    %v1114 = vld [vmem:[%s211 + $0x8] sm:$0xff]
    %v1115 = vsub.f32 %v1113, %v1114
    %v1116 = vmul.f32 %v1115, %v1115
    %v1117 = vrot.slane %v1116, 4
    %v1118 = vadd.f32 %v1116, %v1117
    %v1119 = vrot.slane %v1118, 2
    %v1120 = vadd.f32 %v1118, %v1119
    %v1121 = vrot.slane %v1120, 1
    %v1122 = vadd.f32 %v1120, %v1121
    %v1123 = vadd.f32 %v1112, %v1122
    %v1124 = vld [vmem:[%s149 + $0x10] sm:$0xff]
    %v1125 = vld [vmem:[%s211 + $0x10] sm:$0xff]
    %v1126 = vsub.f32 %v1124, %v1125
    %v1127 = vmul.f32 %v1126, %v1126
    %v1128 = vrot.slane %v1127, 4
    %v1129 = vadd.f32 %v1127, %v1128
    %v1130 = vrot.slane %v1129, 2
    %v1131 = vadd.f32 %v1129, %v1130
    %v1132 = vrot.slane %v1131, 1
    %v1133 = vadd.f32 %v1131, %v1132
    %v1134 = vadd.f32 %v1123, %v1133
    %v1135 = vld [vmem:[%s149 + $0x18] sm:$0xff]
    %v1136 = vld [vmem:[%s211 + $0x18] sm:$0xff]
    %v1137 = vsub.f32 %v1135, %v1136
    %v1138 = vmul.f32 %v1137, %v1137
    %v1139 = vrot.slane %v1138, 4
    %v1140 = vadd.f32 %v1138, %v1139
    %v1141 = vrot.slane %v1140, 2
    %v1142 = vadd.f32 %v1140, %v1141
    %v1143 = vrot.slane %v1142, 1
    %v1144 = vadd.f32 %v1142, %v1143
    %v1145 = vadd.f32 %v1134, %v1144
    %v1146 = vrsqrt.pop %v1145
    %v1147 = vmul.f32 %v1145, %v1146
    %vm1148 = vcmp.eq.f32.partialorder %v1145, inf
    %v1149 = vsel %vm1148, %v1145, %v1147
    %vm1150 = vcmp.eq.f32.partialorder %v1145, 0.0
    %v1151 = vand.u32 %v1145, 2147483648
    %v1152 = vsel %vm1150, %v1151, %v1149
    %v1153 = vmul.f32 %v1152, -1.0
    %v1154 = vmul.f32 %v1153, 1.442695
    %v1155 = vpow.pop %v1154
    %v1156 = vadd.f32 %v1155, 0.0
    %v1157 = vld [vmem:[#allocation2 + $0x3] sm:$0x1]
    %v1158 = vadd.f32 %v1157, %v1155
    %1159 = vst [vmem:[#allocation2 + $0x3] sm:$0x1] %v1158
    %v1160 = vld [vmem:[%s149] sm:$0xff]
    %v1161 = vld [vmem:[%s273] sm:$0xff]
    %v1162 = vsub.f32 %v1160, %v1161
    %v1163 = vmul.f32 %v1162, %v1162
    %v1164 = vrot.slane %v1163, 4
    %v1165 = vadd.f32 %v1163, %v1164
    %v1166 = vrot.slane %v1165, 2
    %v1167 = vadd.f32 %v1165, %v1166
    %v1168 = vrot.slane %v1167, 1
    %v1169 = vadd.f32 %v1167, %v1168
    %v1170 = vadd.f32 %v1169, 0.0
    %v1171 = vld [vmem:[%s149 + $0x8] sm:$0xff]
    %v1172 = vld [vmem:[%s273 + $0x8] sm:$0xff]
    %v1173 = vsub.f32 %v1171, %v1172
    %v1174 = vmul.f32 %v1173, %v1173
    %v1175 = vrot.slane %v1174, 4
    %v1176 = vadd.f32 %v1174, %v1175
    %v1177 = vrot.slane %v1176, 2
    %v1178 = vadd.f32 %v1176, %v1177
    %v1179 = vrot.slane %v1178, 1
    %v1180 = vadd.f32 %v1178, %v1179
    %v1181 = vadd.f32 %v1170, %v1180
    %v1182 = vld [vmem:[%s149 + $0x10] sm:$0xff]
    %v1183 = vld [vmem:[%s273 + $0x10] sm:$0xff]
    %v1184 = vsub.f32 %v1182, %v1183
    %v1185 = vmul.f32 %v1184, %v1184
    %v1186 = vrot.slane %v1185, 4
    %v1187 = vadd.f32 %v1185, %v1186
    %v1188 = vrot.slane %v1187, 2
    %v1189 = vadd.f32 %v1187, %v1188
    %v1190 = vrot.slane %v1189, 1
    %v1191 = vadd.f32 %v1189, %v1190
    %v1192 = vadd.f32 %v1181, %v1191
    %v1193 = vld [vmem:[%s149 + $0x18] sm:$0xff]
    %v1194 = vld [vmem:[%s273 + $0x18] sm:$0xff]
    %v1195 = vsub.f32 %v1193, %v1194
    %v1196 = vmul.f32 %v1195, %v1195
    %v1197 = vrot.slane %v1196, 4
    %v1198 = vadd.f32 %v1196, %v1197
    %v1199 = vrot.slane %v1198, 2
    %v1200 = vadd.f32 %v1198, %v1199
    %v1201 = vrot.slane %v1200, 1
    %v1202 = vadd.f32 %v1200, %v1201
    %v1203 = vadd.f32 %v1192, %v1202
    %v1204 = vrsqrt.pop %v1203
    %v1205 = vmul.f32 %v1203, %v1204
    %vm1206 = vcmp.eq.f32.partialorder %v1203, inf
    %v1207 = vsel %vm1206, %v1203, %v1205
    %vm1208 = vcmp.eq.f32.partialorder %v1203, 0.0
    %v1209 = vand.u32 %v1203, 2147483648
    %v1210 = vsel %vm1208, %v1209, %v1207
    %v1211 = vmul.f32 %v1210, -1.0
    %v1212 = vmul.f32 %v1211, 1.442695
    %v1213 = vpow.pop %v1212
    %v1214 = vadd.f32 %v1156, %v1213
    %v1215 = vld [vmem:[#allocation2 + $0x4] sm:$0x1]
    %v1216 = vadd.f32 %v1215, %v1213
    %1217 = vst [vmem:[#allocation2 + $0x4] sm:$0x1] %v1216
    %v1218 = vld [vmem:[%s149] sm:$0xff]
    %v1219 = vld [vmem:[%s335] sm:$0xff]
    %v1220 = vsub.f32 %v1218, %v1219
    %v1221 = vmul.f32 %v1220, %v1220
    %v1222 = vrot.slane %v1221, 4
    %v1223 = vadd.f32 %v1221, %v1222
    %v1224 = vrot.slane %v1223, 2
    %v1225 = vadd.f32 %v1223, %v1224
    %v1226 = vrot.slane %v1225, 1
    %v1227 = vadd.f32 %v1225, %v1226
    %v1228 = vadd.f32 %v1227, 0.0
    %v1229 = vld [vmem:[%s149 + $0x8] sm:$0xff]
    %v1230 = vld [vmem:[%s335 + $0x8] sm:$0xff]
    %v1231 = vsub.f32 %v1229, %v1230
    %v1232 = vmul.f32 %v1231, %v1231
    %v1233 = vrot.slane %v1232, 4
    %v1234 = vadd.f32 %v1232, %v1233
    %v1235 = vrot.slane %v1234, 2
    %v1236 = vadd.f32 %v1234, %v1235
    %v1237 = vrot.slane %v1236, 1
    %v1238 = vadd.f32 %v1236, %v1237
    %v1239 = vadd.f32 %v1228, %v1238
    %v1240 = vld [vmem:[%s149 + $0x10] sm:$0xff]
    %v1241 = vld [vmem:[%s335 + $0x10] sm:$0xff]
    %v1242 = vsub.f32 %v1240, %v1241
    %v1243 = vmul.f32 %v1242, %v1242
    %v1244 = vrot.slane %v1243, 4
    %v1245 = vadd.f32 %v1243, %v1244
    %v1246 = vrot.slane %v1245, 2
    %v1247 = vadd.f32 %v1245, %v1246
    %v1248 = vrot.slane %v1247, 1
    %v1249 = vadd.f32 %v1247, %v1248
    %v1250 = vadd.f32 %v1239, %v1249
    %v1251 = vld [vmem:[%s149 + $0x18] sm:$0xff]
    %v1252 = vld [vmem:[%s335 + $0x18] sm:$0xff]
    %v1253 = vsub.f32 %v1251, %v1252
    %v1254 = vmul.f32 %v1253, %v1253
    %v1255 = vrot.slane %v1254, 4
    %v1256 = vadd.f32 %v1254, %v1255
    %v1257 = vrot.slane %v1256, 2
    %v1258 = vadd.f32 %v1256, %v1257
    %v1259 = vrot.slane %v1258, 1
    %v1260 = vadd.f32 %v1258, %v1259
    %v1261 = vadd.f32 %v1250, %v1260
    %v1262 = vrsqrt.pop %v1261
    %v1263 = vmul.f32 %v1261, %v1262
    %vm1264 = vcmp.eq.f32.partialorder %v1261, inf
    %v1265 = vsel %vm1264, %v1261, %v1263
    %vm1266 = vcmp.eq.f32.partialorder %v1261, 0.0
    %v1267 = vand.u32 %v1261, 2147483648
    %v1268 = vsel %vm1266, %v1267, %v1265
    %v1269 = vmul.f32 %v1268, -1.0
    %v1270 = vmul.f32 %v1269, 1.442695
    %v1271 = vpow.pop %v1270
    %v1272 = vadd.f32 %v1214, %v1271
    %v1273 = vld [vmem:[#allocation2 + $0x5] sm:$0x1]
    %v1274 = vadd.f32 %v1273, %v1271
    %1275 = vst [vmem:[#allocation2 + $0x5] sm:$0x1] %v1274
    %v1276 = vld [vmem:[%s149] sm:$0xff]
    %v1277 = vld [vmem:[%s397] sm:$0xff]
    %v1278 = vsub.f32 %v1276, %v1277
    %v1279 = vmul.f32 %v1278, %v1278
    %v1280 = vrot.slane %v1279, 4
    %v1281 = vadd.f32 %v1279, %v1280
    %v1282 = vrot.slane %v1281, 2
    %v1283 = vadd.f32 %v1281, %v1282
    %v1284 = vrot.slane %v1283, 1
    %v1285 = vadd.f32 %v1283, %v1284
    %v1286 = vadd.f32 %v1285, 0.0
    %v1287 = vld [vmem:[%s149 + $0x8] sm:$0xff]
    %v1288 = vld [vmem:[%s397 + $0x8] sm:$0xff]
    %v1289 = vsub.f32 %v1287, %v1288
    %v1290 = vmul.f32 %v1289, %v1289
    %v1291 = vrot.slane %v1290, 4
    %v1292 = vadd.f32 %v1290, %v1291
    %v1293 = vrot.slane %v1292, 2
    %v1294 = vadd.f32 %v1292, %v1293
    %v1295 = vrot.slane %v1294, 1
    %v1296 = vadd.f32 %v1294, %v1295
    %v1297 = vadd.f32 %v1286, %v1296
    %v1298 = vld [vmem:[%s149 + $0x10] sm:$0xff]
    %v1299 = vld [vmem:[%s397 + $0x10] sm:$0xff]
    %v1300 = vsub.f32 %v1298, %v1299
    %v1301 = vmul.f32 %v1300, %v1300
    %v1302 = vrot.slane %v1301, 4
    %v1303 = vadd.f32 %v1301, %v1302
    %v1304 = vrot.slane %v1303, 2
    %v1305 = vadd.f32 %v1303, %v1304
    %v1306 = vrot.slane %v1305, 1
    %v1307 = vadd.f32 %v1305, %v1306
    %v1308 = vadd.f32 %v1297, %v1307
    %v1309 = vld [vmem:[%s149 + $0x18] sm:$0xff]
    %v1310 = vld [vmem:[%s397 + $0x18] sm:$0xff]
    %v1311 = vsub.f32 %v1309, %v1310
    %v1312 = vmul.f32 %v1311, %v1311
    %v1313 = vrot.slane %v1312, 4
    %v1314 = vadd.f32 %v1312, %v1313
    %v1315 = vrot.slane %v1314, 2
    %v1316 = vadd.f32 %v1314, %v1315
    %v1317 = vrot.slane %v1316, 1
    %v1318 = vadd.f32 %v1316, %v1317
    %v1319 = vadd.f32 %v1308, %v1318
    %v1320 = vrsqrt.pop %v1319
    %v1321 = vmul.f32 %v1319, %v1320
    %vm1322 = vcmp.eq.f32.partialorder %v1319, inf
    %v1323 = vsel %vm1322, %v1319, %v1321
    %vm1324 = vcmp.eq.f32.partialorder %v1319, 0.0
    %v1325 = vand.u32 %v1319, 2147483648
    %v1326 = vsel %vm1324, %v1325, %v1323
    %v1327 = vmul.f32 %v1326, -1.0
    %v1328 = vmul.f32 %v1327, 1.442695
    %v1329 = vpow.pop %v1328
    %v1330 = vadd.f32 %v1272, %v1329
    %v1331 = vld [vmem:[#allocation2 + $0x6] sm:$0x1]
    %v1332 = vadd.f32 %v1331, %v1329
    %1333 = vst [vmem:[#allocation2 + $0x6] sm:$0x1] %v1332
    %v1334 = vld [vmem:[#allocation2 + $0x2] sm:$0x1]
    %v1335 = vadd.f32 %v1334, %v1330
    %1336 = vst [vmem:[#allocation2 + $0x2] sm:$0x1] %v1335
    %v1337 = vld [vmem:[%s211] sm:$0xff]
    %v1338 = vld [vmem:[%s273] sm:$0xff]
    %v1339 = vsub.f32 %v1337, %v1338
    %v1340 = vmul.f32 %v1339, %v1339
    %v1341 = vrot.slane %v1340, 4
    %v1342 = vadd.f32 %v1340, %v1341
    %v1343 = vrot.slane %v1342, 2
    %v1344 = vadd.f32 %v1342, %v1343
    %v1345 = vrot.slane %v1344, 1
    %v1346 = vadd.f32 %v1344, %v1345
    %v1347 = vadd.f32 %v1346, 0.0
    %v1348 = vld [vmem:[%s211 + $0x8] sm:$0xff]
    %v1349 = vld [vmem:[%s273 + $0x8] sm:$0xff]
    %v1350 = vsub.f32 %v1348, %v1349
    %v1351 = vmul.f32 %v1350, %v1350
    %v1352 = vrot.slane %v1351, 4
    %v1353 = vadd.f32 %v1351, %v1352
    %v1354 = vrot.slane %v1353, 2
    %v1355 = vadd.f32 %v1353, %v1354
    %v1356 = vrot.slane %v1355, 1
    %v1357 = vadd.f32 %v1355, %v1356
    %v1358 = vadd.f32 %v1347, %v1357
    %v1359 = vld [vmem:[%s211 + $0x10] sm:$0xff]
    %v1360 = vld [vmem:[%s273 + $0x10] sm:$0xff]
    %v1361 = vsub.f32 %v1359, %v1360
    %v1362 = vmul.f32 %v1361, %v1361
    %v1363 = vrot.slane %v1362, 4
    %v1364 = vadd.f32 %v1362, %v1363
    %v1365 = vrot.slane %v1364, 2
    %v1366 = vadd.f32 %v1364, %v1365
    %v1367 = vrot.slane %v1366, 1
    %v1368 = vadd.f32 %v1366, %v1367
    %v1369 = vadd.f32 %v1358, %v1368
    %v1370 = vld [vmem:[%s211 + $0x18] sm:$0xff]
    %v1371 = vld [vmem:[%s273 + $0x18] sm:$0xff]
    %v1372 = vsub.f32 %v1370, %v1371
    %v1373 = vmul.f32 %v1372, %v1372
    %v1374 = vrot.slane %v1373, 4
    %v1375 = vadd.f32 %v1373, %v1374
    %v1376 = vrot.slane %v1375, 2
    %v1377 = vadd.f32 %v1375, %v1376
    %v1378 = vrot.slane %v1377, 1
    %v1379 = vadd.f32 %v1377, %v1378
    %v1380 = vadd.f32 %v1369, %v1379
    %v1381 = vrsqrt.pop %v1380
    %v1382 = vmul.f32 %v1380, %v1381
    %vm1383 = vcmp.eq.f32.partialorder %v1380, inf
    %v1384 = vsel %vm1383, %v1380, %v1382
    %vm1385 = vcmp.eq.f32.partialorder %v1380, 0.0
    %v1386 = vand.u32 %v1380, 2147483648
    %v1387 = vsel %vm1385, %v1386, %v1384
    %v1388 = vmul.f32 %v1387, -1.0
    %v1389 = vmul.f32 %v1388, 1.442695
    %v1390 = vpow.pop %v1389
    %v1391 = vadd.f32 %v1390, 0.0
    %v1392 = vld [vmem:[#allocation2 + $0x4] sm:$0x1]
    %v1393 = vadd.f32 %v1392, %v1390
    %1394 = vst [vmem:[#allocation2 + $0x4] sm:$0x1] %v1393
    %v1395 = vld [vmem:[%s211] sm:$0xff]
    %v1396 = vld [vmem:[%s335] sm:$0xff]
    %v1397 = vsub.f32 %v1395, %v1396
    %v1398 = vmul.f32 %v1397, %v1397
    %v1399 = vrot.slane %v1398, 4
    %v1400 = vadd.f32 %v1398, %v1399
    %v1401 = vrot.slane %v1400, 2
    %v1402 = vadd.f32 %v1400, %v1401
    %v1403 = vrot.slane %v1402, 1
    %v1404 = vadd.f32 %v1402, %v1403
    %v1405 = vadd.f32 %v1404, 0.0
    %v1406 = vld [vmem:[%s211 + $0x8] sm:$0xff]
    %v1407 = vld [vmem:[%s335 + $0x8] sm:$0xff]
    %v1408 = vsub.f32 %v1406, %v1407
    %v1409 = vmul.f32 %v1408, %v1408
    %v1410 = vrot.slane %v1409, 4
    %v1411 = vadd.f32 %v1409, %v1410
    %v1412 = vrot.slane %v1411, 2
    %v1413 = vadd.f32 %v1411, %v1412
    %v1414 = vrot.slane %v1413, 1
    %v1415 = vadd.f32 %v1413, %v1414
    %v1416 = vadd.f32 %v1405, %v1415
    %v1417 = vld [vmem:[%s211 + $0x10] sm:$0xff]
    %v1418 = vld [vmem:[%s335 + $0x10] sm:$0xff]
    %v1419 = vsub.f32 %v1417, %v1418
    %v1420 = vmul.f32 %v1419, %v1419
    %v1421 = vrot.slane %v1420, 4
    %v1422 = vadd.f32 %v1420, %v1421
    %v1423 = vrot.slane %v1422, 2
    %v1424 = vadd.f32 %v1422, %v1423
    %v1425 = vrot.slane %v1424, 1
    %v1426 = vadd.f32 %v1424, %v1425
    %v1427 = vadd.f32 %v1416, %v1426
    %v1428 = vld [vmem:[%s211 + $0x18] sm:$0xff]
    %v1429 = vld [vmem:[%s335 + $0x18] sm:$0xff]
    %v1430 = vsub.f32 %v1428, %v1429
    %v1431 = vmul.f32 %v1430, %v1430
    %v1432 = vrot.slane %v1431, 4
    %v1433 = vadd.f32 %v1431, %v1432
    %v1434 = vrot.slane %v1433, 2
    %v1435 = vadd.f32 %v1433, %v1434
    %v1436 = vrot.slane %v1435, 1
    %v1437 = vadd.f32 %v1435, %v1436
    %v1438 = vadd.f32 %v1427, %v1437
    %v1439 = vrsqrt.pop %v1438
    %v1440 = vmul.f32 %v1438, %v1439
    %vm1441 = vcmp.eq.f32.partialorder %v1438, inf
    %v1442 = vsel %vm1441, %v1438, %v1440
    %vm1443 = vcmp.eq.f32.partialorder %v1438, 0.0
    %v1444 = vand.u32 %v1438, 2147483648
    %v1445 = vsel %vm1443, %v1444, %v1442
    %v1446 = vmul.f32 %v1445, -1.0
    %v1447 = vmul.f32 %v1446, 1.442695
    %v1448 = vpow.pop %v1447
    %v1449 = vadd.f32 %v1391, %v1448
    %v1450 = vld [vmem:[#allocation2 + $0x5] sm:$0x1]
    %v1451 = vadd.f32 %v1450, %v1448
    %1452 = vst [vmem:[#allocation2 + $0x5] sm:$0x1] %v1451
    %v1453 = vld [vmem:[%s211] sm:$0xff]
    %v1454 = vld [vmem:[%s397] sm:$0xff]
    %v1455 = vsub.f32 %v1453, %v1454
    %v1456 = vmul.f32 %v1455, %v1455
    %v1457 = vrot.slane %v1456, 4
    %v1458 = vadd.f32 %v1456, %v1457
    %v1459 = vrot.slane %v1458, 2
    %v1460 = vadd.f32 %v1458, %v1459
    %v1461 = vrot.slane %v1460, 1
    %v1462 = vadd.f32 %v1460, %v1461
    %v1463 = vadd.f32 %v1462, 0.0
    %v1464 = vld [vmem:[%s211 + $0x8] sm:$0xff]
    %v1465 = vld [vmem:[%s397 + $0x8] sm:$0xff]
    %v1466 = vsub.f32 %v1464, %v1465
    %v1467 = vmul.f32 %v1466, %v1466
    %v1468 = vrot.slane %v1467, 4
    %v1469 = vadd.f32 %v1467, %v1468
    %v1470 = vrot.slane %v1469, 2
    %v1471 = vadd.f32 %v1469, %v1470
    %v1472 = vrot.slane %v1471, 1
    %v1473 = vadd.f32 %v1471, %v1472
    %v1474 = vadd.f32 %v1463, %v1473
    %v1475 = vld [vmem:[%s211 + $0x10] sm:$0xff]
    %v1476 = vld [vmem:[%s397 + $0x10] sm:$0xff]
    %v1477 = vsub.f32 %v1475, %v1476
    %v1478 = vmul.f32 %v1477, %v1477
    %v1479 = vrot.slane %v1478, 4
    %v1480 = vadd.f32 %v1478, %v1479
    %v1481 = vrot.slane %v1480, 2
    %v1482 = vadd.f32 %v1480, %v1481
    %v1483 = vrot.slane %v1482, 1
    %v1484 = vadd.f32 %v1482, %v1483
    %v1485 = vadd.f32 %v1474, %v1484
    %v1486 = vld [vmem:[%s211 + $0x18] sm:$0xff]
    %v1487 = vld [vmem:[%s397 + $0x18] sm:$0xff]
    %v1488 = vsub.f32 %v1486, %v1487
    %v1489 = vmul.f32 %v1488, %v1488
    %v1490 = vrot.slane %v1489, 4
    %v1491 = vadd.f32 %v1489, %v1490
    %v1492 = vrot.slane %v1491, 2
    %v1493 = vadd.f32 %v1491, %v1492
    %v1494 = vrot.slane %v1493, 1
    %v1495 = vadd.f32 %v1493, %v1494
    %v1496 = vadd.f32 %v1485, %v1495
    %v1497 = vrsqrt.pop %v1496
    %v1498 = vmul.f32 %v1496, %v1497
    %vm1499 = vcmp.eq.f32.partialorder %v1496, inf
    %v1500 = vsel %vm1499, %v1496, %v1498
    %vm1501 = vcmp.eq.f32.partialorder %v1496, 0.0
    %v1502 = vand.u32 %v1496, 2147483648
    %v1503 = vsel %vm1501, %v1502, %v1500
    %v1504 = vmul.f32 %v1503, -1.0
    %v1505 = vmul.f32 %v1504, 1.442695
    %v1506 = vpow.pop %v1505
    %v1507 = vadd.f32 %v1449, %v1506
    %v1508 = vld [vmem:[#allocation2 + $0x6] sm:$0x1]
    %v1509 = vadd.f32 %v1508, %v1506
    %1510 = vst [vmem:[#allocation2 + $0x6] sm:$0x1] %v1509
    %v1511 = vld [vmem:[#allocation2 + $0x3] sm:$0x1]
    %v1512 = vadd.f32 %v1511, %v1507
    %1513 = vst [vmem:[#allocation2 + $0x3] sm:$0x1] %v1512
    %v1514 = vld [vmem:[%s273] sm:$0xff]
    %v1515 = vld [vmem:[%s335] sm:$0xff]
    %v1516 = vsub.f32 %v1514, %v1515
    %v1517 = vmul.f32 %v1516, %v1516
    %v1518 = vrot.slane %v1517, 4
    %v1519 = vadd.f32 %v1517, %v1518
    %v1520 = vrot.slane %v1519, 2
    %v1521 = vadd.f32 %v1519, %v1520
    %v1522 = vrot.slane %v1521, 1
    %v1523 = vadd.f32 %v1521, %v1522
    %v1524 = vadd.f32 %v1523, 0.0
    %v1525 = vld [vmem:[%s273 + $0x8] sm:$0xff]
    %v1526 = vld [vmem:[%s335 + $0x8] sm:$0xff]
    %v1527 = vsub.f32 %v1525, %v1526
    %v1528 = vmul.f32 %v1527, %v1527
    %v1529 = vrot.slane %v1528, 4
    %v1530 = vadd.f32 %v1528, %v1529
    %v1531 = vrot.slane %v1530, 2
    %v1532 = vadd.f32 %v1530, %v1531
    %v1533 = vrot.slane %v1532, 1
    %v1534 = vadd.f32 %v1532, %v1533
    %v1535 = vadd.f32 %v1524, %v1534
    %v1536 = vld [vmem:[%s273 + $0x10] sm:$0xff]
    %v1537 = vld [vmem:[%s335 + $0x10] sm:$0xff]
    %v1538 = vsub.f32 %v1536, %v1537
    %v1539 = vmul.f32 %v1538, %v1538
    %v1540 = vrot.slane %v1539, 4
    %v1541 = vadd.f32 %v1539, %v1540
    %v1542 = vrot.slane %v1541, 2
    %v1543 = vadd.f32 %v1541, %v1542
    %v1544 = vrot.slane %v1543, 1
    %v1545 = vadd.f32 %v1543, %v1544
    %v1546 = vadd.f32 %v1535, %v1545
    %v1547 = vld [vmem:[%s273 + $0x18] sm:$0xff]
    %v1548 = vld [vmem:[%s335 + $0x18] sm:$0xff]
    %v1549 = vsub.f32 %v1547, %v1548
    %v1550 = vmul.f32 %v1549, %v1549
    %v1551 = vrot.slane %v1550, 4
    %v1552 = vadd.f32 %v1550, %v1551
    %v1553 = vrot.slane %v1552, 2
    %v1554 = vadd.f32 %v1552, %v1553
    %v1555 = vrot.slane %v1554, 1
    %v1556 = vadd.f32 %v1554, %v1555
    %v1557 = vadd.f32 %v1546, %v1556
    %v1558 = vrsqrt.pop %v1557
    %v1559 = vmul.f32 %v1557, %v1558
    %vm1560 = vcmp.eq.f32.partialorder %v1557, inf
    %v1561 = vsel %vm1560, %v1557, %v1559
    %vm1562 = vcmp.eq.f32.partialorder %v1557, 0.0
    %v1563 = vand.u32 %v1557, 2147483648
    %v1564 = vsel %vm1562, %v1563, %v1561
    %v1565 = vmul.f32 %v1564, -1.0
    %v1566 = vmul.f32 %v1565, 1.442695
    %v1567 = vpow.pop %v1566
    %v1568 = vadd.f32 %v1567, 0.0
    %v1569 = vld [vmem:[#allocation2 + $0x5] sm:$0x1]
    %v1570 = vadd.f32 %v1569, %v1567
    %1571 = vst [vmem:[#allocation2 + $0x5] sm:$0x1] %v1570
    %v1572 = vld [vmem:[%s273] sm:$0xff]
    %v1573 = vld [vmem:[%s397] sm:$0xff]
    %v1574 = vsub.f32 %v1572, %v1573
    %v1575 = vmul.f32 %v1574, %v1574
    %v1576 = vrot.slane %v1575, 4
    %v1577 = vadd.f32 %v1575, %v1576
    %v1578 = vrot.slane %v1577, 2
    %v1579 = vadd.f32 %v1577, %v1578
    %v1580 = vrot.slane %v1579, 1
    %v1581 = vadd.f32 %v1579, %v1580
    %v1582 = vadd.f32 %v1581, 0.0
    %v1583 = vld [vmem:[%s273 + $0x8] sm:$0xff]
    %v1584 = vld [vmem:[%s397 + $0x8] sm:$0xff]
    %v1585 = vsub.f32 %v1583, %v1584
    %v1586 = vmul.f32 %v1585, %v1585
    %v1587 = vrot.slane %v1586, 4
    %v1588 = vadd.f32 %v1586, %v1587
    %v1589 = vrot.slane %v1588, 2
    %v1590 = vadd.f32 %v1588, %v1589
    %v1591 = vrot.slane %v1590, 1
    %v1592 = vadd.f32 %v1590, %v1591
    %v1593 = vadd.f32 %v1582, %v1592
    %v1594 = vld [vmem:[%s273 + $0x10] sm:$0xff]
    %v1595 = vld [vmem:[%s397 + $0x10] sm:$0xff]
    %v1596 = vsub.f32 %v1594, %v1595
    %v1597 = vmul.f32 %v1596, %v1596
    %v1598 = vrot.slane %v1597, 4
    %v1599 = vadd.f32 %v1597, %v1598
    %v1600 = vrot.slane %v1599, 2
    %v1601 = vadd.f32 %v1599, %v1600
    %v1602 = vrot.slane %v1601, 1
    %v1603 = vadd.f32 %v1601, %v1602
    %v1604 = vadd.f32 %v1593, %v1603
    %v1605 = vld [vmem:[%s273 + $0x18] sm:$0xff]
    %v1606 = vld [vmem:[%s397 + $0x18] sm:$0xff]
    %v1607 = vsub.f32 %v1605, %v1606
    %v1608 = vmul.f32 %v1607, %v1607
    %v1609 = vrot.slane %v1608, 4
    %v1610 = vadd.f32 %v1608, %v1609
    %v1611 = vrot.slane %v1610, 2
    %v1612 = vadd.f32 %v1610, %v1611
    %v1613 = vrot.slane %v1612, 1
    %v1614 = vadd.f32 %v1612, %v1613
    %v1615 = vadd.f32 %v1604, %v1614
    %v1616 = vrsqrt.pop %v1615
    %v1617 = vmul.f32 %v1615, %v1616
    %vm1618 = vcmp.eq.f32.partialorder %v1615, inf
    %v1619 = vsel %vm1618, %v1615, %v1617
    %vm1620 = vcmp.eq.f32.partialorder %v1615, 0.0
    %v1621 = vand.u32 %v1615, 2147483648
    %v1622 = vsel %vm1620, %v1621, %v1619
    %v1623 = vmul.f32 %v1622, -1.0
    %v1624 = vmul.f32 %v1623, 1.442695
    %v1625 = vpow.pop %v1624
    %v1626 = vadd.f32 %v1568, %v1625
    %v1627 = vld [vmem:[#allocation2 + $0x6] sm:$0x1]
    %v1628 = vadd.f32 %v1627, %v1625
    %1629 = vst [vmem:[#allocation2 + $0x6] sm:$0x1] %v1628
    %v1630 = vld [vmem:[#allocation2 + $0x4] sm:$0x1]
    %v1631 = vadd.f32 %v1630, %v1626
    %1632 = vst [vmem:[#allocation2 + $0x4] sm:$0x1] %v1631
    %v1633 = vld [vmem:[%s335] sm:$0xff]
    %v1634 = vld [vmem:[%s397] sm:$0xff]
    %v1635 = vsub.f32 %v1633, %v1634
    %v1636 = vmul.f32 %v1635, %v1635
    %v1637 = vrot.slane %v1636, 4
    %v1638 = vadd.f32 %v1636, %v1637
    %v1639 = vrot.slane %v1638, 2
    %v1640 = vadd.f32 %v1638, %v1639
    %v1641 = vrot.slane %v1640, 1
    %v1642 = vadd.f32 %v1640, %v1641
    %v1643 = vadd.f32 %v1642, 0.0
    %v1644 = vld [vmem:[%s335 + $0x8] sm:$0xff]
    %v1645 = vld [vmem:[%s397 + $0x8] sm:$0xff]
    %v1646 = vsub.f32 %v1644, %v1645
    %v1647 = vmul.f32 %v1646, %v1646
    %v1648 = vrot.slane %v1647, 4
    %v1649 = vadd.f32 %v1647, %v1648
    %v1650 = vrot.slane %v1649, 2
    %v1651 = vadd.f32 %v1649, %v1650
    %v1652 = vrot.slane %v1651, 1
    %v1653 = vadd.f32 %v1651, %v1652
    %v1654 = vadd.f32 %v1643, %v1653
    %v1655 = vld [vmem:[%s335 + $0x10] sm:$0xff]
    %v1656 = vld [vmem:[%s397 + $0x10] sm:$0xff]
    %v1657 = vsub.f32 %v1655, %v1656
    %v1658 = vmul.f32 %v1657, %v1657
    %v1659 = vrot.slane %v1658, 4
    %v1660 = vadd.f32 %v1658, %v1659
    %v1661 = vrot.slane %v1660, 2
    %v1662 = vadd.f32 %v1660, %v1661
    %v1663 = vrot.slane %v1662, 1
    %v1664 = vadd.f32 %v1662, %v1663
    %v1665 = vadd.f32 %v1654, %v1664
    %v1666 = vld [vmem:[%s335 + $0x18] sm:$0xff]
    %v1667 = vld [vmem:[%s397 + $0x18] sm:$0xff]
    %v1668 = vsub.f32 %v1666, %v1667
    %v1669 = vmul.f32 %v1668, %v1668
    %v1670 = vrot.slane %v1669, 4
    %v1671 = vadd.f32 %v1669, %v1670
    %v1672 = vrot.slane %v1671, 2
    %v1673 = vadd.f32 %v1671, %v1672
    %v1674 = vrot.slane %v1673, 1
    %v1675 = vadd.f32 %v1673, %v1674
    %v1676 = vadd.f32 %v1665, %v1675
    %v1677 = vrsqrt.pop %v1676
    %v1678 = vmul.f32 %v1676, %v1677
    %vm1679 = vcmp.eq.f32.partialorder %v1676, inf
    %v1680 = vsel %vm1679, %v1676, %v1678
    %vm1681 = vcmp.eq.f32.partialorder %v1676, 0.0
    %v1682 = vand.u32 %v1676, 2147483648
    %v1683 = vsel %vm1681, %v1682, %v1680
    %v1684 = vmul.f32 %v1683, -1.0
    %v1685 = vmul.f32 %v1684, 1.442695
    %v1686 = vpow.pop %v1685
    %v1687 = vadd.f32 %v1686, 0.0
    %v1688 = vld [vmem:[#allocation2 + $0x6] sm:$0x1]
    %v1689 = vadd.f32 %v1688, %v1686
    %1690 = vst [vmem:[#allocation2 + $0x6] sm:$0x1] %v1689
    %v1691 = vld [vmem:[#allocation2 + $0x5] sm:$0x1]
    %v1692 = vadd.f32 %v1691, %v1687
    %1693 = vst [vmem:[#allocation2 + $0x5] sm:$0x1] %v1692
    %v1694 = vld [vmem:[#allocation2] sm:$0x7f]
    %v1695 = vadd.f32 %v1694, 7e-08
    %v1696 = vlog2.pop %v1695
    %v1697 = vmul.f32 %v1696, 0.6931472
    %vm1698 = vcmask 1046528
    %v1699 = vsel %vm1698, %v1697, 0.0
    %v1700 = vrot.slane %v1699, 4
    %v1701 = vadd.f32 %v1699, %v1700
    %v1702 = vrot.slane %v1701, 2
    %v1703 = vadd.f32 %v1701, %v1702
    %v1704 = vrot.slane %v1703, 1
    %v1705 = vadd.f32 %v1703, %v1704
    %v1706 = vsub.f32 %v1705, %v457
    %v1707 = vmul.f32 %v1706, 0.07341405
    %1708 = vst [vmem:[#allocation6] sm:$0x1] %v1707
    // Predicated region
    $region10: #{tpu_custom_call.1} parent=1 // pred_check
      _
    $region11: #{tpu_custom_call.1} parent=1 // pred_check_branch
      %1710 = sbr.rel (0) target = $region13
    $region12: #{tpu_custom_call.1} parent=1 // pred_region
      %s1712 = ssub.s32 16, 16
      %1713 = vsyncadd [#allocation5], %s1712
      %s1715 = sshll.u32 [#allocation6], 4
      %s1716 = int_to_ptr.vmem [resolvable:$true] %s1715
      %1718 = dma.vmem_to_hbm [thread:$0]  %s1716, 16, %s1, [#allocation5]
    $region13: #{tpu_custom_call.1} parent=1 // pred_fallthru
      _
    // Predicated region
    $region14: #{tpu_custom_call.1} parent=1 // pred_check
      _
    $region15: #{tpu_custom_call.1} parent=1 // pred_check_branch
      %1720 = sbr.rel (0) target = $region17
    $region16: #{tpu_custom_call.1} parent=1 // pred_region
      %1721 = dma.done [#allocation5], 16
    $region17: #{tpu_custom_call.1} parent=1 // pred_fallthru
      _
    %1722 = vsyncpa [#allocation4], 1
    %1723 = vsyncpa [#allocation5], 1

</llo_original>
